<compile_context>
chip_gen: v6e
topology: v6e:2x2x1
jax: 0.10.0
libtpu: 0.0.40
codegen_flags: <defaults>
</compile_context>

<pallas_src>
import math
from functools import partial

import jax
import jax.numpy as jnp
from jax.experimental import pallas as pl
from jax.experimental.pallas import tpu as pltpu

NEG_SLOPE = 0.1  # GATLayer default neg_slope


def gat_fused_kernel(x_ref, wp_ref, bias_ref, ew_ref, mlp_w_ref, mlp_b_ref,
                     o_ref, h_buf,
                     *, num_layers, num_heads, head_dim):
    """Full GAT forward: L layers (fused proj+logits, edge softmax,
    aggregation, ReLU) and the final linear, all resident in VMEM."""
    hd_total = num_heads * head_dim
    neg_bias = bias_ref[...]                       # [N, N]  0 on-edge / -1e30 off-edge
    ew = ew_ref[...]                               # [N, N]  edge weights 'w'

    h = x_ref[...]                                 # [N, F] f32
    acc = jnp.zeros(o_ref.shape, jnp.float32)      # out_mlp accumulator

    for li in range(num_layers):                   # static unroll over layers
        # ONE matmul: [feat | el_all | er_all]  (attn vectors folded into W')
        proj = jnp.dot(h, wp_ref[li], preferred_element_type=jnp.float32)
        feat = proj[:, :hd_total]                                      # [N, H*D]
        el_all = proj[:, hd_total:hd_total + num_heads]                # [N, H] (src)
        er_all = proj[:, hd_total + num_heads:hd_total + 2 * num_heads]  # [N, H] (dst)
        el_t = el_all.T                            # [H, N] — single transpose per layer

        for hd in range(num_heads):                # static unroll over heads
            # e[i, j] = el[j, hd] + er[i, hd]   (dst i, src j)
            e = er_all[:, hd:hd + 1] + el_t[hd:hd + 1, :]              # [N, N]
            e = jnp.where(e > 0, e, NEG_SLOPE * e)                     # LeakyReLU
            e = ew * e + neg_bias                                      # edge wt + mask
            # masked softmax over incoming edges (axis=1 == src axis)
            e = e - jnp.max(e, axis=1, keepdims=True)
            p = jnp.exp(e)                         # off-edge terms already ~0 via bias
            rs = jnp.maximum(jnp.sum(p, axis=1, keepdims=True), 1e-20)
            a = p * pl.reciprocal(rs, approx=True)                     # [N, N]
            # out[i, :] = sum_j a[i, j] * feat[j, hd*D:(hd+1)*D]
            out_h = jnp.dot(a, feat[:, hd * head_dim:(hd + 1) * head_dim],
                            preferred_element_type=jnp.float32)        # [N, D]
            # head-concat via static-offset scratch writes (no in-kernel concat)
            h_buf[:, hd * head_dim:(hd + 1) * head_dim] = out_h

        h = jnp.maximum(h_buf[...], 0.0)           # activation = F.relu -> next layer in
        # layer-concat + out_mlp folded into an accumulated matmul
        acc = acc + jnp.dot(h, mlp_w_ref[li * hd_total:(li + 1) * hd_total, :],
                            preferred_element_type=jnp.float32)

    o_ref[...] = acc + mlp_b_ref[...]              # only HBM store of the whole forward


def _block_diag_attn(a):
    """[H, D] per-head attention vector -> [H*D, H] block-diagonal matrix so
    that feat2d @ A gives the per-head logits (folded into W' in the wrapper)."""
    hh, dd = a.shape
    eye = jnp.eye(hh, dtype=a.dtype)
    return (a[:, :, None] * eye[:, None, :]).reshape(hh * dd, hh)


def gat_forward(x, layer_params, mlp_w, mlp_b, adj, ew, *, num_heads, head_dim):
    num_layers = len(layer_params)
    # Fold attention vectors into the projection weight (wrapper-side, once).
    wps = []
    for (W, al, ar) in layer_params:
        A_l = _block_diag_attn(al)                 # [H*D, H]
        A_r = _block_diag_attn(ar)                 # [H*D, H]
        wps.append(jnp.concatenate([W, W @ A_l, W @ A_r], axis=1))
    wp_stack = jnp.stack(wps)                      # [L, F, H*D + 2H]

    # Precompute the off-edge softmax bias once (kernel does no mask recompute).
    neg_bias = jnp.where(adj > 0.0, 0.0, -1e30).astype(jnp.float32)   # [N, N]

    n = x.shape[0]
    out_dim = mlp_w.shape[1]
    vmem = pl.BlockSpec(memory_space=pltpu.MemorySpace.VMEM)

    return pl.pallas_call(
        partial(gat_fused_kernel, num_layers=num_layers,
                num_heads=num_heads, head_dim=head_dim),
        out_shape=jax.ShapeDtypeStruct((n, out_dim), jnp.float32),
        in_specs=[vmem] * 6,
        out_specs=vmem,
        scratch_shapes=[pltpu.VMEM((n, num_heads * head_dim), jnp.float32)],
        compiler_params=pltpu.CompilerParams(vmem_limit_bytes=32 * 1024 * 1024),
    )(x, wp_stack, neg_bias, ew, mlp_w, mlp_b)


if __name__ == "__main__":
    # Small, self-consistent shapes (in_dim == out_dim so layers can be chained,
    # exactly as the PyTorch module requires).
    N = 64            # batch_size * snp * num_node (flattened nodes)
    in_dim = 32
    out_dim = 32
    num_layers = 2
    num_heads = 4
    head_dim = out_dim // num_heads   # int(out_dim / num_heads)

    key = jax.random.PRNGKey(0)
    keys = jax.random.split(key, 8)
    gain = math.sqrt(2.0)             # nn.init.calculate_gain('relu')

    def xavier(k, shape, fan_in, fan_out):
        a = gain * math.sqrt(6.0 / (fan_in + fan_out))
        return jax.random.uniform(k, shape, jnp.float32, -a, a)

    # Per-layer parameters (deterministic xavier-uniform init).
    layer_params = []
    for li in range(num_layers):
        kw, kl, kr = jax.random.split(keys[li], 3)
        W = xavier(kw, (in_dim, num_heads * head_dim),
                   fan_in=in_dim, fan_out=num_heads * head_dim)        # fc (no bias)
        al = xavier(kl, (num_heads, head_dim),
                    fan_in=num_heads * head_dim, fan_out=head_dim)     # attn_left
        ar = xavier(kr, (num_heads, head_dim),
                    fan_in=num_heads * head_dim, fan_out=head_dim)     # attn_right
        layer_params.append((W, al, ar))

    # Final MLP: Linear(num_layers*out_dim, out_dim) with bias.
    km_w, km_b = jax.random.split(keys[4], 2)
    bound = 1.0 / math.sqrt(num_layers * out_dim)
    mlp_w = jax.random.uniform(km_w, (num_layers * out_dim, out_dim),
                               jnp.float32, -bound, bound)
    mlp_b = jax.random.uniform(km_b, (1, out_dim), jnp.float32, -bound, bound)

    # Dense graph: random adjacency (with self loops) + positive edge weights 'w'.
    ka, ke, kx = jax.random.split(keys[5], 3)
    adj = (jax.random.uniform(ka, (N, N)) < 0.2).astype(jnp.float32)
    adj = jnp.maximum(adj, jnp.eye(N, dtype=jnp.float32))
    ew = jax.random.uniform(ke, (N, N), jnp.float32, 0.1, 1.0) * adj

    # Node features.
    x = jax.random.normal(kx, (N, in_dim), jnp.float32)

    y = gat_forward(x, layer_params, mlp_w, mlp_b, adj, ew,
                    num_heads=num_heads, head_dim=head_dim)
    jax.block_until_ready(y)
    assert y.shape == (N, out_dim)
    assert bool(jnp.all(jnp.isfinite(y)))
    print("KERNEL_OK")
</pallas_src>

<mosaic_0001>
module attributes {stable_mosaic.version = 11 : i64} {
  func.func @gat_fused_kernel(%arg0: memref<64x32xf32, #tpu.memory_space<vmem>>, %arg1: memref<2x32x40xf32, #tpu.memory_space<vmem>>, %arg2: memref<64x64xf32, #tpu.memory_space<vmem>>, %arg3: memref<64x64xf32, #tpu.memory_space<vmem>>, %arg4: memref<64x32xf32, #tpu.memory_space<vmem>>, %arg5: memref<1x32xf32, #tpu.memory_space<vmem>>, %arg6: memref<64x32xf32, #tpu.memory_space<vmem>>, %arg7: memref<64x32xf32, #tpu.memory_space<vmem>>) attributes {dimension_semantics = [], scalar_prefetch = 0 : i64, scratch_operands = 1 : i64, tpu.core_type = #tpu.core_type<tc>} {
    %c0 = arith.constant 0 : index
    %c0_0 = arith.constant 0 : index
    %0 = vector.load %arg2[%c0, %c0_0] : memref<64x64xf32, #tpu.memory_space<vmem>>, vector<64x64xf32>
    %c0_1 = arith.constant 0 : index
    %c0_2 = arith.constant 0 : index
    %1 = vector.load %arg3[%c0_1, %c0_2] : memref<64x64xf32, #tpu.memory_space<vmem>>, vector<64x64xf32>
    %c0_3 = arith.constant 0 : index
    %c0_4 = arith.constant 0 : index
    %2 = vector.load %arg0[%c0_3, %c0_4] : memref<64x32xf32, #tpu.memory_space<vmem>>, vector<64x32xf32>
    %cst = arith.constant 0.000000e+00 : f32
    %3 = vector.broadcast %cst : f32 to vector<64x32xf32>
    %c0_5 = arith.constant 0 : index
    %c0_6 = arith.constant 0 : index
    %c0_7 = arith.constant 0 : index
    %4 = vector.load %arg1[%c0_5, %c0_6, %c0_7] : memref<2x32x40xf32, #tpu.memory_space<vmem>>, vector<1x32x40xf32>
    %5 = vector.shape_cast %4 : vector<1x32x40xf32> to vector<32x40xf32>
    %cst_8 = arith.constant dense<0.000000e+00> : vector<64x40xf32>
    %6 = tpu.matmul %2, %5, %cst_8 {dimension_numbers = #tpu.dot_dimension_numbers<[1], [0], [0], [1], [0, 0, 1, 1], [], []>} : vector<64x32xf32>, vector<32x40xf32>, vector<64x40xf32> -> vector<64x40xf32>
    %7 = vector.extract_strided_slice %6 {offsets = [0, 0], sizes = [64, 32], strides = [1, 1]} : vector<64x40xf32> to vector<64x32xf32>
    %8 = vector.extract_strided_slice %6 {offsets = [0, 32], sizes = [64, 4], strides = [1, 1]} : vector<64x40xf32> to vector<64x4xf32>
    %9 = vector.extract_strided_slice %6 {offsets = [0, 36], sizes = [64, 4], strides = [1, 1]} : vector<64x40xf32> to vector<64x4xf32>
    %10 = tpu.transpose %8, [1, 0] : vector<64x4xf32> -> vector<4x64xf32>
    %11 = vector.extract_strided_slice %9 {offsets = [0, 0], sizes = [64, 1], strides = [1, 1]} : vector<64x4xf32> to vector<64x1xf32>
    %12 = vector.extract_strided_slice %10 {offsets = [0, 0], sizes = [1, 64], strides = [1, 1]} : vector<4x64xf32> to vector<1x64xf32>
    %13 = vector.broadcast %11 : vector<64x1xf32> to vector<64x64xf32>
    %14 = vector.broadcast %12 : vector<1x64xf32> to vector<64x64xf32>
    %15 = arith.addf %13, %14 : vector<64x64xf32>
    %cst_9 = arith.constant 0.000000e+00 : f32
    %16 = vector.broadcast %cst_9 : f32 to vector<64x64xf32>
    %17 = arith.cmpf ogt, %15, %16 : vector<64x64xf32>
    %cst_10 = arith.constant 1.000000e-01 : f32
    %18 = vector.broadcast %cst_10 : f32 to vector<64x64xf32>
    %19 = arith.mulf %18, %15 : vector<64x64xf32>
    %20 = arith.select %17, %15, %19 : vector<64x64xi1>, vector<64x64xf32>
    %21 = arith.mulf %1, %20 : vector<64x64xf32>
    %22 = arith.addf %21, %0 : vector<64x64xf32>
    %cst_11 = arith.constant dense<0xFF800000> : vector<64xf32>
    %23 = vector.multi_reduction <maximumf>, %22, %cst_11 [1] : vector<64x64xf32> to vector<64xf32>
    %24 = vector.shape_cast %23 : vector<64xf32> to vector<64x1xf32>
    %25 = vector.broadcast %24 : vector<64x1xf32> to vector<64x64xf32>
    %26 = arith.subf %22, %25 : vector<64x64xf32>
    %27 = math.exp %26 : vector<64x64xf32>
    %cst_12 = arith.constant dense<0.000000e+00> : vector<64xf32>
    %28 = vector.multi_reduction <add>, %27, %cst_12 [1] : vector<64x64xf32> to vector<64xf32>
    %29 = vector.shape_cast %28 : vector<64xf32> to vector<64x1xf32>
    %cst_13 = arith.constant 9.99999968E-21 : f32
    %30 = vector.broadcast %cst_13 : f32 to vector<64x1xf32>
    %31 = arith.maximumf %29, %30 : vector<64x1xf32>
    %32 = tpu.reciprocal %31 {approx = true} : vector<64x1xf32> -> vector<64x1xf32>
    %33 = vector.broadcast %32 : vector<64x1xf32> to vector<64x64xf32>
    %34 = arith.mulf %27, %33 : vector<64x64xf32>
    %35 = vector.extract_strided_slice %7 {offsets = [0, 0], sizes = [64, 8], strides = [1, 1]} : vector<64x32xf32> to vector<64x8xf32>
    %cst_14 = arith.constant dense<0.000000e+00> : vector<64x8xf32>
    %36 = tpu.matmul %34, %35, %cst_14 {dimension_numbers = #tpu.dot_dimension_numbers<[1], [0], [0], [1], [0, 0, 1, 1], [], []>} : vector<64x64xf32>, vector<64x8xf32>, vector<64x8xf32> -> vector<64x8xf32>
    %c0_15 = arith.constant 0 : index
    %c0_16 = arith.constant 0 : index
    %37 = vector.load %arg7[%c0_15, %c0_16] : memref<64x32xf32, #tpu.memory_space<vmem>>, vector<64x8xf32>
    tpu.vector_store %arg7[%c0_15, %c0_16], %36 {strides = array<i32>} : memref<64x32xf32, #tpu.memory_space<vmem>>, vector<64x8xf32>,
    %38 = vector.extract_strided_slice %9 {offsets = [0, 1], sizes = [64, 1], strides = [1, 1]} : vector<64x4xf32> to vector<64x1xf32>
    %39 = vector.extract_strided_slice %10 {offsets = [1, 0], sizes = [1, 64], strides = [1, 1]} : vector<4x64xf32> to vector<1x64xf32>
    %40 = vector.broadcast %38 : vector<64x1xf32> to vector<64x64xf32>
    %41 = vector.broadcast %39 : vector<1x64xf32> to vector<64x64xf32>
    %42 = arith.addf %40, %41 : vector<64x64xf32>
    %cst_17 = arith.constant 0.000000e+00 : f32
    %43 = vector.broadcast %cst_17 : f32 to vector<64x64xf32>
    %44 = arith.cmpf ogt, %42, %43 : vector<64x64xf32>
    %cst_18 = arith.constant 1.000000e-01 : f32
    %45 = vector.broadcast %cst_18 : f32 to vector<64x64xf32>
    %46 = arith.mulf %45, %42 : vector<64x64xf32>
    %47 = arith.select %44, %42, %46 : vector<64x64xi1>, vector<64x64xf32>
    %48 = arith.mulf %1, %47 : vector<64x64xf32>
    %49 = arith.addf %48, %0 : vector<64x64xf32>
    %cst_19 = arith.constant dense<0xFF800000> : vector<64xf32>
    %50 = vector.multi_reduction <maximumf>, %49, %cst_19 [1] : vector<64x64xf32> to vector<64xf32>
    %51 = vector.shape_cast %50 : vector<64xf32> to vector<64x1xf32>
    %52 = vector.broadcast %51 : vector<64x1xf32> to vector<64x64xf32>
    %53 = arith.subf %49, %52 : vector<64x64xf32>
    %54 = math.exp %53 : vector<64x64xf32>
    %cst_20 = arith.constant dense<0.000000e+00> : vector<64xf32>
    %55 = vector.multi_reduction <add>, %54, %cst_20 [1] : vector<64x64xf32> to vector<64xf32>
    %56 = vector.shape_cast %55 : vector<64xf32> to vector<64x1xf32>
    %cst_21 = arith.constant 9.99999968E-21 : f32
    %57 = vector.broadcast %cst_21 : f32 to vector<64x1xf32>
    %58 = arith.maximumf %56, %57 : vector<64x1xf32>
    %59 = tpu.reciprocal %58 {approx = true} : vector<64x1xf32> -> vector<64x1xf32>
    %60 = vector.broadcast %59 : vector<64x1xf32> to vector<64x64xf32>
    %61 = arith.mulf %54, %60 : vector<64x64xf32>
    %62 = vector.extract_strided_slice %7 {offsets = [0, 8], sizes = [64, 8], strides = [1, 1]} : vector<64x32xf32> to vector<64x8xf32>
    %cst_22 = arith.constant dense<0.000000e+00> : vector<64x8xf32>
    %63 = tpu.matmul %61, %62, %cst_22 {dimension_numbers = #tpu.dot_dimension_numbers<[1], [0], [0], [1], [0, 0, 1, 1], [], []>} : vector<64x64xf32>, vector<64x8xf32>, vector<64x8xf32> -> vector<64x8xf32>
    %c0_23 = arith.constant 0 : index
    %c8 = arith.constant 8 : index
    %64 = vector.load %arg7[%c0_23, %c8] : memref<64x32xf32, #tpu.memory_space<vmem>>, vector<64x8xf32>
    tpu.vector_store %arg7[%c0_23, %c8], %63 {strides = array<i32>} : memref<64x32xf32, #tpu.memory_space<vmem>>, vector<64x8xf32>,
    %65 = vector.extract_strided_slice %9 {offsets = [0, 2], sizes = [64, 1], strides = [1, 1]} : vector<64x4xf32> to vector<64x1xf32>
    %66 = vector.extract_strided_slice %10 {offsets = [2, 0], sizes = [1, 64], strides = [1, 1]} : vector<4x64xf32> to vector<1x64xf32>
    %67 = vector.broadcast %65 : vector<64x1xf32> to vector<64x64xf32>
    %68 = vector.broadcast %66 : vector<1x64xf32> to vector<64x64xf32>
    %69 = arith.addf %67, %68 : vector<64x64xf32>
    %cst_24 = arith.constant 0.000000e+00 : f32
    %70 = vector.broadcast %cst_24 : f32 to vector<64x64xf32>
    %71 = arith.cmpf ogt, %69, %70 : vector<64x64xf32>
    %cst_25 = arith.constant 1.000000e-01 : f32
    %72 = vector.broadcast %cst_25 : f32 to vector<64x64xf32>
    %73 = arith.mulf %72, %69 : vector<64x64xf32>
    %74 = arith.select %71, %69, %73 : vector<64x64xi1>, vector<64x64xf32>
    %75 = arith.mulf %1, %74 : vector<64x64xf32>
    %76 = arith.addf %75, %0 : vector<64x64xf32>
    %cst_26 = arith.constant dense<0xFF800000> : vector<64xf32>
    %77 = vector.multi_reduction <maximumf>, %76, %cst_26 [1] : vector<64x64xf32> to vector<64xf32>
    %78 = vector.shape_cast %77 : vector<64xf32> to vector<64x1xf32>
    %79 = vector.broadcast %78 : vector<64x1xf32> to vector<64x64xf32>
    %80 = arith.subf %76, %79 : vector<64x64xf32>
    %81 = math.exp %80 : vector<64x64xf32>
    %cst_27 = arith.constant dense<0.000000e+00> : vector<64xf32>
    %82 = vector.multi_reduction <add>, %81, %cst_27 [1] : vector<64x64xf32> to vector<64xf32>
    %83 = vector.shape_cast %82 : vector<64xf32> to vector<64x1xf32>
    %cst_28 = arith.constant 9.99999968E-21 : f32
    %84 = vector.broadcast %cst_28 : f32 to vector<64x1xf32>
    %85 = arith.maximumf %83, %84 : vector<64x1xf32>
    %86 = tpu.reciprocal %85 {approx = true} : vector<64x1xf32> -> vector<64x1xf32>
    %87 = vector.broadcast %86 : vector<64x1xf32> to vector<64x64xf32>
    %88 = arith.mulf %81, %87 : vector<64x64xf32>
    %89 = vector.extract_strided_slice %7 {offsets = [0, 16], sizes = [64, 8], strides = [1, 1]} : vector<64x32xf32> to vector<64x8xf32>
    %cst_29 = arith.constant dense<0.000000e+00> : vector<64x8xf32>
    %90 = tpu.matmul %88, %89, %cst_29 {dimension_numbers = #tpu.dot_dimension_numbers<[1], [0], [0], [1], [0, 0, 1, 1], [], []>} : vector<64x64xf32>, vector<64x8xf32>, vector<64x8xf32> -> vector<64x8xf32>
    %c0_30 = arith.constant 0 : index
    %c16 = arith.constant 16 : index
    %91 = vector.load %arg7[%c0_30, %c16] : memref<64x32xf32, #tpu.memory_space<vmem>>, vector<64x8xf32>
    tpu.vector_store %arg7[%c0_30, %c16], %90 {strides = array<i32>} : memref<64x32xf32, #tpu.memory_space<vmem>>, vector<64x8xf32>,
    %92 = vector.extract_strided_slice %9 {offsets = [0, 3], sizes = [64, 1], strides = [1, 1]} : vector<64x4xf32> to vector<64x1xf32>
    %93 = vector.extract_strided_slice %10 {offsets = [3, 0], sizes = [1, 64], strides = [1, 1]} : vector<4x64xf32> to vector<1x64xf32>
    %94 = vector.broadcast %92 : vector<64x1xf32> to vector<64x64xf32>
    %95 = vector.broadcast %93 : vector<1x64xf32> to vector<64x64xf32>
    %96 = arith.addf %94, %95 : vector<64x64xf32>
    %cst_31 = arith.constant 0.000000e+00 : f32
    %97 = vector.broadcast %cst_31 : f32 to vector<64x64xf32>
    %98 = arith.cmpf ogt, %96, %97 : vector<64x64xf32>
    %cst_32 = arith.constant 1.000000e-01 : f32
    %99 = vector.broadcast %cst_32 : f32 to vector<64x64xf32>
    %100 = arith.mulf %99, %96 : vector<64x64xf32>
    %101 = arith.select %98, %96, %100 : vector<64x64xi1>, vector<64x64xf32>
    %102 = arith.mulf %1, %101 : vector<64x64xf32>
    %103 = arith.addf %102, %0 : vector<64x64xf32>
    %cst_33 = arith.constant dense<0xFF800000> : vector<64xf32>
    %104 = vector.multi_reduction <maximumf>, %103, %cst_33 [1] : vector<64x64xf32> to vector<64xf32>
    %105 = vector.shape_cast %104 : vector<64xf32> to vector<64x1xf32>
    %106 = vector.broadcast %105 : vector<64x1xf32> to vector<64x64xf32>
    %107 = arith.subf %103, %106 : vector<64x64xf32>
    %108 = math.exp %107 : vector<64x64xf32>
    %cst_34 = arith.constant dense<0.000000e+00> : vector<64xf32>
    %109 = vector.multi_reduction <add>, %108, %cst_34 [1] : vector<64x64xf32> to vector<64xf32>
    %110 = vector.shape_cast %109 : vector<64xf32> to vector<64x1xf32>
    %cst_35 = arith.constant 9.99999968E-21 : f32
    %111 = vector.broadcast %cst_35 : f32 to vector<64x1xf32>
    %112 = arith.maximumf %110, %111 : vector<64x1xf32>
    %113 = tpu.reciprocal %112 {approx = true} : vector<64x1xf32> -> vector<64x1xf32>
    %114 = vector.broadcast %113 : vector<64x1xf32> to vector<64x64xf32>
    %115 = arith.mulf %108, %114 : vector<64x64xf32>
    %116 = vector.extract_strided_slice %7 {offsets = [0, 24], sizes = [64, 8], strides = [1, 1]} : vector<64x32xf32> to vector<64x8xf32>
    %cst_36 = arith.constant dense<0.000000e+00> : vector<64x8xf32>
    %117 = tpu.matmul %115, %116, %cst_36 {dimension_numbers = #tpu.dot_dimension_numbers<[1], [0], [0], [1], [0, 0, 1, 1], [], []>} : vector<64x64xf32>, vector<64x8xf32>, vector<64x8xf32> -> vector<64x8xf32>
    %c0_37 = arith.constant 0 : index
    %c24 = arith.constant 24 : index
    %118 = vector.load %arg7[%c0_37, %c24] : memref<64x32xf32, #tpu.memory_space<vmem>>, vector<64x8xf32>
    tpu.vector_store %arg7[%c0_37, %c24], %117 {strides = array<i32>} : memref<64x32xf32, #tpu.memory_space<vmem>>, vector<64x8xf32>,
    %c0_38 = arith.constant 0 : index
    %c0_39 = arith.constant 0 : index
    %119 = vector.load %arg7[%c0_38, %c0_39] : memref<64x32xf32, #tpu.memory_space<vmem>>, vector<64x32xf32>
    %cst_40 = arith.constant 0.000000e+00 : f32
    %120 = vector.broadcast %cst_40 : f32 to vector<64x32xf32>
    %121 = arith.maximumf %119, %120 : vector<64x32xf32>
    %c0_41 = arith.constant 0 : index
    %c0_42 = arith.constant 0 : index
    %122 = vector.load %arg4[%c0_41, %c0_42] : memref<64x32xf32, #tpu.memory_space<vmem>>, vector<32x32xf32>
    %cst_43 = arith.constant dense<0.000000e+00> : vector<64x32xf32>
    %123 = tpu.matmul %121, %122, %cst_43 {dimension_numbers = #tpu.dot_dimension_numbers<[1], [0], [0], [1], [0, 0, 1, 1], [], []>} : vector<64x32xf32>, vector<32x32xf32>, vector<64x32xf32> -> vector<64x32xf32>
    %124 = arith.addf %3, %123 : vector<64x32xf32>
    %c1 = arith.constant 1 : index
    %c0_44 = arith.constant 0 : index
    %c0_45 = arith.constant 0 : index
    %125 = vector.load %arg1[%c1, %c0_44, %c0_45] : memref<2x32x40xf32, #tpu.memory_space<vmem>>, vector<1x32x40xf32>
    %126 = vector.shape_cast %125 : vector<1x32x40xf32> to vector<32x40xf32>
    %cst_46 = arith.constant dense<0.000000e+00> : vector<64x40xf32>
    %127 = tpu.matmul %121, %126, %cst_46 {dimension_numbers = #tpu.dot_dimension_numbers<[1], [0], [0], [1], [0, 0, 1, 1], [], []>} : vector<64x32xf32>, vector<32x40xf32>, vector<64x40xf32> -> vector<64x40xf32>
    %128 = vector.extract_strided_slice %127 {offsets = [0, 0], sizes = [64, 32], strides = [1, 1]} : vector<64x40xf32> to vector<64x32xf32>
    %129 = vector.extract_strided_slice %127 {offsets = [0, 32], sizes = [64, 4], strides = [1, 1]} : vector<64x40xf32> to vector<64x4xf32>
    %130 = vector.extract_strided_slice %127 {offsets = [0, 36], sizes = [64, 4], strides = [1, 1]} : vector<64x40xf32> to vector<64x4xf32>
    %131 = tpu.transpose %129, [1, 0] : vector<64x4xf32> -> vector<4x64xf32>
    %132 = vector.extract_strided_slice %130 {offsets = [0, 0], sizes = [64, 1], strides = [1, 1]} : vector<64x4xf32> to vector<64x1xf32>
    %133 = vector.extract_strided_slice %131 {offsets = [0, 0], sizes = [1, 64], strides = [1, 1]} : vector<4x64xf32> to vector<1x64xf32>
    %134 = vector.broadcast %132 : vector<64x1xf32> to vector<64x64xf32>
    %135 = vector.broadcast %133 : vector<1x64xf32> to vector<64x64xf32>
    %136 = arith.addf %134, %135 : vector<64x64xf32>
    %cst_47 = arith.constant 0.000000e+00 : f32
    %137 = vector.broadcast %cst_47 : f32 to vector<64x64xf32>
    %138 = arith.cmpf ogt, %136, %137 : vector<64x64xf32>
    %cst_48 = arith.constant 1.000000e-01 : f32
    %139 = vector.broadcast %cst_48 : f32 to vector<64x64xf32>
    %140 = arith.mulf %139, %136 : vector<64x64xf32>
    %141 = arith.select %138, %136, %140 : vector<64x64xi1>, vector<64x64xf32>
    %142 = arith.mulf %1, %141 : vector<64x64xf32>
    %143 = arith.addf %142, %0 : vector<64x64xf32>
    %cst_49 = arith.constant dense<0xFF800000> : vector<64xf32>
    %144 = vector.multi_reduction <maximumf>, %143, %cst_49 [1] : vector<64x64xf32> to vector<64xf32>
    %145 = vector.shape_cast %144 : vector<64xf32> to vector<64x1xf32>
    %146 = vector.broadcast %145 : vector<64x1xf32> to vector<64x64xf32>
    %147 = arith.subf %143, %146 : vector<64x64xf32>
    %148 = math.exp %147 : vector<64x64xf32>
    %cst_50 = arith.constant dense<0.000000e+00> : vector<64xf32>
    %149 = vector.multi_reduction <add>, %148, %cst_50 [1] : vector<64x64xf32> to vector<64xf32>
    %150 = vector.shape_cast %149 : vector<64xf32> to vector<64x1xf32>
    %cst_51 = arith.constant 9.99999968E-21 : f32
    %151 = vector.broadcast %cst_51 : f32 to vector<64x1xf32>
    %152 = arith.maximumf %150, %151 : vector<64x1xf32>
    %153 = tpu.reciprocal %152 {approx = true} : vector<64x1xf32> -> vector<64x1xf32>
    %154 = vector.broadcast %153 : vector<64x1xf32> to vector<64x64xf32>
    %155 = arith.mulf %148, %154 : vector<64x64xf32>
    %156 = vector.extract_strided_slice %128 {offsets = [0, 0], sizes = [64, 8], strides = [1, 1]} : vector<64x32xf32> to vector<64x8xf32>
    %cst_52 = arith.constant dense<0.000000e+00> : vector<64x8xf32>
    %157 = tpu.matmul %155, %156, %cst_52 {dimension_numbers = #tpu.dot_dimension_numbers<[1], [0], [0], [1], [0, 0, 1, 1], [], []>} : vector<64x64xf32>, vector<64x8xf32>, vector<64x8xf32> -> vector<64x8xf32>
    %c0_53 = arith.constant 0 : index
    %c0_54 = arith.constant 0 : index
    %158 = vector.load %arg7[%c0_53, %c0_54] : memref<64x32xf32, #tpu.memory_space<vmem>>, vector<64x8xf32>
    tpu.vector_store %arg7[%c0_53, %c0_54], %157 {strides = array<i32>} : memref<64x32xf32, #tpu.memory_space<vmem>>, vector<64x8xf32>,
    %159 = vector.extract_strided_slice %130 {offsets = [0, 1], sizes = [64, 1], strides = [1, 1]} : vector<64x4xf32> to vector<64x1xf32>
    %160 = vector.extract_strided_slice %131 {offsets = [1, 0], sizes = [1, 64], strides = [1, 1]} : vector<4x64xf32> to vector<1x64xf32>
    %161 = vector.broadcast %159 : vector<64x1xf32> to vector<64x64xf32>
    %162 = vector.broadcast %160 : vector<1x64xf32> to vector<64x64xf32>
    %163 = arith.addf %161, %162 : vector<64x64xf32>
    %cst_55 = arith.constant 0.000000e+00 : f32
    %164 = vector.broadcast %cst_55 : f32 to vector<64x64xf32>
    %165 = arith.cmpf ogt, %163, %164 : vector<64x64xf32>
    %cst_56 = arith.constant 1.000000e-01 : f32
    %166 = vector.broadcast %cst_56 : f32 to vector<64x64xf32>
    %167 = arith.mulf %166, %163 : vector<64x64xf32>
    %168 = arith.select %165, %163, %167 : vector<64x64xi1>, vector<64x64xf32>
    %169 = arith.mulf %1, %168 : vector<64x64xf32>
    %170 = arith.addf %169, %0 : vector<64x64xf32>
    %cst_57 = arith.constant dense<0xFF800000> : vector<64xf32>
    %171 = vector.multi_reduction <maximumf>, %170, %cst_57 [1] : vector<64x64xf32> to vector<64xf32>
    %172 = vector.shape_cast %171 : vector<64xf32> to vector<64x1xf32>
    %173 = vector.broadcast %172 : vector<64x1xf32> to vector<64x64xf32>
    %174 = arith.subf %170, %173 : vector<64x64xf32>
    %175 = math.exp %174 : vector<64x64xf32>
    %cst_58 = arith.constant dense<0.000000e+00> : vector<64xf32>
    %176 = vector.multi_reduction <add>, %175, %cst_58 [1] : vector<64x64xf32> to vector<64xf32>
    %177 = vector.shape_cast %176 : vector<64xf32> to vector<64x1xf32>
    %cst_59 = arith.constant 9.99999968E-21 : f32
    %178 = vector.broadcast %cst_59 : f32 to vector<64x1xf32>
    %179 = arith.maximumf %177, %178 : vector<64x1xf32>
    %180 = tpu.reciprocal %179 {approx = true} : vector<64x1xf32> -> vector<64x1xf32>
    %181 = vector.broadcast %180 : vector<64x1xf32> to vector<64x64xf32>
    %182 = arith.mulf %175, %181 : vector<64x64xf32>
    %183 = vector.extract_strided_slice %128 {offsets = [0, 8], sizes = [64, 8], strides = [1, 1]} : vector<64x32xf32> to vector<64x8xf32>
    %cst_60 = arith.constant dense<0.000000e+00> : vector<64x8xf32>
    %184 = tpu.matmul %182, %183, %cst_60 {dimension_numbers = #tpu.dot_dimension_numbers<[1], [0], [0], [1], [0, 0, 1, 1], [], []>} : vector<64x64xf32>, vector<64x8xf32>, vector<64x8xf32> -> vector<64x8xf32>
    %c0_61 = arith.constant 0 : index
    %c8_62 = arith.constant 8 : index
    %185 = vector.load %arg7[%c0_61, %c8_62] : memref<64x32xf32, #tpu.memory_space<vmem>>, vector<64x8xf32>
    tpu.vector_store %arg7[%c0_61, %c8_62], %184 {strides = array<i32>} : memref<64x32xf32, #tpu.memory_space<vmem>>, vector<64x8xf32>,
    %186 = vector.extract_strided_slice %130 {offsets = [0, 2], sizes = [64, 1], strides = [1, 1]} : vector<64x4xf32> to vector<64x1xf32>
    %187 = vector.extract_strided_slice %131 {offsets = [2, 0], sizes = [1, 64], strides = [1, 1]} : vector<4x64xf32> to vector<1x64xf32>
    %188 = vector.broadcast %186 : vector<64x1xf32> to vector<64x64xf32>
    %189 = vector.broadcast %187 : vector<1x64xf32> to vector<64x64xf32>
    %190 = arith.addf %188, %189 : vector<64x64xf32>
    %cst_63 = arith.constant 0.000000e+00 : f32
    %191 = vector.broadcast %cst_63 : f32 to vector<64x64xf32>
    %192 = arith.cmpf ogt, %190, %191 : vector<64x64xf32>
    %cst_64 = arith.constant 1.000000e-01 : f32
    %193 = vector.broadcast %cst_64 : f32 to vector<64x64xf32>
    %194 = arith.mulf %193, %190 : vector<64x64xf32>
    %195 = arith.select %192, %190, %194 : vector<64x64xi1>, vector<64x64xf32>
    %196 = arith.mulf %1, %195 : vector<64x64xf32>
    %197 = arith.addf %196, %0 : vector<64x64xf32>
    %cst_65 = arith.constant dense<0xFF800000> : vector<64xf32>
    %198 = vector.multi_reduction <maximumf>, %197, %cst_65 [1] : vector<64x64xf32> to vector<64xf32>
    %199 = vector.shape_cast %198 : vector<64xf32> to vector<64x1xf32>
    %200 = vector.broadcast %199 : vector<64x1xf32> to vector<64x64xf32>
    %201 = arith.subf %197, %200 : vector<64x64xf32>
    %202 = math.exp %201 : vector<64x64xf32>
    %cst_66 = arith.constant dense<0.000000e+00> : vector<64xf32>
    %203 = vector.multi_reduction <add>, %202, %cst_66 [1] : vector<64x64xf32> to vector<64xf32>
    %204 = vector.shape_cast %203 : vector<64xf32> to vector<64x1xf32>
    %cst_67 = arith.constant 9.99999968E-21 : f32
    %205 = vector.broadcast %cst_67 : f32 to vector<64x1xf32>
    %206 = arith.maximumf %204, %205 : vector<64x1xf32>
    %207 = tpu.reciprocal %206 {approx = true} : vector<64x1xf32> -> vector<64x1xf32>
    %208 = vector.broadcast %207 : vector<64x1xf32> to vector<64x64xf32>
    %209 = arith.mulf %202, %208 : vector<64x64xf32>
    %210 = vector.extract_strided_slice %128 {offsets = [0, 16], sizes = [64, 8], strides = [1, 1]} : vector<64x32xf32> to vector<64x8xf32>
    %cst_68 = arith.constant dense<0.000000e+00> : vector<64x8xf32>
    %211 = tpu.matmul %209, %210, %cst_68 {dimension_numbers = #tpu.dot_dimension_numbers<[1], [0], [0], [1], [0, 0, 1, 1], [], []>} : vector<64x64xf32>, vector<64x8xf32>, vector<64x8xf32> -> vector<64x8xf32>
    %c0_69 = arith.constant 0 : index
    %c16_70 = arith.constant 16 : index
    %212 = vector.load %arg7[%c0_69, %c16_70] : memref<64x32xf32, #tpu.memory_space<vmem>>, vector<64x8xf32>
    tpu.vector_store %arg7[%c0_69, %c16_70], %211 {strides = array<i32>} : memref<64x32xf32, #tpu.memory_space<vmem>>, vector<64x8xf32>,
    %213 = vector.extract_strided_slice %130 {offsets = [0, 3], sizes = [64, 1], strides = [1, 1]} : vector<64x4xf32> to vector<64x1xf32>
    %214 = vector.extract_strided_slice %131 {offsets = [3, 0], sizes = [1, 64], strides = [1, 1]} : vector<4x64xf32> to vector<1x64xf32>
    %215 = vector.broadcast %213 : vector<64x1xf32> to vector<64x64xf32>
    %216 = vector.broadcast %214 : vector<1x64xf32> to vector<64x64xf32>
    %217 = arith.addf %215, %216 : vector<64x64xf32>
    %cst_71 = arith.constant 0.000000e+00 : f32
    %218 = vector.broadcast %cst_71 : f32 to vector<64x64xf32>
    %219 = arith.cmpf ogt, %217, %218 : vector<64x64xf32>
    %cst_72 = arith.constant 1.000000e-01 : f32
    %220 = vector.broadcast %cst_72 : f32 to vector<64x64xf32>
    %221 = arith.mulf %220, %217 : vector<64x64xf32>
    %222 = arith.select %219, %217, %221 : vector<64x64xi1>, vector<64x64xf32>
    %223 = arith.mulf %1, %222 : vector<64x64xf32>
    %224 = arith.addf %223, %0 : vector<64x64xf32>
    %cst_73 = arith.constant dense<0xFF800000> : vector<64xf32>
    %225 = vector.multi_reduction <maximumf>, %224, %cst_73 [1] : vector<64x64xf32> to vector<64xf32>
    %226 = vector.shape_cast %225 : vector<64xf32> to vector<64x1xf32>
    %227 = vector.broadcast %226 : vector<64x1xf32> to vector<64x64xf32>
    %228 = arith.subf %224, %227 : vector<64x64xf32>
    %229 = math.exp %228 : vector<64x64xf32>
    %cst_74 = arith.constant dense<0.000000e+00> : vector<64xf32>
    %230 = vector.multi_reduction <add>, %229, %cst_74 [1] : vector<64x64xf32> to vector<64xf32>
    %231 = vector.shape_cast %230 : vector<64xf32> to vector<64x1xf32>
    %cst_75 = arith.constant 9.99999968E-21 : f32
    %232 = vector.broadcast %cst_75 : f32 to vector<64x1xf32>
    %233 = arith.maximumf %231, %232 : vector<64x1xf32>
    %234 = tpu.reciprocal %233 {approx = true} : vector<64x1xf32> -> vector<64x1xf32>
    %235 = vector.broadcast %234 : vector<64x1xf32> to vector<64x64xf32>
    %236 = arith.mulf %229, %235 : vector<64x64xf32>
    %237 = vector.extract_strided_slice %128 {offsets = [0, 24], sizes = [64, 8], strides = [1, 1]} : vector<64x32xf32> to vector<64x8xf32>
    %cst_76 = arith.constant dense<0.000000e+00> : vector<64x8xf32>
    %238 = tpu.matmul %236, %237, %cst_76 {dimension_numbers = #tpu.dot_dimension_numbers<[1], [0], [0], [1], [0, 0, 1, 1], [], []>} : vector<64x64xf32>, vector<64x8xf32>, vector<64x8xf32> -> vector<64x8xf32>
    %c0_77 = arith.constant 0 : index
    %c24_78 = arith.constant 24 : index
    %239 = vector.load %arg7[%c0_77, %c24_78] : memref<64x32xf32, #tpu.memory_space<vmem>>, vector<64x8xf32>
    tpu.vector_store %arg7[%c0_77, %c24_78], %238 {strides = array<i32>} : memref<64x32xf32, #tpu.memory_space<vmem>>, vector<64x8xf32>,
    %c0_79 = arith.constant 0 : index
    %c0_80 = arith.constant 0 : index
    %240 = vector.load %arg7[%c0_79, %c0_80] : memref<64x32xf32, #tpu.memory_space<vmem>>, vector<64x32xf32>
    %cst_81 = arith.constant 0.000000e+00 : f32
    %241 = vector.broadcast %cst_81 : f32 to vector<64x32xf32>
    %242 = arith.maximumf %240, %241 : vector<64x32xf32>
    %c32 = arith.constant 32 : index
    %c0_82 = arith.constant 0 : index
    %243 = vector.load %arg4[%c32, %c0_82] : memref<64x32xf32, #tpu.memory_space<vmem>>, vector<32x32xf32>
    %cst_83 = arith.constant dense<0.000000e+00> : vector<64x32xf32>
    %244 = tpu.matmul %242, %243, %cst_83 {dimension_numbers = #tpu.dot_dimension_numbers<[1], [0], [0], [1], [0, 0, 1, 1], [], []>} : vector<64x32xf32>, vector<32x32xf32>, vector<64x32xf32> -> vector<64x32xf32>
    %245 = arith.addf %124, %244 : vector<64x32xf32>
    %c0_84 = arith.constant 0 : index
    %c0_85 = arith.constant 0 : index
    %246 = vector.load %arg5[%c0_84, %c0_85] : memref<1x32xf32, #tpu.memory_space<vmem>>, vector<1x32xf32>
    %247 = vector.broadcast %246 : vector<1x32xf32> to vector<64x32xf32>
    %248 = arith.addf %245, %247 : vector<64x32xf32>
    %c0_86 = arith.constant 0 : index
    %c0_87 = arith.constant 0 : index
    %249 = vector.load %arg6[%c0_86, %c0_87] : memref<64x32xf32, #tpu.memory_space<vmem>>, vector<64x32xf32>
    tpu.vector_store %arg6[%c0_86, %c0_87], %248 {strides = array<i32>} : memref<64x32xf32, #tpu.memory_space<vmem>>, vector<64x32xf32>,
    return
  }
}

</mosaic_0001>

<llo_original>
// kernel: tpu_custom_call.1
$region0: #{tpu_custom_call.1}
  #allocation0 [shape = 'u32[]', space=smem, size = 0x4, offset = 0x4, fixed_abs, tag = 'smem constant byte address 0x4 - core index']
  #allocation1 [shape = 'u32[144,128]{1,0:T(1,128)}', space=vmem, size = 0x12000, scoped, tag = 'internal scratch']
  #allocation2 [shape = 'f32[64,32]{1,0:T(8,128)}', space=vmem, size = 0x8000, scoped, tag = 'scratch operand']
  %s0 = inlined_call_operand.vmem [shape: f32[64,32], index: 0, kind: input, shape index: {}]
  %s1 = inlined_call_operand.vmem [shape: f32[2,32,40], index: 1, kind: input, shape index: {}]
  %s2 = inlined_call_operand.vmem [shape: f32[64,64], index: 2, kind: input, shape index: {}]
  %s3 = inlined_call_operand.vmem [shape: f32[64,64], index: 3, kind: input, shape index: {}]
  %s4 = inlined_call_operand.vmem [shape: f32[64,32], index: 4, kind: input, shape index: {}]
  %s5 = inlined_call_operand.vmem [shape: f32[1,32], index: 5, kind: input, shape index: {}]
  %s6 = inlined_call_operand.vmem [shape: f32[64,32], index: 6, kind: output, shape index: {}]
  %s7 = sld [smem:[#allocation0]]
  $region34: #{tpu_custom_call.1} parent=0
    _
  %s9 = ssub.s32 1, %s7
  %s10 = scalar_select 0, %s9, %s7
  // Predicated region
  $region2: #{tpu_custom_call.1} parent=0 // pred_check
    _
  $region3: #{tpu_custom_call.1} parent=0 // pred_check_branch
    %12 = sbr.rel (0) target = $region5
  $region4: #{tpu_custom_call.1} parent=0 // pred_region
    _
  $region5: #{tpu_custom_call.1} parent=0 // pred_fallthru
    _
  // Predicated region
  $region6: #{tpu_custom_call.1} parent=0 // pred_check
    _
  $region7: #{tpu_custom_call.1} parent=0 // pred_check_branch
    %14 = sbr.rel (0) target = $region9
  $region8: #{tpu_custom_call.1} parent=0 // pred_region
    _
  $region9: #{tpu_custom_call.1} parent=0 // pred_fallthru
    _
  // Predicated region
  $region10: #{tpu_custom_call.1} parent=0 // pred_check
    _
  $region11: #{tpu_custom_call.1} parent=0 // pred_check_branch
    %16 = sbr.rel (0) target = $region13
  $region12: #{tpu_custom_call.1} parent=0 // pred_region
    _
  $region13: #{tpu_custom_call.1} parent=0 // pred_fallthru
    _
  // Predicated region
  $region14: #{tpu_custom_call.1} parent=0 // pred_check
    _
  $region15: #{tpu_custom_call.1} parent=0 // pred_check_branch
    %18 = sbr.rel (0) target = $region17
  $region16: #{tpu_custom_call.1} parent=0 // pred_region
    _
  $region17: #{tpu_custom_call.1} parent=0 // pred_fallthru
    _
  // Predicated region
  $region18: #{tpu_custom_call.1} parent=0 // pred_check
    _
  $region19: #{tpu_custom_call.1} parent=0 // pred_check_branch
    %20 = sbr.rel (0) target = $region21
  $region20: #{tpu_custom_call.1} parent=0 // pred_region
    _
  $region21: #{tpu_custom_call.1} parent=0 // pred_fallthru
    _
  // Predicated region
  $region22: #{tpu_custom_call.1} parent=0 // pred_check
    _
  $region23: #{tpu_custom_call.1} parent=0 // pred_check_branch
    %22 = sbr.rel (0) target = $region25
  $region24: #{tpu_custom_call.1} parent=0 // pred_region
    _
  $region25: #{tpu_custom_call.1} parent=0 // pred_fallthru
    _
  %v23 = vld [vmem:[%s2] sm:$0xff]
  %v24 = vld [vmem:[%s2 + $0x8] sm:$0xff]
  %v25 = vld [vmem:[%s2 + $0x10] sm:$0xff]
  %v26 = vld [vmem:[%s2 + $0x18] sm:$0xff]
  %v27 = vld [vmem:[%s2 + $0x20] sm:$0xff]
  %v28 = vld [vmem:[%s2 + $0x28] sm:$0xff]
  %v29 = vld [vmem:[%s2 + $0x30] sm:$0xff]
  %v30 = vld [vmem:[%s2 + $0x38] sm:$0xff]
  %v31 = vld [vmem:[%s3] sm:$0xff]
  %v32 = vld [vmem:[%s3 + $0x8] sm:$0xff]
  %v33 = vld [vmem:[%s3 + $0x10] sm:$0xff]
  %v34 = vld [vmem:[%s3 + $0x18] sm:$0xff]
  %v35 = vld [vmem:[%s3 + $0x20] sm:$0xff]
  %v36 = vld [vmem:[%s3 + $0x28] sm:$0xff]
  %v37 = vld [vmem:[%s3 + $0x30] sm:$0xff]
  %v38 = vld [vmem:[%s3 + $0x38] sm:$0xff]
  %v39 = vld [vmem:[%s0] sm:$0xff]
  %v40 = vld [vmem:[%s0 + $0x8] sm:$0xff]
  %v41 = vld [vmem:[%s0 + $0x10] sm:$0xff]
  %v42 = vld [vmem:[%s0 + $0x18] sm:$0xff]
  %v43 = vld [vmem:[%s0 + $0x20] sm:$0xff]
  %v44 = vld [vmem:[%s0 + $0x28] sm:$0xff]
  %v45 = vld [vmem:[%s0 + $0x30] sm:$0xff]
  %v46 = vld [vmem:[%s0 + $0x38] sm:$0xff]
  %v47 = vld [vmem:[%s1] sm:$0xff]
  %v48 = vld [vmem:[%s1 + $0x8] sm:$0xff]
  %v49 = vld [vmem:[%s1 + $0x10] sm:$0xff]
  %v50 = vld [vmem:[%s1 + $0x18] sm:$0xff]
  %vm51 = vcmask 261120
  %v53 = vsel %vm51, %v39, 0
  %v56 = vsel %vm51, %v40, 0
  %v59 = vsel %vm51, %v41, 0
  %v62 = vsel %vm51, %v42, 0
  %v65 = vsel %vm51, %v43, 0
  %v68 = vsel %vm51, %v44, 0
  %v71 = vsel %vm51, %v45, 0
  %v74 = vsel %vm51, %v46, 0
  %76 = vmatprep.subr.mxu0 0.0
  %77 = vmatpush1.msra.mxu0 0.0
  %78 = vmatprep.subr.mxu0 0.0
  %79 = vmatpush1.msra.mxu0 0.0
  %80 = vmatprep.subr.mxu0 0.0
  %81 = vmatpush1.msra.mxu0 0.0
  %82 = vmatprep.subr.mxu0 0.0
  %83 = vmatpush1.msra.mxu0 0.0
  %84 = vmatprep.subr.mxu0 0.0
  %85 = vmatpush1.msra.mxu0 0.0
  %86 = vmatprep.subr.mxu0 0.0
  %87 = vmatpush1.msra.mxu0 0.0
  %88 = vmatprep.subr.mxu0 0.0
  %89 = vmatpush1.msra.mxu0 0.0
  %90 = vmatprep.subr.mxu0 0.0
  %91 = vmatpush1.msra.mxu0 0.0
  %92 = vmatprep.subr.mxu0 0.0
  %93 = vmatpush1.msra.mxu0 0.0
  %94 = vmatprep.subr.mxu0 0.0
  %95 = vmatpush1.msra.mxu0 0.0
  %96 = vmatprep.subr.mxu0 0.0
  %97 = vmatpush1.msra.mxu0 0.0
  %98 = vmatprep.subr.mxu0 0.0
  %99 = vmatpush1.msra.mxu0 0.0
  %100 = vmatprep.subr.mxu0 0.0
  %101 = vmatpush1.msra.mxu0 %v50
  %102 = vmatprep.subr.mxu0 0.0
  %103 = vmatpush1.msra.mxu0 %v49
  %104 = vmatprep.subr.mxu0 0.0
  %105 = vmatpush1.msra.mxu0 %v48
  %106 = vmatprep.subr.mxu0 0.0
  %107 = vmatpush1.msra.mxu0 %v47
  %108 = vmatprep.subr.mxu0 0.0
  %109 = vmatpush2.msra.mxu0 0.0
  %110 = vmatprep.subr.mxu0 0.0
  %111 = vmatpush2.msra.mxu0 0.0
  %112 = vmatprep.subr.mxu0 0.0
  %113 = vmatpush2.msra.mxu0 0.0
  %114 = vmatprep.subr.mxu0 0.0
  %115 = vmatpush2.msra.mxu0 0.0
  %116 = vmatprep.subr.mxu0 0.0
  %117 = vmatpush2.msra.mxu0 0.0
  %118 = vmatprep.subr.mxu0 0.0
  %119 = vmatpush2.msra.mxu0 0.0
  %120 = vmatprep.subr.mxu0 0.0
  %121 = vmatpush2.msra.mxu0 0.0
  %122 = vmatprep.subr.mxu0 0.0
  %123 = vmatpush2.msra.mxu0 0.0
  %124 = vmatprep.subr.mxu0 0.0
  %125 = vmatpush2.msra.mxu0 0.0
  %126 = vmatprep.subr.mxu0 0.0
  %127 = vmatpush2.msra.mxu0 0.0
  %128 = vmatprep.subr.mxu0 0.0
  %129 = vmatpush2.msra.mxu0 0.0
  %130 = vmatprep.subr.mxu0 0.0
  %131 = vmatpush2.msra.mxu0 0.0
  %132 = vmatprep.subr.mxu0 0.0
  %133 = vmatpush2.msra.mxu0 0.0
  %134 = vmatprep.subr.mxu0 0.0
  %135 = vmatpush2.msra.mxu0 0.0
  %136 = vmatprep.subr.mxu0 0.0
  %137 = vmatpush2.msra.mxu0 0.0
  %138 = vmatprep.subr.mxu0 0.0
  %139 = vmatpush2.msra.mxu0 0.0
  %140 = vmatprep.mubr.f32.mxu0 0.0
  %141 = vmatmul.mubr.f32.gmra.mxu0 %v53
  %v142 = vpop.f32.mrf.mxu0
  %v143 = vadd.f32 0.0, %v142
  %v144 = vpop.f32.mrf.mxu0
  %145 = vmatprep.mubr.f32.mxu0 0.0
  %146 = vmatmul.mubr.f32.gmra.mxu0 %v56
  %v147 = vpop.f32.mrf.mxu0
  %v148 = vadd.f32 0.0, %v147
  %v149 = vpop.f32.mrf.mxu0
  %150 = vmatprep.mubr.f32.mxu0 0.0
  %151 = vmatmul.mubr.f32.gmra.mxu0 %v59
  %v152 = vpop.f32.mrf.mxu0
  %v153 = vadd.f32 0.0, %v152
  %v154 = vpop.f32.mrf.mxu0
  %155 = vmatprep.mubr.f32.mxu0 0.0
  %156 = vmatmul.mubr.f32.gmra.mxu0 %v62
  %v157 = vpop.f32.mrf.mxu0
  %v158 = vadd.f32 0.0, %v157
  %v159 = vpop.f32.mrf.mxu0
  %160 = vmatprep.mubr.f32.mxu0 0.0
  %161 = vmatmul.mubr.f32.gmra.mxu0 %v65
  %v162 = vpop.f32.mrf.mxu0
  %v163 = vadd.f32 0.0, %v162
  %v164 = vpop.f32.mrf.mxu0
  %165 = vmatprep.mubr.f32.mxu0 0.0
  %166 = vmatmul.mubr.f32.gmra.mxu0 %v68
  %v167 = vpop.f32.mrf.mxu0
  %v168 = vadd.f32 0.0, %v167
  %v169 = vpop.f32.mrf.mxu0
  %170 = vmatprep.mubr.f32.mxu0 0.0
  %171 = vmatmul.mubr.f32.gmra.mxu0 %v71
  %v172 = vpop.f32.mrf.mxu0
  %v173 = vadd.f32 0.0, %v172
  %v174 = vpop.f32.mrf.mxu0
  %175 = vmatprep.mubr.f32.mxu0 0.0
  %176 = vmatmul.mubr.f32.gmra.mxu0 %v74
  %v177 = vpop.f32.mrf.mxu0
  %v178 = vadd.f32 0.0, %v177
  %v179 = vpop.f32.mrf.mxu0
  %180 = vdwg.mxu0
  %189 = vrot.lane.b32.xlu0 %v143, 96
  %v190 = vpop.permute.xlu0 %189
  %191 = vrot.lane.b32.xlu0 %v148, 96
  %v192 = vpop.permute.xlu0 %191
  %193 = vrot.lane.b32.xlu0 %v153, 96
  %v194 = vpop.permute.xlu0 %193
  %195 = vrot.lane.b32.xlu0 %v158, 96
  %v196 = vpop.permute.xlu0 %195
  %197 = vrot.lane.b32.xlu0 %v163, 96
  %v198 = vpop.permute.xlu0 %197
  %199 = vrot.lane.b32.xlu0 %v168, 96
  %v200 = vpop.permute.xlu0 %199
  %201 = vrot.lane.b32.xlu0 %v173, 96
  %v202 = vpop.permute.xlu0 %201
  %203 = vrot.lane.b32.xlu0 %v178, 96
  %v204 = vpop.permute.xlu0 %203
  %213 = vxpose.xlu0.b32.start [1/16] %v190, 128
  %214 = vxpose.xlu0.b32.cont [2/16] %v192, 128
  %215 = vxpose.xlu0.b32.cont [3/16] %v194, 128
  %216 = vxpose.xlu0.b32.cont [4/16] %v196, 128
  %217 = vxpose.xlu0.b32.cont [5/16] %v198, 128
  %218 = vxpose.xlu0.b32.cont [6/16] %v200, 128
  %219 = vxpose.xlu0.b32.cont [7/16] %v202, 128
  %220 = vxpose.xlu0.b32.cont [8/16] %v204, 128
  %221 = vxpose.xlu0.b32.cont [9/16] 0.0, 128
  %222 = vxpose.xlu0.b32.cont [10/16] 0.0, 128
  %223 = vxpose.xlu0.b32.cont [11/16] 0.0, 128
  %224 = vxpose.xlu0.b32.cont [12/16] 0.0, 128
  %225 = vxpose.xlu0.b32.cont [13/16] 0.0, 128
  %226 = vxpose.xlu0.b32.cont [14/16] 0.0, 128
  %227 = vxpose.xlu0.b32.cont [15/16] 0.0, 128
  %228 = vxpose.xlu0.b32.end [16/16] 0.0, 128
  %v229 = vpop.trf.xlu0
  %v230 = vpop.trf.xlu0
  %v231 = vpop.trf.xlu0
  %v232 = vpop.trf.xlu0
  %v233 = vpop.trf.xlu0
  %v234 = vpop.trf.xlu0
  %v235 = vpop.trf.xlu0
  %v236 = vpop.trf.xlu0
  %v237 = vpop.trf.xlu0
  %v238 = vpop.trf.xlu0
  %v239 = vpop.trf.xlu0
  %v240 = vpop.trf.xlu0
  %v241 = vpop.trf.xlu0
  %v242 = vpop.trf.xlu0
  %v243 = vpop.trf.xlu0
  %v244 = vpop.trf.xlu0
  %245 = vset.pattern.permute.xlu0 36
  %246 = vperm.xlu0 %245, %v143
  %v247 = vpop.permute.xlu0 %246
  %249 = vset.pattern.permute.xlu0 36
  %250 = vperm.xlu0 %249, %v148
  %v251 = vpop.permute.xlu0 %250
  %253 = vset.pattern.permute.xlu0 36
  %254 = vperm.xlu0 %253, %v153
  %v255 = vpop.permute.xlu0 %254
  %257 = vset.pattern.permute.xlu0 36
  %258 = vperm.xlu0 %257, %v158
  %v259 = vpop.permute.xlu0 %258
  %261 = vset.pattern.permute.xlu0 36
  %262 = vperm.xlu0 %261, %v163
  %v263 = vpop.permute.xlu0 %262
  %265 = vset.pattern.permute.xlu0 36
  %266 = vperm.xlu0 %265, %v168
  %v267 = vpop.permute.xlu0 %266
  %269 = vset.pattern.permute.xlu0 36
  %270 = vperm.xlu0 %269, %v173
  %v271 = vpop.permute.xlu0 %270
  %273 = vset.pattern.permute.xlu0 36
  %274 = vperm.xlu0 %273, %v178
  %v275 = vpop.permute.xlu0 %274
  %v277 = vlaneseq
  %v278 = vshrl.u32 %v277, 7
  %v279 = vsub.s32 0, %v278
  %v280 = vrot.slane %v229, %v279
  %v281 = vadd.f32 %v247, %v280
  %v282 = vadd.f32 %v251, %v280
  %v283 = vadd.f32 %v255, %v280
  %v284 = vadd.f32 %v259, %v280
  %v285 = vadd.f32 %v263, %v280
  %v286 = vadd.f32 %v267, %v280
  %v287 = vadd.f32 %v271, %v280
  %v288 = vadd.f32 %v275, %v280
  %vm289 = vcmp.gt.f32.partialorder %v281, 0.0
  %vm290 = vcmp.gt.f32.partialorder %v282, 0.0
  %vm291 = vcmp.gt.f32.partialorder %v283, 0.0
  %vm292 = vcmp.gt.f32.partialorder %v284, 0.0
  %vm293 = vcmp.gt.f32.partialorder %v285, 0.0
  %vm294 = vcmp.gt.f32.partialorder %v286, 0.0
  %vm295 = vcmp.gt.f32.partialorder %v287, 0.0
  %vm296 = vcmp.gt.f32.partialorder %v288, 0.0
  %v297 = vmul.f32 %v281, 0.1
  %v298 = vmul.f32 %v282, 0.1
  %v299 = vmul.f32 %v283, 0.1
  %v300 = vmul.f32 %v284, 0.1
  %v301 = vmul.f32 %v285, 0.1
  %v302 = vmul.f32 %v286, 0.1
  %v303 = vmul.f32 %v287, 0.1
  %v304 = vmul.f32 %v288, 0.1
  %v305 = vsel %vm289, %v281, %v297
  %v306 = vsel %vm290, %v282, %v298
  %v307 = vsel %vm291, %v283, %v299
  %v308 = vsel %vm292, %v284, %v300
  %v309 = vsel %vm293, %v285, %v301
  %v310 = vsel %vm294, %v286, %v302
  %v311 = vsel %vm295, %v287, %v303
  %v312 = vsel %vm296, %v288, %v304
  %v313 = vmul.f32 %v31, %v305
  %v314 = vmul.f32 %v32, %v306
  %v315 = vmul.f32 %v33, %v307
  %v316 = vmul.f32 %v34, %v308
  %v317 = vmul.f32 %v35, %v309
  %v318 = vmul.f32 %v36, %v310
  %v319 = vmul.f32 %v37, %v311
  %v320 = vmul.f32 %v38, %v312
  %v321 = vadd.f32 %v313, %v23
  %v322 = vadd.f32 %v314, %v24
  %v323 = vadd.f32 %v315, %v25
  %v324 = vadd.f32 %v316, %v26
  %v325 = vadd.f32 %v317, %v27
  %v326 = vadd.f32 %v318, %v28
  %v327 = vadd.f32 %v319, %v29
  %v328 = vadd.f32 %v320, %v30
  %vm329 = vcmask 523264
  %v330 = vsel %vm329, %v321, -inf
  %331 = vmax.xlane.f32.xlu0 %v330
  %v332 = vpop.xlane.xlu0 %331
  %v333 = vsel %vm329, %v322, -inf
  %334 = vmax.xlane.f32.xlu0 %v333
  %v335 = vpop.xlane.xlu0 %334
  %v336 = vsel %vm329, %v323, -inf
  %337 = vmax.xlane.f32.xlu0 %v336
  %v338 = vpop.xlane.xlu0 %337
  %v339 = vsel %vm329, %v324, -inf
  %340 = vmax.xlane.f32.xlu0 %v339
  %v341 = vpop.xlane.xlu0 %340
  %v342 = vsel %vm329, %v325, -inf
  %343 = vmax.xlane.f32.xlu0 %v342
  %v344 = vpop.xlane.xlu0 %343
  %v345 = vsel %vm329, %v326, -inf
  %346 = vmax.xlane.f32.xlu0 %v345
  %v347 = vpop.xlane.xlu0 %346
  %v348 = vsel %vm329, %v327, -inf
  %349 = vmax.xlane.f32.xlu0 %v348
  %v350 = vpop.xlane.xlu0 %349
  %v351 = vsel %vm329, %v328, -inf
  %352 = vmax.xlane.f32.xlu0 %v351
  %v353 = vpop.xlane.xlu0 %352
  %v354 = vsub.f32 %v321, %v332
  %v355 = vsub.f32 %v322, %v335
  %v356 = vsub.f32 %v323, %v338
  %v357 = vsub.f32 %v324, %v341
  %v358 = vsub.f32 %v325, %v344
  %v359 = vsub.f32 %v326, %v347
  %v360 = vsub.f32 %v327, %v350
  %v361 = vsub.f32 %v328, %v353
  %v362 = vmul.f32 %v354, 1.442695
  %v363 = vpow.pop %v362
  %v364 = vmul.f32 %v355, 1.442695
  %v365 = vpow.pop %v364
  %v366 = vmul.f32 %v356, 1.442695
  %v367 = vpow.pop %v366
  %v368 = vmul.f32 %v357, 1.442695
  %v369 = vpow.pop %v368
  %v370 = vmul.f32 %v358, 1.442695
  %v371 = vpow.pop %v370
  %v372 = vmul.f32 %v359, 1.442695
  %v373 = vpow.pop %v372
  %v374 = vmul.f32 %v360, 1.442695
  %v375 = vpow.pop %v374
  %v376 = vmul.f32 %v361, 1.442695
  %v377 = vpow.pop %v376
  %v378 = vsel %vm329, %v363, 0.0
  %379 = vadd.xlane.f32.xlu0 %v378
  %v380 = vpop.xlane.xlu0 %379
  %v381 = vsel %vm329, %v365, 0.0
  %382 = vadd.xlane.f32.xlu0 %v381
  %v383 = vpop.xlane.xlu0 %382
  %v384 = vsel %vm329, %v367, 0.0
  %385 = vadd.xlane.f32.xlu0 %v384
  %v386 = vpop.xlane.xlu0 %385
  %v387 = vsel %vm329, %v369, 0.0
  %388 = vadd.xlane.f32.xlu0 %v387
  %v389 = vpop.xlane.xlu0 %388
  %v390 = vsel %vm329, %v371, 0.0
  %391 = vadd.xlane.f32.xlu0 %v390
  %v392 = vpop.xlane.xlu0 %391
  %v393 = vsel %vm329, %v373, 0.0
  %394 = vadd.xlane.f32.xlu0 %v393
  %v395 = vpop.xlane.xlu0 %394
  %v396 = vsel %vm329, %v375, 0.0
  %397 = vadd.xlane.f32.xlu0 %v396
  %v398 = vpop.xlane.xlu0 %397
  %v399 = vsel %vm329, %v377, 0.0
  %400 = vadd.xlane.f32.xlu0 %v399
  %v401 = vpop.xlane.xlu0 %400
  %v402 = vmax.f32 %v380, 1e-20
  %v403 = vmax.f32 %v383, 1e-20
  %v404 = vmax.f32 %v386, 1e-20
  %v405 = vmax.f32 %v389, 1e-20
  %v406 = vmax.f32 %v392, 1e-20
  %v407 = vmax.f32 %v395, 1e-20
  %v408 = vmax.f32 %v398, 1e-20
  %v409 = vmax.f32 %v401, 1e-20
  %v410 = vrcp.pop %v402
  %v411 = vrcp.pop %v403
  %v412 = vrcp.pop %v404
  %v413 = vrcp.pop %v405
  %v414 = vrcp.pop %v406
  %v415 = vrcp.pop %v407
  %v416 = vrcp.pop %v408
  %v417 = vrcp.pop %v409
  %v418 = vmul.f32 %v363, %v410
  %v419 = vmul.f32 %v365, %v411
  %v420 = vmul.f32 %v367, %v412
  %v421 = vmul.f32 %v369, %v413
  %v422 = vmul.f32 %v371, %v414
  %v423 = vmul.f32 %v373, %v415
  %v424 = vmul.f32 %v375, %v416
  %v425 = vmul.f32 %v377, %v417
  %v427 = vsel %vm329, %v418, 0
  %v430 = vsel %vm329, %v419, 0
  %v433 = vsel %vm329, %v420, 0
  %v436 = vsel %vm329, %v421, 0
  %v439 = vsel %vm329, %v422, 0
  %v442 = vsel %vm329, %v423, 0
  %v445 = vsel %vm329, %v424, 0
  %v448 = vsel %vm329, %v425, 0
  %450 = vmatprep.subr.mxu0 0.0
  %451 = vmatpush1.msra.mxu0 0.0
  %452 = vmatprep.subr.mxu0 0.0
  %453 = vmatpush1.msra.mxu0 0.0
  %454 = vmatprep.subr.mxu0 0.0
  %455 = vmatpush1.msra.mxu0 0.0
  %456 = vmatprep.subr.mxu0 0.0
  %457 = vmatpush1.msra.mxu0 0.0
  %458 = vmatprep.subr.mxu0 0.0
  %459 = vmatpush1.msra.mxu0 0.0
  %460 = vmatprep.subr.mxu0 0.0
  %461 = vmatpush1.msra.mxu0 0.0
  %462 = vmatprep.subr.mxu0 0.0
  %463 = vmatpush1.msra.mxu0 0.0
  %464 = vmatprep.subr.mxu0 0.0
  %465 = vmatpush1.msra.mxu0 0.0
  %466 = vmatprep.subr.mxu0 0.0
  %467 = vmatpush1.msra.mxu0 %v178
  %468 = vmatprep.subr.mxu0 0.0
  %469 = vmatpush1.msra.mxu0 %v173
  %470 = vmatprep.subr.mxu0 0.0
  %471 = vmatpush1.msra.mxu0 %v168
  %472 = vmatprep.subr.mxu0 0.0
  %473 = vmatpush1.msra.mxu0 %v163
  %474 = vmatprep.subr.mxu0 0.0
  %475 = vmatpush1.msra.mxu0 %v158
  %476 = vmatprep.subr.mxu0 0.0
  %477 = vmatpush1.msra.mxu0 %v153
  %478 = vmatprep.subr.mxu0 0.0
  %479 = vmatpush1.msra.mxu0 %v148
  %480 = vmatprep.subr.mxu0 0.0
  %481 = vmatpush1.msra.mxu0 %v143
  %482 = vmatprep.subr.mxu0 0.0
  %483 = vmatpush2.msra.mxu0 0.0
  %484 = vmatprep.subr.mxu0 0.0
  %485 = vmatpush2.msra.mxu0 0.0
  %486 = vmatprep.subr.mxu0 0.0
  %487 = vmatpush2.msra.mxu0 0.0
  %488 = vmatprep.subr.mxu0 0.0
  %489 = vmatpush2.msra.mxu0 0.0
  %490 = vmatprep.subr.mxu0 0.0
  %491 = vmatpush2.msra.mxu0 0.0
  %492 = vmatprep.subr.mxu0 0.0
  %493 = vmatpush2.msra.mxu0 0.0
  %494 = vmatprep.subr.mxu0 0.0
  %495 = vmatpush2.msra.mxu0 0.0
  %496 = vmatprep.subr.mxu0 0.0
  %497 = vmatpush2.msra.mxu0 0.0
  %498 = vmatprep.subr.mxu0 0.0
  %499 = vmatpush2.msra.mxu0 0.0
  %500 = vmatprep.subr.mxu0 0.0
  %501 = vmatpush2.msra.mxu0 0.0
  %502 = vmatprep.subr.mxu0 0.0
  %503 = vmatpush2.msra.mxu0 0.0
  %504 = vmatprep.subr.mxu0 0.0
  %505 = vmatpush2.msra.mxu0 0.0
  %506 = vmatprep.subr.mxu0 0.0
  %507 = vmatpush2.msra.mxu0 0.0
  %508 = vmatprep.subr.mxu0 0.0
  %509 = vmatpush2.msra.mxu0 0.0
  %510 = vmatprep.subr.mxu0 0.0
  %511 = vmatpush2.msra.mxu0 0.0
  %512 = vmatprep.subr.mxu0 0.0
  %513 = vmatpush2.msra.mxu0 0.0
  %514 = vmatprep.mubr.f32.mxu0 0.0
  %515 = vmatmul.mubr.f32.gmra.mxu0 %v427
  %v516 = vpop.f32.mrf.mxu0
  %v517 = vadd.f32 0.0, %v516
  %v518 = vpop.f32.mrf.mxu0
  %519 = vmatprep.mubr.f32.mxu0 0.0
  %520 = vmatmul.mubr.f32.gmra.mxu0 %v430
  %v521 = vpop.f32.mrf.mxu0
  %v522 = vadd.f32 0.0, %v521
  %v523 = vpop.f32.mrf.mxu0
  %524 = vmatprep.mubr.f32.mxu0 0.0
  %525 = vmatmul.mubr.f32.gmra.mxu0 %v433
  %v526 = vpop.f32.mrf.mxu0
  %v527 = vadd.f32 0.0, %v526
  %v528 = vpop.f32.mrf.mxu0
  %529 = vmatprep.mubr.f32.mxu0 0.0
  %530 = vmatmul.mubr.f32.gmra.mxu0 %v436
  %v531 = vpop.f32.mrf.mxu0
  %v532 = vadd.f32 0.0, %v531
  %v533 = vpop.f32.mrf.mxu0
  %534 = vmatprep.mubr.f32.mxu0 0.0
  %535 = vmatmul.mubr.f32.gmra.mxu0 %v439
  %v536 = vpop.f32.mrf.mxu0
  %v537 = vadd.f32 0.0, %v536
  %v538 = vpop.f32.mrf.mxu0
  %539 = vmatprep.mubr.f32.mxu0 0.0
  %540 = vmatmul.mubr.f32.gmra.mxu0 %v442
  %v541 = vpop.f32.mrf.mxu0
  %v542 = vadd.f32 0.0, %v541
  %v543 = vpop.f32.mrf.mxu0
  %544 = vmatprep.mubr.f32.mxu0 0.0
  %545 = vmatmul.mubr.f32.gmra.mxu0 %v445
  %v546 = vpop.f32.mrf.mxu0
  %v547 = vadd.f32 0.0, %v546
  %v548 = vpop.f32.mrf.mxu0
  %549 = vmatprep.mubr.f32.mxu0 0.0
  %550 = vmatmul.mubr.f32.gmra.mxu0 %v448
  %v551 = vpop.f32.mrf.mxu0
  %v552 = vadd.f32 0.0, %v551
  %v553 = vpop.f32.mrf.mxu0
  %554 = vdwg.mxu0
  %vm555 = vcmask 64512
  %556 = vst.msk [vmem:[#allocation2] sm:$0xff] %vm555, %v517
  %557 = vst.msk [vmem:[#allocation2 + $0x8] sm:$0xff] %vm555, %v522
  %558 = vst.msk [vmem:[#allocation2 + $0x10] sm:$0xff] %vm555, %v527
  %559 = vst.msk [vmem:[#allocation2 + $0x18] sm:$0xff] %vm555, %v532
  %560 = vst.msk [vmem:[#allocation2 + $0x20] sm:$0xff] %vm555, %v537
  %561 = vst.msk [vmem:[#allocation2 + $0x28] sm:$0xff] %vm555, %v542
  %562 = vst.msk [vmem:[#allocation2 + $0x30] sm:$0xff] %vm555, %v547
  %563 = vst.msk [vmem:[#allocation2 + $0x38] sm:$0xff] %vm555, %v552
  %564 = vset.pattern.permute.xlu0 37
  %565 = vperm.xlu0 %564, %v143
  %v566 = vpop.permute.xlu0 %565
  %568 = vset.pattern.permute.xlu0 37
  %569 = vperm.xlu0 %568, %v148
  %v570 = vpop.permute.xlu0 %569
  %572 = vset.pattern.permute.xlu0 37
  %573 = vperm.xlu0 %572, %v153
  %v574 = vpop.permute.xlu0 %573
  %576 = vset.pattern.permute.xlu0 37
  %577 = vperm.xlu0 %576, %v158
  %v578 = vpop.permute.xlu0 %577
  %580 = vset.pattern.permute.xlu0 37
  %581 = vperm.xlu0 %580, %v163
  %v582 = vpop.permute.xlu0 %581
  %584 = vset.pattern.permute.xlu0 37
  %585 = vperm.xlu0 %584, %v168
  %v586 = vpop.permute.xlu0 %585
  %588 = vset.pattern.permute.xlu0 37
  %589 = vperm.xlu0 %588, %v173
  %v590 = vpop.permute.xlu0 %589
  %592 = vset.pattern.permute.xlu0 37
  %593 = vperm.xlu0 %592, %v178
  %v594 = vpop.permute.xlu0 %593
  %v596 = vlaneseq
  %v597 = vshrl.u32 %v596, 7
  %v598 = vsub.s32 1, %v597
  %v599 = vrot.slane %v229, %v598
  %v600 = vadd.f32 %v566, %v599
  %v601 = vadd.f32 %v570, %v599
  %v602 = vadd.f32 %v574, %v599
  %v603 = vadd.f32 %v578, %v599
  %v604 = vadd.f32 %v582, %v599
  %v605 = vadd.f32 %v586, %v599
  %v606 = vadd.f32 %v590, %v599
  %v607 = vadd.f32 %v594, %v599
  %vm608 = vcmp.gt.f32.partialorder %v600, 0.0
  %vm609 = vcmp.gt.f32.partialorder %v601, 0.0
  %vm610 = vcmp.gt.f32.partialorder %v602, 0.0
  %vm611 = vcmp.gt.f32.partialorder %v603, 0.0
  %vm612 = vcmp.gt.f32.partialorder %v604, 0.0
  %vm613 = vcmp.gt.f32.partialorder %v605, 0.0
  %vm614 = vcmp.gt.f32.partialorder %v606, 0.0
  %vm615 = vcmp.gt.f32.partialorder %v607, 0.0
  %v616 = vmul.f32 %v600, 0.1
  %v617 = vmul.f32 %v601, 0.1
  %v618 = vmul.f32 %v602, 0.1
  %v619 = vmul.f32 %v603, 0.1
  %v620 = vmul.f32 %v604, 0.1
  %v621 = vmul.f32 %v605, 0.1
  %v622 = vmul.f32 %v606, 0.1
  %v623 = vmul.f32 %v607, 0.1
  %v624 = vsel %vm608, %v600, %v616
  %v625 = vsel %vm609, %v601, %v617
  %v626 = vsel %vm610, %v602, %v618
  %v627 = vsel %vm611, %v603, %v619
  %v628 = vsel %vm612, %v604, %v620
  %v629 = vsel %vm613, %v605, %v621
  %v630 = vsel %vm614, %v606, %v622
  %v631 = vsel %vm615, %v607, %v623
  %v632 = vmul.f32 %v31, %v624
  %v633 = vmul.f32 %v32, %v625
  %v634 = vmul.f32 %v33, %v626
  %v635 = vmul.f32 %v34, %v627
  %v636 = vmul.f32 %v35, %v628
  %v637 = vmul.f32 %v36, %v629
  %v638 = vmul.f32 %v37, %v630
  %v639 = vmul.f32 %v38, %v631
  %v640 = vadd.f32 %v632, %v23
  %v641 = vadd.f32 %v633, %v24
  %v642 = vadd.f32 %v634, %v25
  %v643 = vadd.f32 %v635, %v26
  %v644 = vadd.f32 %v636, %v27
  %v645 = vadd.f32 %v637, %v28
  %v646 = vadd.f32 %v638, %v29
  %v647 = vadd.f32 %v639, %v30
  %v648 = vsel %vm329, %v640, -inf
  %649 = vmax.xlane.f32.xlu0 %v648
  %v650 = vpop.xlane.xlu0 %649
  %v651 = vsel %vm329, %v641, -inf
  %652 = vmax.xlane.f32.xlu0 %v651
  %v653 = vpop.xlane.xlu0 %652
  %v654 = vsel %vm329, %v642, -inf
  %655 = vmax.xlane.f32.xlu0 %v654
  %v656 = vpop.xlane.xlu0 %655
  %v657 = vsel %vm329, %v643, -inf
  %658 = vmax.xlane.f32.xlu0 %v657
  %v659 = vpop.xlane.xlu0 %658
  %v660 = vsel %vm329, %v644, -inf
  %661 = vmax.xlane.f32.xlu0 %v660
  %v662 = vpop.xlane.xlu0 %661
  %v663 = vsel %vm329, %v645, -inf
  %664 = vmax.xlane.f32.xlu0 %v663
  %v665 = vpop.xlane.xlu0 %664
  %v666 = vsel %vm329, %v646, -inf
  %667 = vmax.xlane.f32.xlu0 %v666
  %v668 = vpop.xlane.xlu0 %667
  %v669 = vsel %vm329, %v647, -inf
  %670 = vmax.xlane.f32.xlu0 %v669
  %v671 = vpop.xlane.xlu0 %670
  %v672 = vsub.f32 %v640, %v650
  %v673 = vsub.f32 %v641, %v653
  %v674 = vsub.f32 %v642, %v656
  %v675 = vsub.f32 %v643, %v659
  %v676 = vsub.f32 %v644, %v662
  %v677 = vsub.f32 %v645, %v665
  %v678 = vsub.f32 %v646, %v668
  %v679 = vsub.f32 %v647, %v671
  %v680 = vmul.f32 %v672, 1.442695
  %v681 = vpow.pop %v680
  %v682 = vmul.f32 %v673, 1.442695
  %v683 = vpow.pop %v682
  %v684 = vmul.f32 %v674, 1.442695
  %v685 = vpow.pop %v684
  %v686 = vmul.f32 %v675, 1.442695
  %v687 = vpow.pop %v686
  %v688 = vmul.f32 %v676, 1.442695
  %v689 = vpow.pop %v688
  %v690 = vmul.f32 %v677, 1.442695
  %v691 = vpow.pop %v690
  %v692 = vmul.f32 %v678, 1.442695
  %v693 = vpow.pop %v692
  %v694 = vmul.f32 %v679, 1.442695
  %v695 = vpow.pop %v694
  %v696 = vsel %vm329, %v681, 0.0
  %697 = vadd.xlane.f32.xlu0 %v696
  %v698 = vpop.xlane.xlu0 %697
  %v699 = vsel %vm329, %v683, 0.0
  %700 = vadd.xlane.f32.xlu0 %v699
  %v701 = vpop.xlane.xlu0 %700
  %v702 = vsel %vm329, %v685, 0.0
  %703 = vadd.xlane.f32.xlu0 %v702
  %v704 = vpop.xlane.xlu0 %703
  %v705 = vsel %vm329, %v687, 0.0
  %706 = vadd.xlane.f32.xlu0 %v705
  %v707 = vpop.xlane.xlu0 %706
  %v708 = vsel %vm329, %v689, 0.0
  %709 = vadd.xlane.f32.xlu0 %v708
  %v710 = vpop.xlane.xlu0 %709
  %v711 = vsel %vm329, %v691, 0.0
  %712 = vadd.xlane.f32.xlu0 %v711
  %v713 = vpop.xlane.xlu0 %712
  %v714 = vsel %vm329, %v693, 0.0
  %715 = vadd.xlane.f32.xlu0 %v714
  %v716 = vpop.xlane.xlu0 %715
  %v717 = vsel %vm329, %v695, 0.0
  %718 = vadd.xlane.f32.xlu0 %v717
  %v719 = vpop.xlane.xlu0 %718
  %v720 = vmax.f32 %v698, 1e-20
  %v721 = vmax.f32 %v701, 1e-20
  %v722 = vmax.f32 %v704, 1e-20
  %v723 = vmax.f32 %v707, 1e-20
  %v724 = vmax.f32 %v710, 1e-20
  %v725 = vmax.f32 %v713, 1e-20
  %v726 = vmax.f32 %v716, 1e-20
  %v727 = vmax.f32 %v719, 1e-20
  %v728 = vrcp.pop %v720
  %v729 = vrcp.pop %v721
  %v730 = vrcp.pop %v722
  %v731 = vrcp.pop %v723
  %v732 = vrcp.pop %v724
  %v733 = vrcp.pop %v725
  %v734 = vrcp.pop %v726
  %v735 = vrcp.pop %v727
  %v736 = vmul.f32 %v681, %v728
  %v737 = vmul.f32 %v683, %v729
  %v738 = vmul.f32 %v685, %v730
  %v739 = vmul.f32 %v687, %v731
  %v740 = vmul.f32 %v689, %v732
  %v741 = vmul.f32 %v691, %v733
  %v742 = vmul.f32 %v693, %v734
  %v743 = vmul.f32 %v695, %v735
  %744 = vrot.lane.b32.xlu0 %v143, 120
  %v745 = vpop.permute.xlu0 %744
  %746 = vrot.lane.b32.xlu0 %v148, 120
  %v747 = vpop.permute.xlu0 %746
  %748 = vrot.lane.b32.xlu0 %v153, 120
  %v749 = vpop.permute.xlu0 %748
  %750 = vrot.lane.b32.xlu0 %v158, 120
  %v751 = vpop.permute.xlu0 %750
  %752 = vrot.lane.b32.xlu0 %v163, 120
  %v753 = vpop.permute.xlu0 %752
  %754 = vrot.lane.b32.xlu0 %v168, 120
  %v755 = vpop.permute.xlu0 %754
  %756 = vrot.lane.b32.xlu0 %v173, 120
  %v757 = vpop.permute.xlu0 %756
  %758 = vrot.lane.b32.xlu0 %v178, 120
  %v759 = vpop.permute.xlu0 %758
  %v769 = vsel %vm329, %v736, 0
  %v772 = vsel %vm329, %v737, 0
  %v775 = vsel %vm329, %v738, 0
  %v778 = vsel %vm329, %v739, 0
  %v781 = vsel %vm329, %v740, 0
  %v784 = vsel %vm329, %v741, 0
  %v787 = vsel %vm329, %v742, 0
  %v790 = vsel %vm329, %v743, 0
  %792 = vmatprep.subr.mxu0 0.0
  %793 = vmatpush1.msra.mxu0 0.0
  %794 = vmatprep.subr.mxu0 0.0
  %795 = vmatpush1.msra.mxu0 0.0
  %796 = vmatprep.subr.mxu0 0.0
  %797 = vmatpush1.msra.mxu0 0.0
  %798 = vmatprep.subr.mxu0 0.0
  %799 = vmatpush1.msra.mxu0 0.0
  %800 = vmatprep.subr.mxu0 0.0
  %801 = vmatpush1.msra.mxu0 0.0
  %802 = vmatprep.subr.mxu0 0.0
  %803 = vmatpush1.msra.mxu0 0.0
  %804 = vmatprep.subr.mxu0 0.0
  %805 = vmatpush1.msra.mxu0 0.0
  %806 = vmatprep.subr.mxu0 0.0
  %807 = vmatpush1.msra.mxu0 0.0
  %808 = vmatprep.subr.mxu0 0.0
  %809 = vmatpush1.msra.mxu0 %v759
  %810 = vmatprep.subr.mxu0 0.0
  %811 = vmatpush1.msra.mxu0 %v757
  %812 = vmatprep.subr.mxu0 0.0
  %813 = vmatpush1.msra.mxu0 %v755
  %814 = vmatprep.subr.mxu0 0.0
  %815 = vmatpush1.msra.mxu0 %v753
  %816 = vmatprep.subr.mxu0 0.0
  %817 = vmatpush1.msra.mxu0 %v751
  %818 = vmatprep.subr.mxu0 0.0
  %819 = vmatpush1.msra.mxu0 %v749
  %820 = vmatprep.subr.mxu0 0.0
  %821 = vmatpush1.msra.mxu0 %v747
  %822 = vmatprep.subr.mxu0 0.0
  %823 = vmatpush1.msra.mxu0 %v745
  %824 = vmatprep.subr.mxu0 0.0
  %825 = vmatpush2.msra.mxu0 0.0
  %826 = vmatprep.subr.mxu0 0.0
  %827 = vmatpush2.msra.mxu0 0.0
  %828 = vmatprep.subr.mxu0 0.0
  %829 = vmatpush2.msra.mxu0 0.0
  %830 = vmatprep.subr.mxu0 0.0
  %831 = vmatpush2.msra.mxu0 0.0
  %832 = vmatprep.subr.mxu0 0.0
  %833 = vmatpush2.msra.mxu0 0.0
  %834 = vmatprep.subr.mxu0 0.0
  %835 = vmatpush2.msra.mxu0 0.0
  %836 = vmatprep.subr.mxu0 0.0
  %837 = vmatpush2.msra.mxu0 0.0
  %838 = vmatprep.subr.mxu0 0.0
  %839 = vmatpush2.msra.mxu0 0.0
  %840 = vmatprep.subr.mxu0 0.0
  %841 = vmatpush2.msra.mxu0 0.0
  %842 = vmatprep.subr.mxu0 0.0
  %843 = vmatpush2.msra.mxu0 0.0
  %844 = vmatprep.subr.mxu0 0.0
  %845 = vmatpush2.msra.mxu0 0.0
  %846 = vmatprep.subr.mxu0 0.0
  %847 = vmatpush2.msra.mxu0 0.0
  %848 = vmatprep.subr.mxu0 0.0
  %849 = vmatpush2.msra.mxu0 0.0
  %850 = vmatprep.subr.mxu0 0.0
  %851 = vmatpush2.msra.mxu0 0.0
  %852 = vmatprep.subr.mxu0 0.0
  %853 = vmatpush2.msra.mxu0 0.0
  %854 = vmatprep.subr.mxu0 0.0
  %855 = vmatpush2.msra.mxu0 0.0
  %856 = vmatprep.mubr.f32.mxu0 0.0
  %857 = vmatmul.mubr.f32.gmra.mxu0 %v769
  %v858 = vpop.f32.mrf.mxu0
  %v859 = vadd.f32 0.0, %v858
  %v860 = vpop.f32.mrf.mxu0
  %861 = vmatprep.mubr.f32.mxu0 0.0
  %862 = vmatmul.mubr.f32.gmra.mxu0 %v772
  %v863 = vpop.f32.mrf.mxu0
  %v864 = vadd.f32 0.0, %v863
  %v865 = vpop.f32.mrf.mxu0
  %866 = vmatprep.mubr.f32.mxu0 0.0
  %867 = vmatmul.mubr.f32.gmra.mxu0 %v775
  %v868 = vpop.f32.mrf.mxu0
  %v869 = vadd.f32 0.0, %v868
  %v870 = vpop.f32.mrf.mxu0
  %871 = vmatprep.mubr.f32.mxu0 0.0
  %872 = vmatmul.mubr.f32.gmra.mxu0 %v778
  %v873 = vpop.f32.mrf.mxu0
  %v874 = vadd.f32 0.0, %v873
  %v875 = vpop.f32.mrf.mxu0
  %876 = vmatprep.mubr.f32.mxu0 0.0
  %877 = vmatmul.mubr.f32.gmra.mxu0 %v781
  %v878 = vpop.f32.mrf.mxu0
  %v879 = vadd.f32 0.0, %v878
  %v880 = vpop.f32.mrf.mxu0
  %881 = vmatprep.mubr.f32.mxu0 0.0
  %882 = vmatmul.mubr.f32.gmra.mxu0 %v784
  %v883 = vpop.f32.mrf.mxu0
  %v884 = vadd.f32 0.0, %v883
  %v885 = vpop.f32.mrf.mxu0
  %886 = vmatprep.mubr.f32.mxu0 0.0
  %887 = vmatmul.mubr.f32.gmra.mxu0 %v787
  %v888 = vpop.f32.mrf.mxu0
  %v889 = vadd.f32 0.0, %v888
  %v890 = vpop.f32.mrf.mxu0
  %891 = vmatprep.mubr.f32.mxu0 0.0
  %892 = vmatmul.mubr.f32.gmra.mxu0 %v790
  %v893 = vpop.f32.mrf.mxu0
  %v894 = vadd.f32 0.0, %v893
  %v895 = vpop.f32.mrf.mxu0
  %896 = vdwg.mxu0
  %905 = vrot.lane.b32.xlu0 %v859, 8
  %v906 = vpop.permute.xlu0 %905
  %907 = vrot.lane.b32.xlu0 %v864, 8
  %v908 = vpop.permute.xlu0 %907
  %909 = vrot.lane.b32.xlu0 %v869, 8
  %v910 = vpop.permute.xlu0 %909
  %911 = vrot.lane.b32.xlu0 %v874, 8
  %v912 = vpop.permute.xlu0 %911
  %913 = vrot.lane.b32.xlu0 %v879, 8
  %v914 = vpop.permute.xlu0 %913
  %915 = vrot.lane.b32.xlu0 %v884, 8
  %v916 = vpop.permute.xlu0 %915
  %917 = vrot.lane.b32.xlu0 %v889, 8
  %v918 = vpop.permute.xlu0 %917
  %919 = vrot.lane.b32.xlu0 %v894, 8
  %v920 = vpop.permute.xlu0 %919
  %vm929 = vcmask 130112
  %930 = vst.msk [vmem:[#allocation2] sm:$0xff] %vm929, %v906
  %931 = vst.msk [vmem:[#allocation2 + $0x8] sm:$0xff] %vm929, %v908
  %932 = vst.msk [vmem:[#allocation2 + $0x10] sm:$0xff] %vm929, %v910
  %933 = vst.msk [vmem:[#allocation2 + $0x18] sm:$0xff] %vm929, %v912
  %934 = vst.msk [vmem:[#allocation2 + $0x20] sm:$0xff] %vm929, %v914
  %935 = vst.msk [vmem:[#allocation2 + $0x28] sm:$0xff] %vm929, %v916
  %936 = vst.msk [vmem:[#allocation2 + $0x30] sm:$0xff] %vm929, %v918
  %937 = vst.msk [vmem:[#allocation2 + $0x38] sm:$0xff] %vm929, %v920
  %938 = vset.pattern.permute.xlu0 38
  %939 = vperm.xlu0 %938, %v143
  %v940 = vpop.permute.xlu0 %939
  %942 = vset.pattern.permute.xlu0 38
  %943 = vperm.xlu0 %942, %v148
  %v944 = vpop.permute.xlu0 %943
  %946 = vset.pattern.permute.xlu0 38
  %947 = vperm.xlu0 %946, %v153
  %v948 = vpop.permute.xlu0 %947
  %950 = vset.pattern.permute.xlu0 38
  %951 = vperm.xlu0 %950, %v158
  %v952 = vpop.permute.xlu0 %951
  %954 = vset.pattern.permute.xlu0 38
  %955 = vperm.xlu0 %954, %v163
  %v956 = vpop.permute.xlu0 %955
  %958 = vset.pattern.permute.xlu0 38
  %959 = vperm.xlu0 %958, %v168
  %v960 = vpop.permute.xlu0 %959
  %962 = vset.pattern.permute.xlu0 38
  %963 = vperm.xlu0 %962, %v173
  %v964 = vpop.permute.xlu0 %963
  %966 = vset.pattern.permute.xlu0 38
  %967 = vperm.xlu0 %966, %v178
  %v968 = vpop.permute.xlu0 %967
  %v970 = vlaneseq
  %v971 = vshrl.u32 %v970, 7
  %v972 = vsub.s32 2, %v971
  %v973 = vrot.slane %v229, %v972
  %v974 = vadd.f32 %v940, %v973
  %v975 = vadd.f32 %v944, %v973
  %v976 = vadd.f32 %v948, %v973
  %v977 = vadd.f32 %v952, %v973
  %v978 = vadd.f32 %v956, %v973
  %v979 = vadd.f32 %v960, %v973
  %v980 = vadd.f32 %v964, %v973
  %v981 = vadd.f32 %v968, %v973
  %vm982 = vcmp.gt.f32.partialorder %v974, 0.0
  %vm983 = vcmp.gt.f32.partialorder %v975, 0.0
  %vm984 = vcmp.gt.f32.partialorder %v976, 0.0
  %vm985 = vcmp.gt.f32.partialorder %v977, 0.0
  %vm986 = vcmp.gt.f32.partialorder %v978, 0.0
  %vm987 = vcmp.gt.f32.partialorder %v979, 0.0
  %vm988 = vcmp.gt.f32.partialorder %v980, 0.0
  %vm989 = vcmp.gt.f32.partialorder %v981, 0.0
  %v990 = vmul.f32 %v974, 0.1
  %v991 = vmul.f32 %v975, 0.1
  %v992 = vmul.f32 %v976, 0.1
  %v993 = vmul.f32 %v977, 0.1
  %v994 = vmul.f32 %v978, 0.1
  %v995 = vmul.f32 %v979, 0.1
  %v996 = vmul.f32 %v980, 0.1
  %v997 = vmul.f32 %v981, 0.1
  %v998 = vsel %vm982, %v974, %v990
  %v999 = vsel %vm983, %v975, %v991
  %v1000 = vsel %vm984, %v976, %v992
  %v1001 = vsel %vm985, %v977, %v993
  %v1002 = vsel %vm986, %v978, %v994
  %v1003 = vsel %vm987, %v979, %v995
  %v1004 = vsel %vm988, %v980, %v996
  %v1005 = vsel %vm989, %v981, %v997
  %v1006 = vmul.f32 %v31, %v998
  %v1007 = vmul.f32 %v32, %v999
  %v1008 = vmul.f32 %v33, %v1000
  %v1009 = vmul.f32 %v34, %v1001
  %v1010 = vmul.f32 %v35, %v1002
  %v1011 = vmul.f32 %v36, %v1003
  %v1012 = vmul.f32 %v37, %v1004
  %v1013 = vmul.f32 %v38, %v1005
  %v1014 = vadd.f32 %v1006, %v23
  %v1015 = vadd.f32 %v1007, %v24
  %v1016 = vadd.f32 %v1008, %v25
  %v1017 = vadd.f32 %v1009, %v26
  %v1018 = vadd.f32 %v1010, %v27
  %v1019 = vadd.f32 %v1011, %v28
  %v1020 = vadd.f32 %v1012, %v29
  %v1021 = vadd.f32 %v1013, %v30
  %v1022 = vsel %vm329, %v1014, -inf
  %1023 = vmax.xlane.f32.xlu0 %v1022
  %v1024 = vpop.xlane.xlu0 %1023
  %v1025 = vsel %vm329, %v1015, -inf
  %1026 = vmax.xlane.f32.xlu0 %v1025
  %v1027 = vpop.xlane.xlu0 %1026
  %v1028 = vsel %vm329, %v1016, -inf
  %1029 = vmax.xlane.f32.xlu0 %v1028
  %v1030 = vpop.xlane.xlu0 %1029
  %v1031 = vsel %vm329, %v1017, -inf
  %1032 = vmax.xlane.f32.xlu0 %v1031
  %v1033 = vpop.xlane.xlu0 %1032
  %v1034 = vsel %vm329, %v1018, -inf
  %1035 = vmax.xlane.f32.xlu0 %v1034
  %v1036 = vpop.xlane.xlu0 %1035
  %v1037 = vsel %vm329, %v1019, -inf
  %1038 = vmax.xlane.f32.xlu0 %v1037
  %v1039 = vpop.xlane.xlu0 %1038
  %v1040 = vsel %vm329, %v1020, -inf
  %1041 = vmax.xlane.f32.xlu0 %v1040
  %v1042 = vpop.xlane.xlu0 %1041
  %v1043 = vsel %vm329, %v1021, -inf
  %1044 = vmax.xlane.f32.xlu0 %v1043
  %v1045 = vpop.xlane.xlu0 %1044
  %v1046 = vsub.f32 %v1014, %v1024
  %v1047 = vsub.f32 %v1015, %v1027
  %v1048 = vsub.f32 %v1016, %v1030
  %v1049 = vsub.f32 %v1017, %v1033
  %v1050 = vsub.f32 %v1018, %v1036
  %v1051 = vsub.f32 %v1019, %v1039
  %v1052 = vsub.f32 %v1020, %v1042
  %v1053 = vsub.f32 %v1021, %v1045
  %v1054 = vmul.f32 %v1046, 1.442695
  %v1055 = vpow.pop %v1054
  %v1056 = vmul.f32 %v1047, 1.442695
  %v1057 = vpow.pop %v1056
  %v1058 = vmul.f32 %v1048, 1.442695
  %v1059 = vpow.pop %v1058
  %v1060 = vmul.f32 %v1049, 1.442695
  %v1061 = vpow.pop %v1060
  %v1062 = vmul.f32 %v1050, 1.442695
  %v1063 = vpow.pop %v1062
  %v1064 = vmul.f32 %v1051, 1.442695
  %v1065 = vpow.pop %v1064
  %v1066 = vmul.f32 %v1052, 1.442695
  %v1067 = vpow.pop %v1066
  %v1068 = vmul.f32 %v1053, 1.442695
  %v1069 = vpow.pop %v1068
  %v1070 = vsel %vm329, %v1055, 0.0
  %1071 = vadd.xlane.f32.xlu0 %v1070
  %v1072 = vpop.xlane.xlu0 %1071
  %v1073 = vsel %vm329, %v1057, 0.0
  %1074 = vadd.xlane.f32.xlu0 %v1073
  %v1075 = vpop.xlane.xlu0 %1074
  %v1076 = vsel %vm329, %v1059, 0.0
  %1077 = vadd.xlane.f32.xlu0 %v1076
  %v1078 = vpop.xlane.xlu0 %1077
  %v1079 = vsel %vm329, %v1061, 0.0
  %1080 = vadd.xlane.f32.xlu0 %v1079
  %v1081 = vpop.xlane.xlu0 %1080
  %v1082 = vsel %vm329, %v1063, 0.0
  %1083 = vadd.xlane.f32.xlu0 %v1082
  %v1084 = vpop.xlane.xlu0 %1083
  %v1085 = vsel %vm329, %v1065, 0.0
  %1086 = vadd.xlane.f32.xlu0 %v1085
  %v1087 = vpop.xlane.xlu0 %1086
  %v1088 = vsel %vm329, %v1067, 0.0
  %1089 = vadd.xlane.f32.xlu0 %v1088
  %v1090 = vpop.xlane.xlu0 %1089
  %v1091 = vsel %vm329, %v1069, 0.0
  %1092 = vadd.xlane.f32.xlu0 %v1091
  %v1093 = vpop.xlane.xlu0 %1092
  %v1094 = vmax.f32 %v1072, 1e-20
  %v1095 = vmax.f32 %v1075, 1e-20
  %v1096 = vmax.f32 %v1078, 1e-20
  %v1097 = vmax.f32 %v1081, 1e-20
  %v1098 = vmax.f32 %v1084, 1e-20
  %v1099 = vmax.f32 %v1087, 1e-20
  %v1100 = vmax.f32 %v1090, 1e-20
  %v1101 = vmax.f32 %v1093, 1e-20
  %v1102 = vrcp.pop %v1094
  %v1103 = vrcp.pop %v1095
  %v1104 = vrcp.pop %v1096
  %v1105 = vrcp.pop %v1097
  %v1106 = vrcp.pop %v1098
  %v1107 = vrcp.pop %v1099
  %v1108 = vrcp.pop %v1100
  %v1109 = vrcp.pop %v1101
  %v1110 = vmul.f32 %v1055, %v1102
  %v1111 = vmul.f32 %v1057, %v1103
  %v1112 = vmul.f32 %v1059, %v1104
  %v1113 = vmul.f32 %v1061, %v1105
  %v1114 = vmul.f32 %v1063, %v1106
  %v1115 = vmul.f32 %v1065, %v1107
  %v1116 = vmul.f32 %v1067, %v1108
  %v1117 = vmul.f32 %v1069, %v1109
  %1118 = vrot.lane.b32.xlu0 %v143, 112
  %v1119 = vpop.permute.xlu0 %1118
  %1120 = vrot.lane.b32.xlu0 %v148, 112
  %v1121 = vpop.permute.xlu0 %1120
  %1122 = vrot.lane.b32.xlu0 %v153, 112
  %v1123 = vpop.permute.xlu0 %1122
  %1124 = vrot.lane.b32.xlu0 %v158, 112
  %v1125 = vpop.permute.xlu0 %1124
  %1126 = vrot.lane.b32.xlu0 %v163, 112
  %v1127 = vpop.permute.xlu0 %1126
  %1128 = vrot.lane.b32.xlu0 %v168, 112
  %v1129 = vpop.permute.xlu0 %1128
  %1130 = vrot.lane.b32.xlu0 %v173, 112
  %v1131 = vpop.permute.xlu0 %1130
  %1132 = vrot.lane.b32.xlu0 %v178, 112
  %v1133 = vpop.permute.xlu0 %1132
  %v1143 = vsel %vm329, %v1110, 0
  %v1146 = vsel %vm329, %v1111, 0
  %v1149 = vsel %vm329, %v1112, 0
  %v1152 = vsel %vm329, %v1113, 0
  %v1155 = vsel %vm329, %v1114, 0
  %v1158 = vsel %vm329, %v1115, 0
  %v1161 = vsel %vm329, %v1116, 0
  %v1164 = vsel %vm329, %v1117, 0
  %1166 = vmatprep.subr.mxu0 0.0
  %1167 = vmatpush1.msra.mxu0 0.0
  %1168 = vmatprep.subr.mxu0 0.0
  %1169 = vmatpush1.msra.mxu0 0.0
  %1170 = vmatprep.subr.mxu0 0.0
  %1171 = vmatpush1.msra.mxu0 0.0
  %1172 = vmatprep.subr.mxu0 0.0
  %1173 = vmatpush1.msra.mxu0 0.0
  %1174 = vmatprep.subr.mxu0 0.0
  %1175 = vmatpush1.msra.mxu0 0.0
  %1176 = vmatprep.subr.mxu0 0.0
  %1177 = vmatpush1.msra.mxu0 0.0
  %1178 = vmatprep.subr.mxu0 0.0
  %1179 = vmatpush1.msra.mxu0 0.0
  %1180 = vmatprep.subr.mxu0 0.0
  %1181 = vmatpush1.msra.mxu0 0.0
  %1182 = vmatprep.subr.mxu0 0.0
  %1183 = vmatpush1.msra.mxu0 %v1133
  %1184 = vmatprep.subr.mxu0 0.0
  %1185 = vmatpush1.msra.mxu0 %v1131
  %1186 = vmatprep.subr.mxu0 0.0
  %1187 = vmatpush1.msra.mxu0 %v1129
  %1188 = vmatprep.subr.mxu0 0.0
  %1189 = vmatpush1.msra.mxu0 %v1127
  %1190 = vmatprep.subr.mxu0 0.0
  %1191 = vmatpush1.msra.mxu0 %v1125
  %1192 = vmatprep.subr.mxu0 0.0
  %1193 = vmatpush1.msra.mxu0 %v1123
  %1194 = vmatprep.subr.mxu0 0.0
  %1195 = vmatpush1.msra.mxu0 %v1121
  %1196 = vmatprep.subr.mxu0 0.0
  %1197 = vmatpush1.msra.mxu0 %v1119
  %1198 = vmatprep.subr.mxu0 0.0
  %1199 = vmatpush2.msra.mxu0 0.0
  %1200 = vmatprep.subr.mxu0 0.0
  %1201 = vmatpush2.msra.mxu0 0.0
  %1202 = vmatprep.subr.mxu0 0.0
  %1203 = vmatpush2.msra.mxu0 0.0
  %1204 = vmatprep.subr.mxu0 0.0
  %1205 = vmatpush2.msra.mxu0 0.0
  %1206 = vmatprep.subr.mxu0 0.0
  %1207 = vmatpush2.msra.mxu0 0.0
  %1208 = vmatprep.subr.mxu0 0.0
  %1209 = vmatpush2.msra.mxu0 0.0
  %1210 = vmatprep.subr.mxu0 0.0
  %1211 = vmatpush2.msra.mxu0 0.0
  %1212 = vmatprep.subr.mxu0 0.0
  %1213 = vmatpush2.msra.mxu0 0.0
  %1214 = vmatprep.subr.mxu0 0.0
  %1215 = vmatpush2.msra.mxu0 0.0
  %1216 = vmatprep.subr.mxu0 0.0
  %1217 = vmatpush2.msra.mxu0 0.0
  %1218 = vmatprep.subr.mxu0 0.0
  %1219 = vmatpush2.msra.mxu0 0.0
  %1220 = vmatprep.subr.mxu0 0.0
  %1221 = vmatpush2.msra.mxu0 0.0
  %1222 = vmatprep.subr.mxu0 0.0
  %1223 = vmatpush2.msra.mxu0 0.0
  %1224 = vmatprep.subr.mxu0 0.0
  %1225 = vmatpush2.msra.mxu0 0.0
  %1226 = vmatprep.subr.mxu0 0.0
  %1227 = vmatpush2.msra.mxu0 0.0
  %1228 = vmatprep.subr.mxu0 0.0
  %1229 = vmatpush2.msra.mxu0 0.0
  %1230 = vmatprep.mubr.f32.mxu0 0.0
  %1231 = vmatmul.mubr.f32.gmra.mxu0 %v1143
  %v1232 = vpop.f32.mrf.mxu0
  %v1233 = vadd.f32 0.0, %v1232
  %v1234 = vpop.f32.mrf.mxu0
  %1235 = vmatprep.mubr.f32.mxu0 0.0
  %1236 = vmatmul.mubr.f32.gmra.mxu0 %v1146
  %v1237 = vpop.f32.mrf.mxu0
  %v1238 = vadd.f32 0.0, %v1237
  %v1239 = vpop.f32.mrf.mxu0
  %1240 = vmatprep.mubr.f32.mxu0 0.0
  %1241 = vmatmul.mubr.f32.gmra.mxu0 %v1149
  %v1242 = vpop.f32.mrf.mxu0
  %v1243 = vadd.f32 0.0, %v1242
  %v1244 = vpop.f32.mrf.mxu0
  %1245 = vmatprep.mubr.f32.mxu0 0.0
  %1246 = vmatmul.mubr.f32.gmra.mxu0 %v1152
  %v1247 = vpop.f32.mrf.mxu0
  %v1248 = vadd.f32 0.0, %v1247
  %v1249 = vpop.f32.mrf.mxu0
  %1250 = vmatprep.mubr.f32.mxu0 0.0
  %1251 = vmatmul.mubr.f32.gmra.mxu0 %v1155
  %v1252 = vpop.f32.mrf.mxu0
  %v1253 = vadd.f32 0.0, %v1252
  %v1254 = vpop.f32.mrf.mxu0
  %1255 = vmatprep.mubr.f32.mxu0 0.0
  %1256 = vmatmul.mubr.f32.gmra.mxu0 %v1158
  %v1257 = vpop.f32.mrf.mxu0
  %v1258 = vadd.f32 0.0, %v1257
  %v1259 = vpop.f32.mrf.mxu0
  %1260 = vmatprep.mubr.f32.mxu0 0.0
  %1261 = vmatmul.mubr.f32.gmra.mxu0 %v1161
  %v1262 = vpop.f32.mrf.mxu0
  %v1263 = vadd.f32 0.0, %v1262
  %v1264 = vpop.f32.mrf.mxu0
  %1265 = vmatprep.mubr.f32.mxu0 0.0
  %1266 = vmatmul.mubr.f32.gmra.mxu0 %v1164
  %v1267 = vpop.f32.mrf.mxu0
  %v1268 = vadd.f32 0.0, %v1267
  %v1269 = vpop.f32.mrf.mxu0
  %1270 = vdwg.mxu0
  %1279 = vrot.lane.b32.xlu0 %v1233, 16
  %v1280 = vpop.permute.xlu0 %1279
  %1281 = vrot.lane.b32.xlu0 %v1238, 16
  %v1282 = vpop.permute.xlu0 %1281
  %1283 = vrot.lane.b32.xlu0 %v1243, 16
  %v1284 = vpop.permute.xlu0 %1283
  %1285 = vrot.lane.b32.xlu0 %v1248, 16
  %v1286 = vpop.permute.xlu0 %1285
  %1287 = vrot.lane.b32.xlu0 %v1253, 16
  %v1288 = vpop.permute.xlu0 %1287
  %1289 = vrot.lane.b32.xlu0 %v1258, 16
  %v1290 = vpop.permute.xlu0 %1289
  %1291 = vrot.lane.b32.xlu0 %v1263, 16
  %v1292 = vpop.permute.xlu0 %1291
  %1293 = vrot.lane.b32.xlu0 %v1268, 16
  %v1294 = vpop.permute.xlu0 %1293
  %vm1303 = vcmask 195712
  %1304 = vst.msk [vmem:[#allocation2] sm:$0xff] %vm1303, %v1280
  %1305 = vst.msk [vmem:[#allocation2 + $0x8] sm:$0xff] %vm1303, %v1282
  %1306 = vst.msk [vmem:[#allocation2 + $0x10] sm:$0xff] %vm1303, %v1284
  %1307 = vst.msk [vmem:[#allocation2 + $0x18] sm:$0xff] %vm1303, %v1286
  %1308 = vst.msk [vmem:[#allocation2 + $0x20] sm:$0xff] %vm1303, %v1288
  %1309 = vst.msk [vmem:[#allocation2 + $0x28] sm:$0xff] %vm1303, %v1290
  %1310 = vst.msk [vmem:[#allocation2 + $0x30] sm:$0xff] %vm1303, %v1292
  %1311 = vst.msk [vmem:[#allocation2 + $0x38] sm:$0xff] %vm1303, %v1294
  %1312 = vset.pattern.permute.xlu0 39
  %1313 = vperm.xlu0 %1312, %v143
  %v1314 = vpop.permute.xlu0 %1313
  %1316 = vset.pattern.permute.xlu0 39
  %1317 = vperm.xlu0 %1316, %v148
  %v1318 = vpop.permute.xlu0 %1317
  %1320 = vset.pattern.permute.xlu0 39
  %1321 = vperm.xlu0 %1320, %v153
  %v1322 = vpop.permute.xlu0 %1321
  %1324 = vset.pattern.permute.xlu0 39
  %1325 = vperm.xlu0 %1324, %v158
  %v1326 = vpop.permute.xlu0 %1325
  %1328 = vset.pattern.permute.xlu0 39
  %1329 = vperm.xlu0 %1328, %v163
  %v1330 = vpop.permute.xlu0 %1329
  %1332 = vset.pattern.permute.xlu0 39
  %1333 = vperm.xlu0 %1332, %v168
  %v1334 = vpop.permute.xlu0 %1333
  %1336 = vset.pattern.permute.xlu0 39
  %1337 = vperm.xlu0 %1336, %v173
  %v1338 = vpop.permute.xlu0 %1337
  %1340 = vset.pattern.permute.xlu0 39
  %1341 = vperm.xlu0 %1340, %v178
  %v1342 = vpop.permute.xlu0 %1341
  %v1344 = vlaneseq
  %v1345 = vshrl.u32 %v1344, 7
  %v1346 = vsub.s32 3, %v1345
  %v1347 = vrot.slane %v229, %v1346
  %v1348 = vadd.f32 %v1314, %v1347
  %v1349 = vadd.f32 %v1318, %v1347
  %v1350 = vadd.f32 %v1322, %v1347
  %v1351 = vadd.f32 %v1326, %v1347
  %v1352 = vadd.f32 %v1330, %v1347
  %v1353 = vadd.f32 %v1334, %v1347
  %v1354 = vadd.f32 %v1338, %v1347
  %v1355 = vadd.f32 %v1342, %v1347
  %vm1356 = vcmp.gt.f32.partialorder %v1348, 0.0
  %vm1357 = vcmp.gt.f32.partialorder %v1349, 0.0
  %vm1358 = vcmp.gt.f32.partialorder %v1350, 0.0
  %vm1359 = vcmp.gt.f32.partialorder %v1351, 0.0
  %vm1360 = vcmp.gt.f32.partialorder %v1352, 0.0
  %vm1361 = vcmp.gt.f32.partialorder %v1353, 0.0
  %vm1362 = vcmp.gt.f32.partialorder %v1354, 0.0
  %vm1363 = vcmp.gt.f32.partialorder %v1355, 0.0
  %v1364 = vmul.f32 %v1348, 0.1
  %v1365 = vmul.f32 %v1349, 0.1
  %v1366 = vmul.f32 %v1350, 0.1
  %v1367 = vmul.f32 %v1351, 0.1
  %v1368 = vmul.f32 %v1352, 0.1
  %v1369 = vmul.f32 %v1353, 0.1
  %v1370 = vmul.f32 %v1354, 0.1
  %v1371 = vmul.f32 %v1355, 0.1
  %v1372 = vsel %vm1356, %v1348, %v1364
  %v1373 = vsel %vm1357, %v1349, %v1365
  %v1374 = vsel %vm1358, %v1350, %v1366
  %v1375 = vsel %vm1359, %v1351, %v1367
  %v1376 = vsel %vm1360, %v1352, %v1368
  %v1377 = vsel %vm1361, %v1353, %v1369
  %v1378 = vsel %vm1362, %v1354, %v1370
  %v1379 = vsel %vm1363, %v1355, %v1371
  %v1380 = vmul.f32 %v31, %v1372
  %v1381 = vmul.f32 %v32, %v1373
  %v1382 = vmul.f32 %v33, %v1374
  %v1383 = vmul.f32 %v34, %v1375
  %v1384 = vmul.f32 %v35, %v1376
  %v1385 = vmul.f32 %v36, %v1377
  %v1386 = vmul.f32 %v37, %v1378
  %v1387 = vmul.f32 %v38, %v1379
  %v1388 = vadd.f32 %v1380, %v23
  %v1389 = vadd.f32 %v1381, %v24
  %v1390 = vadd.f32 %v1382, %v25
  %v1391 = vadd.f32 %v1383, %v26
  %v1392 = vadd.f32 %v1384, %v27
  %v1393 = vadd.f32 %v1385, %v28
  %v1394 = vadd.f32 %v1386, %v29
  %v1395 = vadd.f32 %v1387, %v30
  %v1396 = vsel %vm329, %v1388, -inf
  %1397 = vmax.xlane.f32.xlu0 %v1396
  %v1398 = vpop.xlane.xlu0 %1397
  %v1399 = vsel %vm329, %v1389, -inf
  %1400 = vmax.xlane.f32.xlu0 %v1399
  %v1401 = vpop.xlane.xlu0 %1400
  %v1402 = vsel %vm329, %v1390, -inf
  %1403 = vmax.xlane.f32.xlu0 %v1402
  %v1404 = vpop.xlane.xlu0 %1403
  %v1405 = vsel %vm329, %v1391, -inf
  %1406 = vmax.xlane.f32.xlu0 %v1405
  %v1407 = vpop.xlane.xlu0 %1406
  %v1408 = vsel %vm329, %v1392, -inf
  %1409 = vmax.xlane.f32.xlu0 %v1408
  %v1410 = vpop.xlane.xlu0 %1409
  %v1411 = vsel %vm329, %v1393, -inf
  %1412 = vmax.xlane.f32.xlu0 %v1411
  %v1413 = vpop.xlane.xlu0 %1412
  %v1414 = vsel %vm329, %v1394, -inf
  %1415 = vmax.xlane.f32.xlu0 %v1414
  %v1416 = vpop.xlane.xlu0 %1415
  %v1417 = vsel %vm329, %v1395, -inf
  %1418 = vmax.xlane.f32.xlu0 %v1417
  %v1419 = vpop.xlane.xlu0 %1418
  %v1420 = vsub.f32 %v1388, %v1398
  %v1421 = vsub.f32 %v1389, %v1401
  %v1422 = vsub.f32 %v1390, %v1404
  %v1423 = vsub.f32 %v1391, %v1407
  %v1424 = vsub.f32 %v1392, %v1410
  %v1425 = vsub.f32 %v1393, %v1413
  %v1426 = vsub.f32 %v1394, %v1416
  %v1427 = vsub.f32 %v1395, %v1419
  %v1428 = vmul.f32 %v1420, 1.442695
  %v1429 = vpow.pop %v1428
  %v1430 = vmul.f32 %v1421, 1.442695
  %v1431 = vpow.pop %v1430
  %v1432 = vmul.f32 %v1422, 1.442695
  %v1433 = vpow.pop %v1432
  %v1434 = vmul.f32 %v1423, 1.442695
  %v1435 = vpow.pop %v1434
  %v1436 = vmul.f32 %v1424, 1.442695
  %v1437 = vpow.pop %v1436
  %v1438 = vmul.f32 %v1425, 1.442695
  %v1439 = vpow.pop %v1438
  %v1440 = vmul.f32 %v1426, 1.442695
  %v1441 = vpow.pop %v1440
  %v1442 = vmul.f32 %v1427, 1.442695
  %v1443 = vpow.pop %v1442
  %v1444 = vsel %vm329, %v1429, 0.0
  %1445 = vadd.xlane.f32.xlu0 %v1444
  %v1446 = vpop.xlane.xlu0 %1445
  %v1447 = vsel %vm329, %v1431, 0.0
  %1448 = vadd.xlane.f32.xlu0 %v1447
  %v1449 = vpop.xlane.xlu0 %1448
  %v1450 = vsel %vm329, %v1433, 0.0
  %1451 = vadd.xlane.f32.xlu0 %v1450
  %v1452 = vpop.xlane.xlu0 %1451
  %v1453 = vsel %vm329, %v1435, 0.0
  %1454 = vadd.xlane.f32.xlu0 %v1453
  %v1455 = vpop.xlane.xlu0 %1454
  %v1456 = vsel %vm329, %v1437, 0.0
  %1457 = vadd.xlane.f32.xlu0 %v1456
  %v1458 = vpop.xlane.xlu0 %1457
  %v1459 = vsel %vm329, %v1439, 0.0
  %1460 = vadd.xlane.f32.xlu0 %v1459
  %v1461 = vpop.xlane.xlu0 %1460
  %v1462 = vsel %vm329, %v1441, 0.0
  %1463 = vadd.xlane.f32.xlu0 %v1462
  %v1464 = vpop.xlane.xlu0 %1463
  %v1465 = vsel %vm329, %v1443, 0.0
  %1466 = vadd.xlane.f32.xlu0 %v1465
  %v1467 = vpop.xlane.xlu0 %1466
  %v1468 = vmax.f32 %v1446, 1e-20
  %v1469 = vmax.f32 %v1449, 1e-20
  %v1470 = vmax.f32 %v1452, 1e-20
  %v1471 = vmax.f32 %v1455, 1e-20
  %v1472 = vmax.f32 %v1458, 1e-20
  %v1473 = vmax.f32 %v1461, 1e-20
  %v1474 = vmax.f32 %v1464, 1e-20
  %v1475 = vmax.f32 %v1467, 1e-20
  %v1476 = vrcp.pop %v1468
  %v1477 = vrcp.pop %v1469
  %v1478 = vrcp.pop %v1470
  %v1479 = vrcp.pop %v1471
  %v1480 = vrcp.pop %v1472
  %v1481 = vrcp.pop %v1473
  %v1482 = vrcp.pop %v1474
  %v1483 = vrcp.pop %v1475
  %v1484 = vmul.f32 %v1429, %v1476
  %v1485 = vmul.f32 %v1431, %v1477
  %v1486 = vmul.f32 %v1433, %v1478
  %v1487 = vmul.f32 %v1435, %v1479
  %v1488 = vmul.f32 %v1437, %v1480
  %v1489 = vmul.f32 %v1439, %v1481
  %v1490 = vmul.f32 %v1441, %v1482
  %v1491 = vmul.f32 %v1443, %v1483
  %1492 = vrot.lane.b32.xlu0 %v143, 104
  %v1493 = vpop.permute.xlu0 %1492
  %1494 = vrot.lane.b32.xlu0 %v148, 104
  %v1495 = vpop.permute.xlu0 %1494
  %1496 = vrot.lane.b32.xlu0 %v153, 104
  %v1497 = vpop.permute.xlu0 %1496
  %1498 = vrot.lane.b32.xlu0 %v158, 104
  %v1499 = vpop.permute.xlu0 %1498
  %1500 = vrot.lane.b32.xlu0 %v163, 104
  %v1501 = vpop.permute.xlu0 %1500
  %1502 = vrot.lane.b32.xlu0 %v168, 104
  %v1503 = vpop.permute.xlu0 %1502
  %1504 = vrot.lane.b32.xlu0 %v173, 104
  %v1505 = vpop.permute.xlu0 %1504
  %1506 = vrot.lane.b32.xlu0 %v178, 104
  %v1507 = vpop.permute.xlu0 %1506
  %v1517 = vsel %vm329, %v1484, 0
  %v1520 = vsel %vm329, %v1485, 0
  %v1523 = vsel %vm329, %v1486, 0
  %v1526 = vsel %vm329, %v1487, 0
  %v1529 = vsel %vm329, %v1488, 0
  %v1532 = vsel %vm329, %v1489, 0
  %v1535 = vsel %vm329, %v1490, 0
  %v1538 = vsel %vm329, %v1491, 0
  %1540 = vmatprep.subr.mxu0 0.0
  %1541 = vmatpush1.msra.mxu0 0.0
  %1542 = vmatprep.subr.mxu0 0.0
  %1543 = vmatpush1.msra.mxu0 0.0
  %1544 = vmatprep.subr.mxu0 0.0
  %1545 = vmatpush1.msra.mxu0 0.0
  %1546 = vmatprep.subr.mxu0 0.0
  %1547 = vmatpush1.msra.mxu0 0.0
  %1548 = vmatprep.subr.mxu0 0.0
  %1549 = vmatpush1.msra.mxu0 0.0
  %1550 = vmatprep.subr.mxu0 0.0
  %1551 = vmatpush1.msra.mxu0 0.0
  %1552 = vmatprep.subr.mxu0 0.0
  %1553 = vmatpush1.msra.mxu0 0.0
  %1554 = vmatprep.subr.mxu0 0.0
  %1555 = vmatpush1.msra.mxu0 0.0
  %1556 = vmatprep.subr.mxu0 0.0
  %1557 = vmatpush1.msra.mxu0 %v1507
  %1558 = vmatprep.subr.mxu0 0.0
  %1559 = vmatpush1.msra.mxu0 %v1505
  %1560 = vmatprep.subr.mxu0 0.0
  %1561 = vmatpush1.msra.mxu0 %v1503
  %1562 = vmatprep.subr.mxu0 0.0
  %1563 = vmatpush1.msra.mxu0 %v1501
  %1564 = vmatprep.subr.mxu0 0.0
  %1565 = vmatpush1.msra.mxu0 %v1499
  %1566 = vmatprep.subr.mxu0 0.0
  %1567 = vmatpush1.msra.mxu0 %v1497
  %1568 = vmatprep.subr.mxu0 0.0
  %1569 = vmatpush1.msra.mxu0 %v1495
  %1570 = vmatprep.subr.mxu0 0.0
  %1571 = vmatpush1.msra.mxu0 %v1493
  %1572 = vmatprep.subr.mxu0 0.0
  %1573 = vmatpush2.msra.mxu0 0.0
  %1574 = vmatprep.subr.mxu0 0.0
  %1575 = vmatpush2.msra.mxu0 0.0
  %1576 = vmatprep.subr.mxu0 0.0
  %1577 = vmatpush2.msra.mxu0 0.0
  %1578 = vmatprep.subr.mxu0 0.0
  %1579 = vmatpush2.msra.mxu0 0.0
  %1580 = vmatprep.subr.mxu0 0.0
  %1581 = vmatpush2.msra.mxu0 0.0
  %1582 = vmatprep.subr.mxu0 0.0
  %1583 = vmatpush2.msra.mxu0 0.0
  %1584 = vmatprep.subr.mxu0 0.0
  %1585 = vmatpush2.msra.mxu0 0.0
  %1586 = vmatprep.subr.mxu0 0.0
  %1587 = vmatpush2.msra.mxu0 0.0
  %1588 = vmatprep.subr.mxu0 0.0
  %1589 = vmatpush2.msra.mxu0 0.0
  %1590 = vmatprep.subr.mxu0 0.0
  %1591 = vmatpush2.msra.mxu0 0.0
  %1592 = vmatprep.subr.mxu0 0.0
  %1593 = vmatpush2.msra.mxu0 0.0
  %1594 = vmatprep.subr.mxu0 0.0
  %1595 = vmatpush2.msra.mxu0 0.0
  %1596 = vmatprep.subr.mxu0 0.0
  %1597 = vmatpush2.msra.mxu0 0.0
  %1598 = vmatprep.subr.mxu0 0.0
  %1599 = vmatpush2.msra.mxu0 0.0
  %1600 = vmatprep.subr.mxu0 0.0
  %1601 = vmatpush2.msra.mxu0 0.0
  %1602 = vmatprep.subr.mxu0 0.0
  %1603 = vmatpush2.msra.mxu0 0.0
  %1604 = vmatprep.mubr.f32.mxu0 0.0
  %1605 = vmatmul.mubr.f32.gmra.mxu0 %v1517
  %v1606 = vpop.f32.mrf.mxu0
  %v1607 = vadd.f32 0.0, %v1606
  %v1608 = vpop.f32.mrf.mxu0
  %1609 = vmatprep.mubr.f32.mxu0 0.0
  %1610 = vmatmul.mubr.f32.gmra.mxu0 %v1520
  %v1611 = vpop.f32.mrf.mxu0
  %v1612 = vadd.f32 0.0, %v1611
  %v1613 = vpop.f32.mrf.mxu0
  %1614 = vmatprep.mubr.f32.mxu0 0.0
  %1615 = vmatmul.mubr.f32.gmra.mxu0 %v1523
  %v1616 = vpop.f32.mrf.mxu0
  %v1617 = vadd.f32 0.0, %v1616
  %v1618 = vpop.f32.mrf.mxu0
  %1619 = vmatprep.mubr.f32.mxu0 0.0
  %1620 = vmatmul.mubr.f32.gmra.mxu0 %v1526
  %v1621 = vpop.f32.mrf.mxu0
  %v1622 = vadd.f32 0.0, %v1621
  %v1623 = vpop.f32.mrf.mxu0
  %1624 = vmatprep.mubr.f32.mxu0 0.0
  %1625 = vmatmul.mubr.f32.gmra.mxu0 %v1529
  %v1626 = vpop.f32.mrf.mxu0
  %v1627 = vadd.f32 0.0, %v1626
  %v1628 = vpop.f32.mrf.mxu0
  %1629 = vmatprep.mubr.f32.mxu0 0.0
  %1630 = vmatmul.mubr.f32.gmra.mxu0 %v1532
  %v1631 = vpop.f32.mrf.mxu0
  %v1632 = vadd.f32 0.0, %v1631
  %v1633 = vpop.f32.mrf.mxu0
  %1634 = vmatprep.mubr.f32.mxu0 0.0
  %1635 = vmatmul.mubr.f32.gmra.mxu0 %v1535
  %v1636 = vpop.f32.mrf.mxu0
  %v1637 = vadd.f32 0.0, %v1636
  %v1638 = vpop.f32.mrf.mxu0
  %1639 = vmatprep.mubr.f32.mxu0 0.0
  %1640 = vmatmul.mubr.f32.gmra.mxu0 %v1538
  %v1641 = vpop.f32.mrf.mxu0
  %v1642 = vadd.f32 0.0, %v1641
  %v1643 = vpop.f32.mrf.mxu0
  %1644 = vdwg.mxu0
  %1653 = vrot.lane.b32.xlu0 %v1607, 24
  %v1654 = vpop.permute.xlu0 %1653
  %1655 = vrot.lane.b32.xlu0 %v1612, 24
  %v1656 = vpop.permute.xlu0 %1655
  %1657 = vrot.lane.b32.xlu0 %v1617, 24
  %v1658 = vpop.permute.xlu0 %1657
  %1659 = vrot.lane.b32.xlu0 %v1622, 24
  %v1660 = vpop.permute.xlu0 %1659
  %1661 = vrot.lane.b32.xlu0 %v1627, 24
  %v1662 = vpop.permute.xlu0 %1661
  %1663 = vrot.lane.b32.xlu0 %v1632, 24
  %v1664 = vpop.permute.xlu0 %1663
  %1665 = vrot.lane.b32.xlu0 %v1637, 24
  %v1666 = vpop.permute.xlu0 %1665
  %1667 = vrot.lane.b32.xlu0 %v1642, 24
  %v1668 = vpop.permute.xlu0 %1667
  %vm1677 = vcmask 261312
  %1678 = vst.msk [vmem:[#allocation2] sm:$0xff] %vm1677, %v1654
  %1679 = vst.msk [vmem:[#allocation2 + $0x8] sm:$0xff] %vm1677, %v1656
  %1680 = vst.msk [vmem:[#allocation2 + $0x10] sm:$0xff] %vm1677, %v1658
  %1681 = vst.msk [vmem:[#allocation2 + $0x18] sm:$0xff] %vm1677, %v1660
  %1682 = vst.msk [vmem:[#allocation2 + $0x20] sm:$0xff] %vm1677, %v1662
  %1683 = vst.msk [vmem:[#allocation2 + $0x28] sm:$0xff] %vm1677, %v1664
  %1684 = vst.msk [vmem:[#allocation2 + $0x30] sm:$0xff] %vm1677, %v1666
  %1685 = vst.msk [vmem:[#allocation2 + $0x38] sm:$0xff] %vm1677, %v1668
  %v1686 = vld [vmem:[#allocation2] sm:$0xff]
  %v1687 = vld [vmem:[#allocation2 + $0x8] sm:$0xff]
  %v1688 = vld [vmem:[#allocation2 + $0x10] sm:$0xff]
  %v1689 = vld [vmem:[#allocation2 + $0x18] sm:$0xff]
  %v1690 = vld [vmem:[#allocation2 + $0x20] sm:$0xff]
  %v1691 = vld [vmem:[#allocation2 + $0x28] sm:$0xff]
  %v1692 = vld [vmem:[#allocation2 + $0x30] sm:$0xff]
  %v1693 = vld [vmem:[#allocation2 + $0x38] sm:$0xff]
  %v1694 = vmax.f32 %v1686, 0.0
  %v1695 = vmax.f32 %v1687, 0.0
  %v1696 = vmax.f32 %v1688, 0.0
  %v1697 = vmax.f32 %v1689, 0.0
  %v1698 = vmax.f32 %v1690, 0.0
  %v1699 = vmax.f32 %v1691, 0.0
  %v1700 = vmax.f32 %v1692, 0.0
  %v1701 = vmax.f32 %v1693, 0.0
  %v1702 = vld [vmem:[%s4] sm:$0xff]
  %v1703 = vld [vmem:[%s4 + $0x8] sm:$0xff]
  %v1704 = vld [vmem:[%s4 + $0x10] sm:$0xff]
  %v1705 = vld [vmem:[%s4 + $0x18] sm:$0xff]
  %s1706 = scalar_lea.vmem %s1, 32
  %v1707 = vld [vmem:[%s1706] sm:$0xff]
  %v1708 = vld [vmem:[%s1706 + $0x8] sm:$0xff]
  %v1709 = vld [vmem:[%s1706 + $0x10] sm:$0xff]
  %v1710 = vld [vmem:[%s1706 + $0x18] sm:$0xff]
  %v1712 = vsel %vm51, %v1694, 0
  %v1715 = vsel %vm51, %v1695, 0
  %v1718 = vsel %vm51, %v1696, 0
  %v1721 = vsel %vm51, %v1697, 0
  %v1724 = vsel %vm51, %v1698, 0
  %v1727 = vsel %vm51, %v1699, 0
  %v1730 = vsel %vm51, %v1700, 0
  %v1733 = vsel %vm51, %v1701, 0
  %1735 = vmatprep.subr.mxu0 0.0
  %1736 = vmatpush1.msra.mxu0 0.0
  %1737 = vmatprep.subr.mxu0 0.0
  %1738 = vmatpush1.msra.mxu0 0.0
  %1739 = vmatprep.subr.mxu0 0.0
  %1740 = vmatpush1.msra.mxu0 0.0
  %1741 = vmatprep.subr.mxu0 0.0
  %1742 = vmatpush1.msra.mxu0 0.0
  %1743 = vmatprep.subr.mxu0 0.0
  %1744 = vmatpush1.msra.mxu0 0.0
  %1745 = vmatprep.subr.mxu0 0.0
  %1746 = vmatpush1.msra.mxu0 0.0
  %1747 = vmatprep.subr.mxu0 0.0
  %1748 = vmatpush1.msra.mxu0 0.0
  %1749 = vmatprep.subr.mxu0 0.0
  %1750 = vmatpush1.msra.mxu0 0.0
  %1751 = vmatprep.subr.mxu0 0.0
  %1752 = vmatpush1.msra.mxu0 0.0
  %1753 = vmatprep.subr.mxu0 0.0
  %1754 = vmatpush1.msra.mxu0 0.0
  %1755 = vmatprep.subr.mxu0 0.0
  %1756 = vmatpush1.msra.mxu0 0.0
  %1757 = vmatprep.subr.mxu0 0.0
  %1758 = vmatpush1.msra.mxu0 0.0
  %1759 = vmatprep.subr.mxu0 0.0
  %1760 = vmatpush1.msra.mxu0 %v1710
  %1761 = vmatprep.subr.mxu0 0.0
  %1762 = vmatpush1.msra.mxu0 %v1709
  %1763 = vmatprep.subr.mxu0 0.0
  %1764 = vmatpush1.msra.mxu0 %v1708
  %1765 = vmatprep.subr.mxu0 0.0
  %1766 = vmatpush1.msra.mxu0 %v1707
  %1767 = vmatprep.subr.mxu0 0.0
  %1768 = vmatpush2.msra.mxu0 0.0
  %1769 = vmatprep.subr.mxu0 0.0
  %1770 = vmatpush2.msra.mxu0 0.0
  %1771 = vmatprep.subr.mxu0 0.0
  %1772 = vmatpush2.msra.mxu0 0.0
  %1773 = vmatprep.subr.mxu0 0.0
  %1774 = vmatpush2.msra.mxu0 0.0
  %1775 = vmatprep.subr.mxu0 0.0
  %1776 = vmatpush2.msra.mxu0 0.0
  %1777 = vmatprep.subr.mxu0 0.0
  %1778 = vmatpush2.msra.mxu0 0.0
  %1779 = vmatprep.subr.mxu0 0.0
  %1780 = vmatpush2.msra.mxu0 0.0
  %1781 = vmatprep.subr.mxu0 0.0
  %1782 = vmatpush2.msra.mxu0 0.0
  %1783 = vmatprep.subr.mxu0 0.0
  %1784 = vmatpush2.msra.mxu0 0.0
  %1785 = vmatprep.subr.mxu0 0.0
  %1786 = vmatpush2.msra.mxu0 0.0
  %1787 = vmatprep.subr.mxu0 0.0
  %1788 = vmatpush2.msra.mxu0 0.0
  %1789 = vmatprep.subr.mxu0 0.0
  %1790 = vmatpush2.msra.mxu0 0.0
  %1791 = vmatprep.subr.mxu0 0.0
  %1792 = vmatpush2.msra.mxu0 0.0
  %1793 = vmatprep.subr.mxu0 0.0
  %1794 = vmatpush2.msra.mxu0 0.0
  %1795 = vmatprep.subr.mxu0 0.0
  %1796 = vmatpush2.msra.mxu0 0.0
  %1797 = vmatprep.subr.mxu0 0.0
  %1798 = vmatpush2.msra.mxu0 0.0
  %1799 = vmatprep.mubr.f32.mxu0 0.0
  %1800 = vmatmul.mubr.f32.gmra.mxu0 %v1712
  %v1801 = vpop.f32.mrf.mxu0
  %v1802 = vadd.f32 0.0, %v1801
  %v1803 = vpop.f32.mrf.mxu0
  %1804 = vmatprep.mubr.f32.mxu0 0.0
  %1805 = vmatmul.mubr.f32.gmra.mxu0 %v1715
  %v1806 = vpop.f32.mrf.mxu0
  %v1807 = vadd.f32 0.0, %v1806
  %v1808 = vpop.f32.mrf.mxu0
  %1809 = vmatprep.mubr.f32.mxu0 0.0
  %1810 = vmatmul.mubr.f32.gmra.mxu0 %v1718
  %v1811 = vpop.f32.mrf.mxu0
  %v1812 = vadd.f32 0.0, %v1811
  %v1813 = vpop.f32.mrf.mxu0
  %1814 = vmatprep.mubr.f32.mxu0 0.0
  %1815 = vmatmul.mubr.f32.gmra.mxu0 %v1721
  %v1816 = vpop.f32.mrf.mxu0
  %v1817 = vadd.f32 0.0, %v1816
  %v1818 = vpop.f32.mrf.mxu0
  %1819 = vmatprep.mubr.f32.mxu0 0.0
  %1820 = vmatmul.mubr.f32.gmra.mxu0 %v1724
  %v1821 = vpop.f32.mrf.mxu0
  %v1822 = vadd.f32 0.0, %v1821
  %v1823 = vpop.f32.mrf.mxu0
  %1824 = vmatprep.mubr.f32.mxu0 0.0
  %1825 = vmatmul.mubr.f32.gmra.mxu0 %v1727
  %v1826 = vpop.f32.mrf.mxu0
  %v1827 = vadd.f32 0.0, %v1826
  %v1828 = vpop.f32.mrf.mxu0
  %1829 = vmatprep.mubr.f32.mxu0 0.0
  %1830 = vmatmul.mubr.f32.gmra.mxu0 %v1730
  %v1831 = vpop.f32.mrf.mxu0
  %v1832 = vadd.f32 0.0, %v1831
  %v1833 = vpop.f32.mrf.mxu0
  %1834 = vmatprep.mubr.f32.mxu0 0.0
  %1835 = vmatmul.mubr.f32.gmra.mxu0 %v1733
  %v1836 = vpop.f32.mrf.mxu0
  %v1837 = vadd.f32 0.0, %v1836
  %v1838 = vpop.f32.mrf.mxu0
  %1839 = vdwg.mxu0
  %1848 = vrot.lane.b32.xlu0 %v1802, 96
  %v1849 = vpop.permute.xlu0 %1848
  %1850 = vrot.lane.b32.xlu0 %v1807, 96
  %v1851 = vpop.permute.xlu0 %1850
  %1852 = vrot.lane.b32.xlu0 %v1812, 96
  %v1853 = vpop.permute.xlu0 %1852
  %1854 = vrot.lane.b32.xlu0 %v1817, 96
  %v1855 = vpop.permute.xlu0 %1854
  %1856 = vrot.lane.b32.xlu0 %v1822, 96
  %v1857 = vpop.permute.xlu0 %1856
  %1858 = vrot.lane.b32.xlu0 %v1827, 96
  %v1859 = vpop.permute.xlu0 %1858
  %1860 = vrot.lane.b32.xlu0 %v1832, 96
  %v1861 = vpop.permute.xlu0 %1860
  %1862 = vrot.lane.b32.xlu0 %v1837, 96
  %v1863 = vpop.permute.xlu0 %1862
  %1872 = vxpose.xlu0.b32.start [1/16] %v1849, 128
  %1873 = vxpose.xlu0.b32.cont [2/16] %v1851, 128
  %1874 = vxpose.xlu0.b32.cont [3/16] %v1853, 128
  %1875 = vxpose.xlu0.b32.cont [4/16] %v1855, 128
  %1876 = vxpose.xlu0.b32.cont [5/16] %v1857, 128
  %1877 = vxpose.xlu0.b32.cont [6/16] %v1859, 128
  %1878 = vxpose.xlu0.b32.cont [7/16] %v1861, 128
  %1879 = vxpose.xlu0.b32.cont [8/16] %v1863, 128
  %1880 = vxpose.xlu0.b32.cont [9/16] 0.0, 128
  %1881 = vxpose.xlu0.b32.cont [10/16] 0.0, 128
  %1882 = vxpose.xlu0.b32.cont [11/16] 0.0, 128
  %1883 = vxpose.xlu0.b32.cont [12/16] 0.0, 128
  %1884 = vxpose.xlu0.b32.cont [13/16] 0.0, 128
  %1885 = vxpose.xlu0.b32.cont [14/16] 0.0, 128
  %1886 = vxpose.xlu0.b32.cont [15/16] 0.0, 128
  %1887 = vxpose.xlu0.b32.end [16/16] 0.0, 128
  %v1888 = vpop.trf.xlu0
  %v1889 = vpop.trf.xlu0
  %v1890 = vpop.trf.xlu0
  %v1891 = vpop.trf.xlu0
  %v1892 = vpop.trf.xlu0
  %v1893 = vpop.trf.xlu0
  %v1894 = vpop.trf.xlu0
  %v1895 = vpop.trf.xlu0
  %v1896 = vpop.trf.xlu0
  %v1897 = vpop.trf.xlu0
  %v1898 = vpop.trf.xlu0
  %v1899 = vpop.trf.xlu0
  %v1900 = vpop.trf.xlu0
  %v1901 = vpop.trf.xlu0
  %v1902 = vpop.trf.xlu0
  %v1903 = vpop.trf.xlu0
  %1904 = vset.pattern.permute.xlu0 36
  %1905 = vperm.xlu0 %1904, %v1802
  %v1906 = vpop.permute.xlu0 %1905
  %1908 = vset.pattern.permute.xlu0 36
  %1909 = vperm.xlu0 %1908, %v1807
  %v1910 = vpop.permute.xlu0 %1909
  %1912 = vset.pattern.permute.xlu0 36
  %1913 = vperm.xlu0 %1912, %v1812
  %v1914 = vpop.permute.xlu0 %1913
  %1916 = vset.pattern.permute.xlu0 36
  %1917 = vperm.xlu0 %1916, %v1817
  %v1918 = vpop.permute.xlu0 %1917
  %1920 = vset.pattern.permute.xlu0 36
  %1921 = vperm.xlu0 %1920, %v1822
  %v1922 = vpop.permute.xlu0 %1921
  %1924 = vset.pattern.permute.xlu0 36
  %1925 = vperm.xlu0 %1924, %v1827
  %v1926 = vpop.permute.xlu0 %1925
  %1928 = vset.pattern.permute.xlu0 36
  %1929 = vperm.xlu0 %1928, %v1832
  %v1930 = vpop.permute.xlu0 %1929
  %1932 = vset.pattern.permute.xlu0 36
  %1933 = vperm.xlu0 %1932, %v1837
  %v1934 = vpop.permute.xlu0 %1933
  %v1936 = vlaneseq
  %v1937 = vshrl.u32 %v1936, 7
  %v1938 = vsub.s32 0, %v1937
  %v1939 = vrot.slane %v1888, %v1938
  %v1940 = vadd.f32 %v1906, %v1939
  %v1941 = vadd.f32 %v1910, %v1939
  %v1942 = vadd.f32 %v1914, %v1939
  %v1943 = vadd.f32 %v1918, %v1939
  %v1944 = vadd.f32 %v1922, %v1939
  %v1945 = vadd.f32 %v1926, %v1939
  %v1946 = vadd.f32 %v1930, %v1939
  %v1947 = vadd.f32 %v1934, %v1939
  %vm1948 = vcmp.gt.f32.partialorder %v1940, 0.0
  %vm1949 = vcmp.gt.f32.partialorder %v1941, 0.0
  %vm1950 = vcmp.gt.f32.partialorder %v1942, 0.0
  %vm1951 = vcmp.gt.f32.partialorder %v1943, 0.0
  %vm1952 = vcmp.gt.f32.partialorder %v1944, 0.0
  %vm1953 = vcmp.gt.f32.partialorder %v1945, 0.0
  %vm1954 = vcmp.gt.f32.partialorder %v1946, 0.0
  %vm1955 = vcmp.gt.f32.partialorder %v1947, 0.0
  %v1956 = vmul.f32 %v1940, 0.1
  %v1957 = vmul.f32 %v1941, 0.1
  %v1958 = vmul.f32 %v1942, 0.1
  %v1959 = vmul.f32 %v1943, 0.1
  %v1960 = vmul.f32 %v1944, 0.1
  %v1961 = vmul.f32 %v1945, 0.1
  %v1962 = vmul.f32 %v1946, 0.1
  %v1963 = vmul.f32 %v1947, 0.1
  %v1964 = vsel %vm1948, %v1940, %v1956
  %v1965 = vsel %vm1949, %v1941, %v1957
  %v1966 = vsel %vm1950, %v1942, %v1958
  %v1967 = vsel %vm1951, %v1943, %v1959
  %v1968 = vsel %vm1952, %v1944, %v1960
  %v1969 = vsel %vm1953, %v1945, %v1961
  %v1970 = vsel %vm1954, %v1946, %v1962
  %v1971 = vsel %vm1955, %v1947, %v1963
  %v1972 = vmul.f32 %v31, %v1964
  %v1973 = vmul.f32 %v32, %v1965
  %v1974 = vmul.f32 %v33, %v1966
  %v1975 = vmul.f32 %v34, %v1967
  %v1976 = vmul.f32 %v35, %v1968
  %v1977 = vmul.f32 %v36, %v1969
  %v1978 = vmul.f32 %v37, %v1970
  %v1979 = vmul.f32 %v38, %v1971
  %v1980 = vadd.f32 %v1972, %v23
  %v1981 = vadd.f32 %v1973, %v24
  %v1982 = vadd.f32 %v1974, %v25
  %v1983 = vadd.f32 %v1975, %v26
  %v1984 = vadd.f32 %v1976, %v27
  %v1985 = vadd.f32 %v1977, %v28
  %v1986 = vadd.f32 %v1978, %v29
  %v1987 = vadd.f32 %v1979, %v30
  %v1988 = vsel %vm329, %v1980, -inf
  %1989 = vmax.xlane.f32.xlu0 %v1988
  %v1990 = vpop.xlane.xlu0 %1989
  %v1991 = vsel %vm329, %v1981, -inf
  %1992 = vmax.xlane.f32.xlu0 %v1991
  %v1993 = vpop.xlane.xlu0 %1992
  %v1994 = vsel %vm329, %v1982, -inf
  %1995 = vmax.xlane.f32.xlu0 %v1994
  %v1996 = vpop.xlane.xlu0 %1995
  %v1997 = vsel %vm329, %v1983, -inf
  %1998 = vmax.xlane.f32.xlu0 %v1997
  %v1999 = vpop.xlane.xlu0 %1998
  %v2000 = vsel %vm329, %v1984, -inf
  %2001 = vmax.xlane.f32.xlu0 %v2000
  %v2002 = vpop.xlane.xlu0 %2001
  %v2003 = vsel %vm329, %v1985, -inf
  %2004 = vmax.xlane.f32.xlu0 %v2003
  %v2005 = vpop.xlane.xlu0 %2004
  %v2006 = vsel %vm329, %v1986, -inf
  %2007 = vmax.xlane.f32.xlu0 %v2006
  %v2008 = vpop.xlane.xlu0 %2007
  %v2009 = vsel %vm329, %v1987, -inf
  %2010 = vmax.xlane.f32.xlu0 %v2009
  %v2011 = vpop.xlane.xlu0 %2010
  %v2012 = vsub.f32 %v1980, %v1990
  %v2013 = vsub.f32 %v1981, %v1993
  %v2014 = vsub.f32 %v1982, %v1996
  %v2015 = vsub.f32 %v1983, %v1999
  %v2016 = vsub.f32 %v1984, %v2002
  %v2017 = vsub.f32 %v1985, %v2005
  %v2018 = vsub.f32 %v1986, %v2008
  %v2019 = vsub.f32 %v1987, %v2011
  %v2020 = vmul.f32 %v2012, 1.442695
  %v2021 = vpow.pop %v2020
  %v2022 = vmul.f32 %v2013, 1.442695
  %v2023 = vpow.pop %v2022
  %v2024 = vmul.f32 %v2014, 1.442695
  %v2025 = vpow.pop %v2024
  %v2026 = vmul.f32 %v2015, 1.442695
  %v2027 = vpow.pop %v2026
  %v2028 = vmul.f32 %v2016, 1.442695
  %v2029 = vpow.pop %v2028
  %v2030 = vmul.f32 %v2017, 1.442695
  %v2031 = vpow.pop %v2030
  %v2032 = vmul.f32 %v2018, 1.442695
  %v2033 = vpow.pop %v2032
  %v2034 = vmul.f32 %v2019, 1.442695
  %v2035 = vpow.pop %v2034
  %v2036 = vsel %vm329, %v2021, 0.0
  %2037 = vadd.xlane.f32.xlu0 %v2036
  %v2038 = vpop.xlane.xlu0 %2037
  %v2039 = vsel %vm329, %v2023, 0.0
  %2040 = vadd.xlane.f32.xlu0 %v2039
  %v2041 = vpop.xlane.xlu0 %2040
  %v2042 = vsel %vm329, %v2025, 0.0
  %2043 = vadd.xlane.f32.xlu0 %v2042
  %v2044 = vpop.xlane.xlu0 %2043
  %v2045 = vsel %vm329, %v2027, 0.0
  %2046 = vadd.xlane.f32.xlu0 %v2045
  %v2047 = vpop.xlane.xlu0 %2046
  %v2048 = vsel %vm329, %v2029, 0.0
  %2049 = vadd.xlane.f32.xlu0 %v2048
  %v2050 = vpop.xlane.xlu0 %2049
  %v2051 = vsel %vm329, %v2031, 0.0
  %2052 = vadd.xlane.f32.xlu0 %v2051
  %v2053 = vpop.xlane.xlu0 %2052
  %v2054 = vsel %vm329, %v2033, 0.0
  %2055 = vadd.xlane.f32.xlu0 %v2054
  %v2056 = vpop.xlane.xlu0 %2055
  %v2057 = vsel %vm329, %v2035, 0.0
  %2058 = vadd.xlane.f32.xlu0 %v2057
  %v2059 = vpop.xlane.xlu0 %2058
  %v2060 = vmax.f32 %v2038, 1e-20
  %v2061 = vmax.f32 %v2041, 1e-20
  %v2062 = vmax.f32 %v2044, 1e-20
  %v2063 = vmax.f32 %v2047, 1e-20
  %v2064 = vmax.f32 %v2050, 1e-20
  %v2065 = vmax.f32 %v2053, 1e-20
  %v2066 = vmax.f32 %v2056, 1e-20
  %v2067 = vmax.f32 %v2059, 1e-20
  %v2068 = vrcp.pop %v2060
  %v2069 = vrcp.pop %v2061
  %v2070 = vrcp.pop %v2062
  %v2071 = vrcp.pop %v2063
  %v2072 = vrcp.pop %v2064
  %v2073 = vrcp.pop %v2065
  %v2074 = vrcp.pop %v2066
  %v2075 = vrcp.pop %v2067
  %v2076 = vmul.f32 %v2021, %v2068
  %v2077 = vmul.f32 %v2023, %v2069
  %v2078 = vmul.f32 %v2025, %v2070
  %v2079 = vmul.f32 %v2027, %v2071
  %v2080 = vmul.f32 %v2029, %v2072
  %v2081 = vmul.f32 %v2031, %v2073
  %v2082 = vmul.f32 %v2033, %v2074
  %v2083 = vmul.f32 %v2035, %v2075
  %v2085 = vsel %vm329, %v2076, 0
  %v2088 = vsel %vm329, %v2077, 0
  %v2091 = vsel %vm329, %v2078, 0
  %v2094 = vsel %vm329, %v2079, 0
  %v2097 = vsel %vm329, %v2080, 0
  %v2100 = vsel %vm329, %v2081, 0
  %v2103 = vsel %vm329, %v2082, 0
  %v2106 = vsel %vm329, %v2083, 0
  %2108 = vmatprep.subr.mxu0 0.0
  %2109 = vmatpush1.msra.mxu0 0.0
  %2110 = vmatprep.subr.mxu0 0.0
  %2111 = vmatpush1.msra.mxu0 0.0
  %2112 = vmatprep.subr.mxu0 0.0
  %2113 = vmatpush1.msra.mxu0 0.0
  %2114 = vmatprep.subr.mxu0 0.0
  %2115 = vmatpush1.msra.mxu0 0.0
  %2116 = vmatprep.subr.mxu0 0.0
  %2117 = vmatpush1.msra.mxu0 0.0
  %2118 = vmatprep.subr.mxu0 0.0
  %2119 = vmatpush1.msra.mxu0 0.0
  %2120 = vmatprep.subr.mxu0 0.0
  %2121 = vmatpush1.msra.mxu0 0.0
  %2122 = vmatprep.subr.mxu0 0.0
  %2123 = vmatpush1.msra.mxu0 0.0
  %2124 = vmatprep.subr.mxu0 0.0
  %2125 = vmatpush1.msra.mxu0 %v1837
  %2126 = vmatprep.subr.mxu0 0.0
  %2127 = vmatpush1.msra.mxu0 %v1832
  %2128 = vmatprep.subr.mxu0 0.0
  %2129 = vmatpush1.msra.mxu0 %v1827
  %2130 = vmatprep.subr.mxu0 0.0
  %2131 = vmatpush1.msra.mxu0 %v1822
  %2132 = vmatprep.subr.mxu0 0.0
  %2133 = vmatpush1.msra.mxu0 %v1817
  %2134 = vmatprep.subr.mxu0 0.0
  %2135 = vmatpush1.msra.mxu0 %v1812
  %2136 = vmatprep.subr.mxu0 0.0
  %2137 = vmatpush1.msra.mxu0 %v1807
  %2138 = vmatprep.subr.mxu0 0.0
  %2139 = vmatpush1.msra.mxu0 %v1802
  %2140 = vmatprep.subr.mxu0 0.0
  %2141 = vmatpush2.msra.mxu0 0.0
  %2142 = vmatprep.subr.mxu0 0.0
  %2143 = vmatpush2.msra.mxu0 0.0
  %2144 = vmatprep.subr.mxu0 0.0
  %2145 = vmatpush2.msra.mxu0 0.0
  %2146 = vmatprep.subr.mxu0 0.0
  %2147 = vmatpush2.msra.mxu0 0.0
  %2148 = vmatprep.subr.mxu0 0.0
  %2149 = vmatpush2.msra.mxu0 0.0
  %2150 = vmatprep.subr.mxu0 0.0
  %2151 = vmatpush2.msra.mxu0 0.0
  %2152 = vmatprep.subr.mxu0 0.0
  %2153 = vmatpush2.msra.mxu0 0.0
  %2154 = vmatprep.subr.mxu0 0.0
  %2155 = vmatpush2.msra.mxu0 0.0
  %2156 = vmatprep.subr.mxu0 0.0
  %2157 = vmatpush2.msra.mxu0 0.0
  %2158 = vmatprep.subr.mxu0 0.0
  %2159 = vmatpush2.msra.mxu0 0.0
  %2160 = vmatprep.subr.mxu0 0.0
  %2161 = vmatpush2.msra.mxu0 0.0
  %2162 = vmatprep.subr.mxu0 0.0
  %2163 = vmatpush2.msra.mxu0 0.0
  %2164 = vmatprep.subr.mxu0 0.0
  %2165 = vmatpush2.msra.mxu0 0.0
  %2166 = vmatprep.subr.mxu0 0.0
  %2167 = vmatpush2.msra.mxu0 0.0
  %2168 = vmatprep.subr.mxu0 0.0
  %2169 = vmatpush2.msra.mxu0 0.0
  %2170 = vmatprep.subr.mxu0 0.0
  %2171 = vmatpush2.msra.mxu0 0.0
  %2172 = vmatprep.mubr.f32.mxu0 0.0
  %2173 = vmatmul.mubr.f32.gmra.mxu0 %v2085
  %v2174 = vpop.f32.mrf.mxu0
  %v2175 = vadd.f32 0.0, %v2174
  %v2176 = vpop.f32.mrf.mxu0
  %2177 = vmatprep.mubr.f32.mxu0 0.0
  %2178 = vmatmul.mubr.f32.gmra.mxu0 %v2088
  %v2179 = vpop.f32.mrf.mxu0
  %v2180 = vadd.f32 0.0, %v2179
  %v2181 = vpop.f32.mrf.mxu0
  %2182 = vmatprep.mubr.f32.mxu0 0.0
  %2183 = vmatmul.mubr.f32.gmra.mxu0 %v2091
  %v2184 = vpop.f32.mrf.mxu0
  %v2185 = vadd.f32 0.0, %v2184
  %v2186 = vpop.f32.mrf.mxu0
  %2187 = vmatprep.mubr.f32.mxu0 0.0
  %2188 = vmatmul.mubr.f32.gmra.mxu0 %v2094
  %v2189 = vpop.f32.mrf.mxu0
  %v2190 = vadd.f32 0.0, %v2189
  %v2191 = vpop.f32.mrf.mxu0
  %2192 = vmatprep.mubr.f32.mxu0 0.0
  %2193 = vmatmul.mubr.f32.gmra.mxu0 %v2097
  %v2194 = vpop.f32.mrf.mxu0
  %v2195 = vadd.f32 0.0, %v2194
  %v2196 = vpop.f32.mrf.mxu0
  %2197 = vmatprep.mubr.f32.mxu0 0.0
  %2198 = vmatmul.mubr.f32.gmra.mxu0 %v2100
  %v2199 = vpop.f32.mrf.mxu0
  %v2200 = vadd.f32 0.0, %v2199
  %v2201 = vpop.f32.mrf.mxu0
  %2202 = vmatprep.mubr.f32.mxu0 0.0
  %2203 = vmatmul.mubr.f32.gmra.mxu0 %v2103
  %v2204 = vpop.f32.mrf.mxu0
  %v2205 = vadd.f32 0.0, %v2204
  %v2206 = vpop.f32.mrf.mxu0
  %2207 = vmatprep.mubr.f32.mxu0 0.0
  %2208 = vmatmul.mubr.f32.gmra.mxu0 %v2106
  %v2209 = vpop.f32.mrf.mxu0
  %v2210 = vadd.f32 0.0, %v2209
  %v2211 = vpop.f32.mrf.mxu0
  %2212 = vdwg.mxu0
  %2213 = vst.msk [vmem:[#allocation2] sm:$0xff] %vm555, %v2175
  %2214 = vst.msk [vmem:[#allocation2 + $0x8] sm:$0xff] %vm555, %v2180
  %2215 = vst.msk [vmem:[#allocation2 + $0x10] sm:$0xff] %vm555, %v2185
  %2216 = vst.msk [vmem:[#allocation2 + $0x18] sm:$0xff] %vm555, %v2190
  %2217 = vst.msk [vmem:[#allocation2 + $0x20] sm:$0xff] %vm555, %v2195
  %2218 = vst.msk [vmem:[#allocation2 + $0x28] sm:$0xff] %vm555, %v2200
  %2219 = vst.msk [vmem:[#allocation2 + $0x30] sm:$0xff] %vm555, %v2205
  %2220 = vst.msk [vmem:[#allocation2 + $0x38] sm:$0xff] %vm555, %v2210
  %2221 = vset.pattern.permute.xlu0 37
  %2222 = vperm.xlu0 %2221, %v1802
  %v2223 = vpop.permute.xlu0 %2222
  %2225 = vset.pattern.permute.xlu0 37
  %2226 = vperm.xlu0 %2225, %v1807
  %v2227 = vpop.permute.xlu0 %2226
  %2229 = vset.pattern.permute.xlu0 37
  %2230 = vperm.xlu0 %2229, %v1812
  %v2231 = vpop.permute.xlu0 %2230
  %2233 = vset.pattern.permute.xlu0 37
  %2234 = vperm.xlu0 %2233, %v1817
  %v2235 = vpop.permute.xlu0 %2234
  %2237 = vset.pattern.permute.xlu0 37
  %2238 = vperm.xlu0 %2237, %v1822
  %v2239 = vpop.permute.xlu0 %2238
  %2241 = vset.pattern.permute.xlu0 37
  %2242 = vperm.xlu0 %2241, %v1827
  %v2243 = vpop.permute.xlu0 %2242
  %2245 = vset.pattern.permute.xlu0 37
  %2246 = vperm.xlu0 %2245, %v1832
  %v2247 = vpop.permute.xlu0 %2246
  %2249 = vset.pattern.permute.xlu0 37
  %2250 = vperm.xlu0 %2249, %v1837
  %v2251 = vpop.permute.xlu0 %2250
  %v2253 = vlaneseq
  %v2254 = vshrl.u32 %v2253, 7
  %v2255 = vsub.s32 1, %v2254
  %v2256 = vrot.slane %v1888, %v2255
  %v2257 = vadd.f32 %v2223, %v2256
  %v2258 = vadd.f32 %v2227, %v2256
  %v2259 = vadd.f32 %v2231, %v2256
  %v2260 = vadd.f32 %v2235, %v2256
  %v2261 = vadd.f32 %v2239, %v2256
  %v2262 = vadd.f32 %v2243, %v2256
  %v2263 = vadd.f32 %v2247, %v2256
  %v2264 = vadd.f32 %v2251, %v2256
  %vm2265 = vcmp.gt.f32.partialorder %v2257, 0.0
  %vm2266 = vcmp.gt.f32.partialorder %v2258, 0.0
  %vm2267 = vcmp.gt.f32.partialorder %v2259, 0.0
  %vm2268 = vcmp.gt.f32.partialorder %v2260, 0.0
  %vm2269 = vcmp.gt.f32.partialorder %v2261, 0.0
  %vm2270 = vcmp.gt.f32.partialorder %v2262, 0.0
  %vm2271 = vcmp.gt.f32.partialorder %v2263, 0.0
  %vm2272 = vcmp.gt.f32.partialorder %v2264, 0.0
  %v2273 = vmul.f32 %v2257, 0.1
  %v2274 = vmul.f32 %v2258, 0.1
  %v2275 = vmul.f32 %v2259, 0.1
  %v2276 = vmul.f32 %v2260, 0.1
  %v2277 = vmul.f32 %v2261, 0.1
  %v2278 = vmul.f32 %v2262, 0.1
  %v2279 = vmul.f32 %v2263, 0.1
  %v2280 = vmul.f32 %v2264, 0.1
  %v2281 = vsel %vm2265, %v2257, %v2273
  %v2282 = vsel %vm2266, %v2258, %v2274
  %v2283 = vsel %vm2267, %v2259, %v2275
  %v2284 = vsel %vm2268, %v2260, %v2276
  %v2285 = vsel %vm2269, %v2261, %v2277
  %v2286 = vsel %vm2270, %v2262, %v2278
  %v2287 = vsel %vm2271, %v2263, %v2279
  %v2288 = vsel %vm2272, %v2264, %v2280
  %v2289 = vmul.f32 %v31, %v2281
  %v2290 = vmul.f32 %v32, %v2282
  %v2291 = vmul.f32 %v33, %v2283
  %v2292 = vmul.f32 %v34, %v2284
  %v2293 = vmul.f32 %v35, %v2285
  %v2294 = vmul.f32 %v36, %v2286
  %v2295 = vmul.f32 %v37, %v2287
  %v2296 = vmul.f32 %v38, %v2288
  %v2297 = vadd.f32 %v2289, %v23
  %v2298 = vadd.f32 %v2290, %v24
  %v2299 = vadd.f32 %v2291, %v25
  %v2300 = vadd.f32 %v2292, %v26
  %v2301 = vadd.f32 %v2293, %v27
  %v2302 = vadd.f32 %v2294, %v28
  %v2303 = vadd.f32 %v2295, %v29
  %v2304 = vadd.f32 %v2296, %v30
  %v2305 = vsel %vm329, %v2297, -inf
  %2306 = vmax.xlane.f32.xlu0 %v2305
  %v2307 = vpop.xlane.xlu0 %2306
  %v2308 = vsel %vm329, %v2298, -inf
  %2309 = vmax.xlane.f32.xlu0 %v2308
  %v2310 = vpop.xlane.xlu0 %2309
  %v2311 = vsel %vm329, %v2299, -inf
  %2312 = vmax.xlane.f32.xlu0 %v2311
  %v2313 = vpop.xlane.xlu0 %2312
  %v2314 = vsel %vm329, %v2300, -inf
  %2315 = vmax.xlane.f32.xlu0 %v2314
  %v2316 = vpop.xlane.xlu0 %2315
  %v2317 = vsel %vm329, %v2301, -inf
  %2318 = vmax.xlane.f32.xlu0 %v2317
  %v2319 = vpop.xlane.xlu0 %2318
  %v2320 = vsel %vm329, %v2302, -inf
  %2321 = vmax.xlane.f32.xlu0 %v2320
  %v2322 = vpop.xlane.xlu0 %2321
  %v2323 = vsel %vm329, %v2303, -inf
  %2324 = vmax.xlane.f32.xlu0 %v2323
  %v2325 = vpop.xlane.xlu0 %2324
  %v2326 = vsel %vm329, %v2304, -inf
  %2327 = vmax.xlane.f32.xlu0 %v2326
  %v2328 = vpop.xlane.xlu0 %2327
  %v2329 = vsub.f32 %v2297, %v2307
  %v2330 = vsub.f32 %v2298, %v2310
  %v2331 = vsub.f32 %v2299, %v2313
  %v2332 = vsub.f32 %v2300, %v2316
  %v2333 = vsub.f32 %v2301, %v2319
  %v2334 = vsub.f32 %v2302, %v2322
  %v2335 = vsub.f32 %v2303, %v2325
  %v2336 = vsub.f32 %v2304, %v2328
  %v2337 = vmul.f32 %v2329, 1.442695
  %v2338 = vpow.pop %v2337
  %v2339 = vmul.f32 %v2330, 1.442695
  %v2340 = vpow.pop %v2339
  %v2341 = vmul.f32 %v2331, 1.442695
  %v2342 = vpow.pop %v2341
  %v2343 = vmul.f32 %v2332, 1.442695
  %v2344 = vpow.pop %v2343
  %v2345 = vmul.f32 %v2333, 1.442695
  %v2346 = vpow.pop %v2345
  %v2347 = vmul.f32 %v2334, 1.442695
  %v2348 = vpow.pop %v2347
  %v2349 = vmul.f32 %v2335, 1.442695
  %v2350 = vpow.pop %v2349
  %v2351 = vmul.f32 %v2336, 1.442695
  %v2352 = vpow.pop %v2351
  %v2353 = vsel %vm329, %v2338, 0.0
  %2354 = vadd.xlane.f32.xlu0 %v2353
  %v2355 = vpop.xlane.xlu0 %2354
  %v2356 = vsel %vm329, %v2340, 0.0
  %2357 = vadd.xlane.f32.xlu0 %v2356
  %v2358 = vpop.xlane.xlu0 %2357
  %v2359 = vsel %vm329, %v2342, 0.0
  %2360 = vadd.xlane.f32.xlu0 %v2359
  %v2361 = vpop.xlane.xlu0 %2360
  %v2362 = vsel %vm329, %v2344, 0.0
  %2363 = vadd.xlane.f32.xlu0 %v2362
  %v2364 = vpop.xlane.xlu0 %2363
  %v2365 = vsel %vm329, %v2346, 0.0
  %2366 = vadd.xlane.f32.xlu0 %v2365
  %v2367 = vpop.xlane.xlu0 %2366
  %v2368 = vsel %vm329, %v2348, 0.0
  %2369 = vadd.xlane.f32.xlu0 %v2368
  %v2370 = vpop.xlane.xlu0 %2369
  %v2371 = vsel %vm329, %v2350, 0.0
  %2372 = vadd.xlane.f32.xlu0 %v2371
  %v2373 = vpop.xlane.xlu0 %2372
  %v2374 = vsel %vm329, %v2352, 0.0
  %2375 = vadd.xlane.f32.xlu0 %v2374
  %v2376 = vpop.xlane.xlu0 %2375
  %v2377 = vmax.f32 %v2355, 1e-20
  %v2378 = vmax.f32 %v2358, 1e-20
  %v2379 = vmax.f32 %v2361, 1e-20
  %v2380 = vmax.f32 %v2364, 1e-20
  %v2381 = vmax.f32 %v2367, 1e-20
  %v2382 = vmax.f32 %v2370, 1e-20
  %v2383 = vmax.f32 %v2373, 1e-20
  %v2384 = vmax.f32 %v2376, 1e-20
  %v2385 = vrcp.pop %v2377
  %v2386 = vrcp.pop %v2378
  %v2387 = vrcp.pop %v2379
  %v2388 = vrcp.pop %v2380
  %v2389 = vrcp.pop %v2381
  %v2390 = vrcp.pop %v2382
  %v2391 = vrcp.pop %v2383
  %v2392 = vrcp.pop %v2384
  %v2393 = vmul.f32 %v2338, %v2385
  %v2394 = vmul.f32 %v2340, %v2386
  %v2395 = vmul.f32 %v2342, %v2387
  %v2396 = vmul.f32 %v2344, %v2388
  %v2397 = vmul.f32 %v2346, %v2389
  %v2398 = vmul.f32 %v2348, %v2390
  %v2399 = vmul.f32 %v2350, %v2391
  %v2400 = vmul.f32 %v2352, %v2392
  %2401 = vrot.lane.b32.xlu0 %v1802, 120
  %v2402 = vpop.permute.xlu0 %2401
  %2403 = vrot.lane.b32.xlu0 %v1807, 120
  %v2404 = vpop.permute.xlu0 %2403
  %2405 = vrot.lane.b32.xlu0 %v1812, 120
  %v2406 = vpop.permute.xlu0 %2405
  %2407 = vrot.lane.b32.xlu0 %v1817, 120
  %v2408 = vpop.permute.xlu0 %2407
  %2409 = vrot.lane.b32.xlu0 %v1822, 120
  %v2410 = vpop.permute.xlu0 %2409
  %2411 = vrot.lane.b32.xlu0 %v1827, 120
  %v2412 = vpop.permute.xlu0 %2411
  %2413 = vrot.lane.b32.xlu0 %v1832, 120
  %v2414 = vpop.permute.xlu0 %2413
  %2415 = vrot.lane.b32.xlu0 %v1837, 120
  %v2416 = vpop.permute.xlu0 %2415
  %v2426 = vsel %vm329, %v2393, 0
  %v2429 = vsel %vm329, %v2394, 0
  %v2432 = vsel %vm329, %v2395, 0
  %v2435 = vsel %vm329, %v2396, 0
  %v2438 = vsel %vm329, %v2397, 0
  %v2441 = vsel %vm329, %v2398, 0
  %v2444 = vsel %vm329, %v2399, 0
  %v2447 = vsel %vm329, %v2400, 0
  %2449 = vmatprep.subr.mxu0 0.0
  %2450 = vmatpush1.msra.mxu0 0.0
  %2451 = vmatprep.subr.mxu0 0.0
  %2452 = vmatpush1.msra.mxu0 0.0
  %2453 = vmatprep.subr.mxu0 0.0
  %2454 = vmatpush1.msra.mxu0 0.0
  %2455 = vmatprep.subr.mxu0 0.0
  %2456 = vmatpush1.msra.mxu0 0.0
  %2457 = vmatprep.subr.mxu0 0.0
  %2458 = vmatpush1.msra.mxu0 0.0
  %2459 = vmatprep.subr.mxu0 0.0
  %2460 = vmatpush1.msra.mxu0 0.0
  %2461 = vmatprep.subr.mxu0 0.0
  %2462 = vmatpush1.msra.mxu0 0.0
  %2463 = vmatprep.subr.mxu0 0.0
  %2464 = vmatpush1.msra.mxu0 0.0
  %2465 = vmatprep.subr.mxu0 0.0
  %2466 = vmatpush1.msra.mxu0 %v2416
  %2467 = vmatprep.subr.mxu0 0.0
  %2468 = vmatpush1.msra.mxu0 %v2414
  %2469 = vmatprep.subr.mxu0 0.0
  %2470 = vmatpush1.msra.mxu0 %v2412
  %2471 = vmatprep.subr.mxu0 0.0
  %2472 = vmatpush1.msra.mxu0 %v2410
  %2473 = vmatprep.subr.mxu0 0.0
  %2474 = vmatpush1.msra.mxu0 %v2408
  %2475 = vmatprep.subr.mxu0 0.0
  %2476 = vmatpush1.msra.mxu0 %v2406
  %2477 = vmatprep.subr.mxu0 0.0
  %2478 = vmatpush1.msra.mxu0 %v2404
  %2479 = vmatprep.subr.mxu0 0.0
  %2480 = vmatpush1.msra.mxu0 %v2402
  %2481 = vmatprep.subr.mxu0 0.0
  %2482 = vmatpush2.msra.mxu0 0.0
  %2483 = vmatprep.subr.mxu0 0.0
  %2484 = vmatpush2.msra.mxu0 0.0
  %2485 = vmatprep.subr.mxu0 0.0
  %2486 = vmatpush2.msra.mxu0 0.0
  %2487 = vmatprep.subr.mxu0 0.0
  %2488 = vmatpush2.msra.mxu0 0.0
  %2489 = vmatprep.subr.mxu0 0.0
  %2490 = vmatpush2.msra.mxu0 0.0
  %2491 = vmatprep.subr.mxu0 0.0
  %2492 = vmatpush2.msra.mxu0 0.0
  %2493 = vmatprep.subr.mxu0 0.0
  %2494 = vmatpush2.msra.mxu0 0.0
  %2495 = vmatprep.subr.mxu0 0.0
  %2496 = vmatpush2.msra.mxu0 0.0
  %2497 = vmatprep.subr.mxu0 0.0
  %2498 = vmatpush2.msra.mxu0 0.0
  %2499 = vmatprep.subr.mxu0 0.0
  %2500 = vmatpush2.msra.mxu0 0.0
  %2501 = vmatprep.subr.mxu0 0.0
  %2502 = vmatpush2.msra.mxu0 0.0
  %2503 = vmatprep.subr.mxu0 0.0
  %2504 = vmatpush2.msra.mxu0 0.0
  %2505 = vmatprep.subr.mxu0 0.0
  %2506 = vmatpush2.msra.mxu0 0.0
  %2507 = vmatprep.subr.mxu0 0.0
  %2508 = vmatpush2.msra.mxu0 0.0
  %2509 = vmatprep.subr.mxu0 0.0
  %2510 = vmatpush2.msra.mxu0 0.0
  %2511 = vmatprep.subr.mxu0 0.0
  %2512 = vmatpush2.msra.mxu0 0.0
  %2513 = vmatprep.mubr.f32.mxu0 0.0
  %2514 = vmatmul.mubr.f32.gmra.mxu0 %v2426
  %v2515 = vpop.f32.mrf.mxu0
  %v2516 = vadd.f32 0.0, %v2515
  %v2517 = vpop.f32.mrf.mxu0
  %2518 = vmatprep.mubr.f32.mxu0 0.0
  %2519 = vmatmul.mubr.f32.gmra.mxu0 %v2429
  %v2520 = vpop.f32.mrf.mxu0
  %v2521 = vadd.f32 0.0, %v2520
  %v2522 = vpop.f32.mrf.mxu0
  %2523 = vmatprep.mubr.f32.mxu0 0.0
  %2524 = vmatmul.mubr.f32.gmra.mxu0 %v2432
  %v2525 = vpop.f32.mrf.mxu0
  %v2526 = vadd.f32 0.0, %v2525
  %v2527 = vpop.f32.mrf.mxu0
  %2528 = vmatprep.mubr.f32.mxu0 0.0
  %2529 = vmatmul.mubr.f32.gmra.mxu0 %v2435
  %v2530 = vpop.f32.mrf.mxu0
  %v2531 = vadd.f32 0.0, %v2530
  %v2532 = vpop.f32.mrf.mxu0
  %2533 = vmatprep.mubr.f32.mxu0 0.0
  %2534 = vmatmul.mubr.f32.gmra.mxu0 %v2438
  %v2535 = vpop.f32.mrf.mxu0
  %v2536 = vadd.f32 0.0, %v2535
  %v2537 = vpop.f32.mrf.mxu0
  %2538 = vmatprep.mubr.f32.mxu0 0.0
  %2539 = vmatmul.mubr.f32.gmra.mxu0 %v2441
  %v2540 = vpop.f32.mrf.mxu0
  %v2541 = vadd.f32 0.0, %v2540
  %v2542 = vpop.f32.mrf.mxu0
  %2543 = vmatprep.mubr.f32.mxu0 0.0
  %2544 = vmatmul.mubr.f32.gmra.mxu0 %v2444
  %v2545 = vpop.f32.mrf.mxu0
  %v2546 = vadd.f32 0.0, %v2545
  %v2547 = vpop.f32.mrf.mxu0
  %2548 = vmatprep.mubr.f32.mxu0 0.0
  %2549 = vmatmul.mubr.f32.gmra.mxu0 %v2447
  %v2550 = vpop.f32.mrf.mxu0
  %v2551 = vadd.f32 0.0, %v2550
  %v2552 = vpop.f32.mrf.mxu0
  %2553 = vdwg.mxu0
  %2562 = vrot.lane.b32.xlu0 %v2516, 8
  %v2563 = vpop.permute.xlu0 %2562
  %2564 = vrot.lane.b32.xlu0 %v2521, 8
  %v2565 = vpop.permute.xlu0 %2564
  %2566 = vrot.lane.b32.xlu0 %v2526, 8
  %v2567 = vpop.permute.xlu0 %2566
  %2568 = vrot.lane.b32.xlu0 %v2531, 8
  %v2569 = vpop.permute.xlu0 %2568
  %2570 = vrot.lane.b32.xlu0 %v2536, 8
  %v2571 = vpop.permute.xlu0 %2570
  %2572 = vrot.lane.b32.xlu0 %v2541, 8
  %v2573 = vpop.permute.xlu0 %2572
  %2574 = vrot.lane.b32.xlu0 %v2546, 8
  %v2575 = vpop.permute.xlu0 %2574
  %2576 = vrot.lane.b32.xlu0 %v2551, 8
  %v2577 = vpop.permute.xlu0 %2576
  %2586 = vst.msk [vmem:[#allocation2] sm:$0xff] %vm929, %v2563
  %2587 = vst.msk [vmem:[#allocation2 + $0x8] sm:$0xff] %vm929, %v2565
  %2588 = vst.msk [vmem:[#allocation2 + $0x10] sm:$0xff] %vm929, %v2567
  %2589 = vst.msk [vmem:[#allocation2 + $0x18] sm:$0xff] %vm929, %v2569
  %2590 = vst.msk [vmem:[#allocation2 + $0x20] sm:$0xff] %vm929, %v2571
  %2591 = vst.msk [vmem:[#allocation2 + $0x28] sm:$0xff] %vm929, %v2573
  %2592 = vst.msk [vmem:[#allocation2 + $0x30] sm:$0xff] %vm929, %v2575
  %2593 = vst.msk [vmem:[#allocation2 + $0x38] sm:$0xff] %vm929, %v2577
  %2594 = vset.pattern.permute.xlu0 38
  %2595 = vperm.xlu0 %2594, %v1802
  %v2596 = vpop.permute.xlu0 %2595
  %2598 = vset.pattern.permute.xlu0 38
  %2599 = vperm.xlu0 %2598, %v1807
  %v2600 = vpop.permute.xlu0 %2599
  %2602 = vset.pattern.permute.xlu0 38
  %2603 = vperm.xlu0 %2602, %v1812
  %v2604 = vpop.permute.xlu0 %2603
  %2606 = vset.pattern.permute.xlu0 38
  %2607 = vperm.xlu0 %2606, %v1817
  %v2608 = vpop.permute.xlu0 %2607
  %2610 = vset.pattern.permute.xlu0 38
  %2611 = vperm.xlu0 %2610, %v1822
  %v2612 = vpop.permute.xlu0 %2611
  %2614 = vset.pattern.permute.xlu0 38
  %2615 = vperm.xlu0 %2614, %v1827
  %v2616 = vpop.permute.xlu0 %2615
  %2618 = vset.pattern.permute.xlu0 38
  %2619 = vperm.xlu0 %2618, %v1832
  %v2620 = vpop.permute.xlu0 %2619
  %2622 = vset.pattern.permute.xlu0 38
  %2623 = vperm.xlu0 %2622, %v1837
  %v2624 = vpop.permute.xlu0 %2623
  %v2626 = vlaneseq
  %v2627 = vshrl.u32 %v2626, 7
  %v2628 = vsub.s32 2, %v2627
  %v2629 = vrot.slane %v1888, %v2628
  %v2630 = vadd.f32 %v2596, %v2629
  %v2631 = vadd.f32 %v2600, %v2629
  %v2632 = vadd.f32 %v2604, %v2629
  %v2633 = vadd.f32 %v2608, %v2629
  %v2634 = vadd.f32 %v2612, %v2629
  %v2635 = vadd.f32 %v2616, %v2629
  %v2636 = vadd.f32 %v2620, %v2629
  %v2637 = vadd.f32 %v2624, %v2629
  %vm2638 = vcmp.gt.f32.partialorder %v2630, 0.0
  %vm2639 = vcmp.gt.f32.partialorder %v2631, 0.0
  %vm2640 = vcmp.gt.f32.partialorder %v2632, 0.0
  %vm2641 = vcmp.gt.f32.partialorder %v2633, 0.0
  %vm2642 = vcmp.gt.f32.partialorder %v2634, 0.0
  %vm2643 = vcmp.gt.f32.partialorder %v2635, 0.0
  %vm2644 = vcmp.gt.f32.partialorder %v2636, 0.0
  %vm2645 = vcmp.gt.f32.partialorder %v2637, 0.0
  %v2646 = vmul.f32 %v2630, 0.1
  %v2647 = vmul.f32 %v2631, 0.1
  %v2648 = vmul.f32 %v2632, 0.1
  %v2649 = vmul.f32 %v2633, 0.1
  %v2650 = vmul.f32 %v2634, 0.1
  %v2651 = vmul.f32 %v2635, 0.1
  %v2652 = vmul.f32 %v2636, 0.1
  %v2653 = vmul.f32 %v2637, 0.1
  %v2654 = vsel %vm2638, %v2630, %v2646
  %v2655 = vsel %vm2639, %v2631, %v2647
  %v2656 = vsel %vm2640, %v2632, %v2648
  %v2657 = vsel %vm2641, %v2633, %v2649
  %v2658 = vsel %vm2642, %v2634, %v2650
  %v2659 = vsel %vm2643, %v2635, %v2651
  %v2660 = vsel %vm2644, %v2636, %v2652
  %v2661 = vsel %vm2645, %v2637, %v2653
  %v2662 = vmul.f32 %v31, %v2654
  %v2663 = vmul.f32 %v32, %v2655
  %v2664 = vmul.f32 %v33, %v2656
  %v2665 = vmul.f32 %v34, %v2657
  %v2666 = vmul.f32 %v35, %v2658
  %v2667 = vmul.f32 %v36, %v2659
  %v2668 = vmul.f32 %v37, %v2660
  %v2669 = vmul.f32 %v38, %v2661
  %v2670 = vadd.f32 %v2662, %v23
  %v2671 = vadd.f32 %v2663, %v24
  %v2672 = vadd.f32 %v2664, %v25
  %v2673 = vadd.f32 %v2665, %v26
  %v2674 = vadd.f32 %v2666, %v27
  %v2675 = vadd.f32 %v2667, %v28
  %v2676 = vadd.f32 %v2668, %v29
  %v2677 = vadd.f32 %v2669, %v30
  %v2678 = vsel %vm329, %v2670, -inf
  %2679 = vmax.xlane.f32.xlu0 %v2678
  %v2680 = vpop.xlane.xlu0 %2679
  %v2681 = vsel %vm329, %v2671, -inf
  %2682 = vmax.xlane.f32.xlu0 %v2681
  %v2683 = vpop.xlane.xlu0 %2682
  %v2684 = vsel %vm329, %v2672, -inf
  %2685 = vmax.xlane.f32.xlu0 %v2684
  %v2686 = vpop.xlane.xlu0 %2685
  %v2687 = vsel %vm329, %v2673, -inf
  %2688 = vmax.xlane.f32.xlu0 %v2687
  %v2689 = vpop.xlane.xlu0 %2688
  %v2690 = vsel %vm329, %v2674, -inf
  %2691 = vmax.xlane.f32.xlu0 %v2690
  %v2692 = vpop.xlane.xlu0 %2691
  %v2693 = vsel %vm329, %v2675, -inf
  %2694 = vmax.xlane.f32.xlu0 %v2693
  %v2695 = vpop.xlane.xlu0 %2694
  %v2696 = vsel %vm329, %v2676, -inf
  %2697 = vmax.xlane.f32.xlu0 %v2696
  %v2698 = vpop.xlane.xlu0 %2697
  %v2699 = vsel %vm329, %v2677, -inf
  %2700 = vmax.xlane.f32.xlu0 %v2699
  %v2701 = vpop.xlane.xlu0 %2700
  %v2702 = vsub.f32 %v2670, %v2680
  %v2703 = vsub.f32 %v2671, %v2683
  %v2704 = vsub.f32 %v2672, %v2686
  %v2705 = vsub.f32 %v2673, %v2689
  %v2706 = vsub.f32 %v2674, %v2692
  %v2707 = vsub.f32 %v2675, %v2695
  %v2708 = vsub.f32 %v2676, %v2698
  %v2709 = vsub.f32 %v2677, %v2701
  %v2710 = vmul.f32 %v2702, 1.442695
  %v2711 = vpow.pop %v2710
  %v2712 = vmul.f32 %v2703, 1.442695
  %v2713 = vpow.pop %v2712
  %v2714 = vmul.f32 %v2704, 1.442695
  %v2715 = vpow.pop %v2714
  %v2716 = vmul.f32 %v2705, 1.442695
  %v2717 = vpow.pop %v2716
  %v2718 = vmul.f32 %v2706, 1.442695
  %v2719 = vpow.pop %v2718
  %v2720 = vmul.f32 %v2707, 1.442695
  %v2721 = vpow.pop %v2720
  %v2722 = vmul.f32 %v2708, 1.442695
  %v2723 = vpow.pop %v2722
  %v2724 = vmul.f32 %v2709, 1.442695
  %v2725 = vpow.pop %v2724
  %v2726 = vsel %vm329, %v2711, 0.0
  %2727 = vadd.xlane.f32.xlu0 %v2726
  %v2728 = vpop.xlane.xlu0 %2727
  %v2729 = vsel %vm329, %v2713, 0.0
  %2730 = vadd.xlane.f32.xlu0 %v2729
  %v2731 = vpop.xlane.xlu0 %2730
  %v2732 = vsel %vm329, %v2715, 0.0
  %2733 = vadd.xlane.f32.xlu0 %v2732
  %v2734 = vpop.xlane.xlu0 %2733
  %v2735 = vsel %vm329, %v2717, 0.0
  %2736 = vadd.xlane.f32.xlu0 %v2735
  %v2737 = vpop.xlane.xlu0 %2736
  %v2738 = vsel %vm329, %v2719, 0.0
  %2739 = vadd.xlane.f32.xlu0 %v2738
  %v2740 = vpop.xlane.xlu0 %2739
  %v2741 = vsel %vm329, %v2721, 0.0
  %2742 = vadd.xlane.f32.xlu0 %v2741
  %v2743 = vpop.xlane.xlu0 %2742
  %v2744 = vsel %vm329, %v2723, 0.0
  %2745 = vadd.xlane.f32.xlu0 %v2744
  %v2746 = vpop.xlane.xlu0 %2745
  %v2747 = vsel %vm329, %v2725, 0.0
  %2748 = vadd.xlane.f32.xlu0 %v2747
  %v2749 = vpop.xlane.xlu0 %2748
  %v2750 = vmax.f32 %v2728, 1e-20
  %v2751 = vmax.f32 %v2731, 1e-20
  %v2752 = vmax.f32 %v2734, 1e-20
  %v2753 = vmax.f32 %v2737, 1e-20
  %v2754 = vmax.f32 %v2740, 1e-20
  %v2755 = vmax.f32 %v2743, 1e-20
  %v2756 = vmax.f32 %v2746, 1e-20
  %v2757 = vmax.f32 %v2749, 1e-20
  %v2758 = vrcp.pop %v2750
  %v2759 = vrcp.pop %v2751
  %v2760 = vrcp.pop %v2752
  %v2761 = vrcp.pop %v2753
  %v2762 = vrcp.pop %v2754
  %v2763 = vrcp.pop %v2755
  %v2764 = vrcp.pop %v2756
  %v2765 = vrcp.pop %v2757
  %v2766 = vmul.f32 %v2711, %v2758
  %v2767 = vmul.f32 %v2713, %v2759
  %v2768 = vmul.f32 %v2715, %v2760
  %v2769 = vmul.f32 %v2717, %v2761
  %v2770 = vmul.f32 %v2719, %v2762
  %v2771 = vmul.f32 %v2721, %v2763
  %v2772 = vmul.f32 %v2723, %v2764
  %v2773 = vmul.f32 %v2725, %v2765
  %2774 = vrot.lane.b32.xlu0 %v1802, 112
  %v2775 = vpop.permute.xlu0 %2774
  %2776 = vrot.lane.b32.xlu0 %v1807, 112
  %v2777 = vpop.permute.xlu0 %2776
  %2778 = vrot.lane.b32.xlu0 %v1812, 112
  %v2779 = vpop.permute.xlu0 %2778
  %2780 = vrot.lane.b32.xlu0 %v1817, 112
  %v2781 = vpop.permute.xlu0 %2780
  %2782 = vrot.lane.b32.xlu0 %v1822, 112
  %v2783 = vpop.permute.xlu0 %2782
  %2784 = vrot.lane.b32.xlu0 %v1827, 112
  %v2785 = vpop.permute.xlu0 %2784
  %2786 = vrot.lane.b32.xlu0 %v1832, 112
  %v2787 = vpop.permute.xlu0 %2786
  %2788 = vrot.lane.b32.xlu0 %v1837, 112
  %v2789 = vpop.permute.xlu0 %2788
  %v2799 = vsel %vm329, %v2766, 0
  %v2802 = vsel %vm329, %v2767, 0
  %v2805 = vsel %vm329, %v2768, 0
  %v2808 = vsel %vm329, %v2769, 0
  %v2811 = vsel %vm329, %v2770, 0
  %v2814 = vsel %vm329, %v2771, 0
  %v2817 = vsel %vm329, %v2772, 0
  %v2820 = vsel %vm329, %v2773, 0
  %2822 = vmatprep.subr.mxu0 0.0
  %2823 = vmatpush1.msra.mxu0 0.0
  %2824 = vmatprep.subr.mxu0 0.0
  %2825 = vmatpush1.msra.mxu0 0.0
  %2826 = vmatprep.subr.mxu0 0.0
  %2827 = vmatpush1.msra.mxu0 0.0
  %2828 = vmatprep.subr.mxu0 0.0
  %2829 = vmatpush1.msra.mxu0 0.0
  %2830 = vmatprep.subr.mxu0 0.0
  %2831 = vmatpush1.msra.mxu0 0.0
  %2832 = vmatprep.subr.mxu0 0.0
  %2833 = vmatpush1.msra.mxu0 0.0
  %2834 = vmatprep.subr.mxu0 0.0
  %2835 = vmatpush1.msra.mxu0 0.0
  %2836 = vmatprep.subr.mxu0 0.0
  %2837 = vmatpush1.msra.mxu0 0.0
  %2838 = vmatprep.subr.mxu0 0.0
  %2839 = vmatpush1.msra.mxu0 %v2789
  %2840 = vmatprep.subr.mxu0 0.0
  %2841 = vmatpush1.msra.mxu0 %v2787
  %2842 = vmatprep.subr.mxu0 0.0
  %2843 = vmatpush1.msra.mxu0 %v2785
  %2844 = vmatprep.subr.mxu0 0.0
  %2845 = vmatpush1.msra.mxu0 %v2783
  %2846 = vmatprep.subr.mxu0 0.0
  %2847 = vmatpush1.msra.mxu0 %v2781
  %2848 = vmatprep.subr.mxu0 0.0
  %2849 = vmatpush1.msra.mxu0 %v2779
  %2850 = vmatprep.subr.mxu0 0.0
  %2851 = vmatpush1.msra.mxu0 %v2777
  %2852 = vmatprep.subr.mxu0 0.0
  %2853 = vmatpush1.msra.mxu0 %v2775
  %2854 = vmatprep.subr.mxu0 0.0
  %2855 = vmatpush2.msra.mxu0 0.0
  %2856 = vmatprep.subr.mxu0 0.0
  %2857 = vmatpush2.msra.mxu0 0.0
  %2858 = vmatprep.subr.mxu0 0.0
  %2859 = vmatpush2.msra.mxu0 0.0
  %2860 = vmatprep.subr.mxu0 0.0
  %2861 = vmatpush2.msra.mxu0 0.0
  %2862 = vmatprep.subr.mxu0 0.0
  %2863 = vmatpush2.msra.mxu0 0.0
  %2864 = vmatprep.subr.mxu0 0.0
  %2865 = vmatpush2.msra.mxu0 0.0
  %2866 = vmatprep.subr.mxu0 0.0
  %2867 = vmatpush2.msra.mxu0 0.0
  %2868 = vmatprep.subr.mxu0 0.0
  %2869 = vmatpush2.msra.mxu0 0.0
  %2870 = vmatprep.subr.mxu0 0.0
  %2871 = vmatpush2.msra.mxu0 0.0
  %2872 = vmatprep.subr.mxu0 0.0
  %2873 = vmatpush2.msra.mxu0 0.0
  %2874 = vmatprep.subr.mxu0 0.0
  %2875 = vmatpush2.msra.mxu0 0.0
  %2876 = vmatprep.subr.mxu0 0.0
  %2877 = vmatpush2.msra.mxu0 0.0
  %2878 = vmatprep.subr.mxu0 0.0
  %2879 = vmatpush2.msra.mxu0 0.0
  %2880 = vmatprep.subr.mxu0 0.0
  %2881 = vmatpush2.msra.mxu0 0.0
  %2882 = vmatprep.subr.mxu0 0.0
  %2883 = vmatpush2.msra.mxu0 0.0
  %2884 = vmatprep.subr.mxu0 0.0
  %2885 = vmatpush2.msra.mxu0 0.0
  %2886 = vmatprep.mubr.f32.mxu0 0.0
  %2887 = vmatmul.mubr.f32.gmra.mxu0 %v2799
  %v2888 = vpop.f32.mrf.mxu0
  %v2889 = vadd.f32 0.0, %v2888
  %v2890 = vpop.f32.mrf.mxu0
  %2891 = vmatprep.mubr.f32.mxu0 0.0
  %2892 = vmatmul.mubr.f32.gmra.mxu0 %v2802
  %v2893 = vpop.f32.mrf.mxu0
  %v2894 = vadd.f32 0.0, %v2893
  %v2895 = vpop.f32.mrf.mxu0
  %2896 = vmatprep.mubr.f32.mxu0 0.0
  %2897 = vmatmul.mubr.f32.gmra.mxu0 %v2805
  %v2898 = vpop.f32.mrf.mxu0
  %v2899 = vadd.f32 0.0, %v2898
  %v2900 = vpop.f32.mrf.mxu0
  %2901 = vmatprep.mubr.f32.mxu0 0.0
  %2902 = vmatmul.mubr.f32.gmra.mxu0 %v2808
  %v2903 = vpop.f32.mrf.mxu0
  %v2904 = vadd.f32 0.0, %v2903
  %v2905 = vpop.f32.mrf.mxu0
  %2906 = vmatprep.mubr.f32.mxu0 0.0
  %2907 = vmatmul.mubr.f32.gmra.mxu0 %v2811
  %v2908 = vpop.f32.mrf.mxu0
  %v2909 = vadd.f32 0.0, %v2908
  %v2910 = vpop.f32.mrf.mxu0
  %2911 = vmatprep.mubr.f32.mxu0 0.0
  %2912 = vmatmul.mubr.f32.gmra.mxu0 %v2814
  %v2913 = vpop.f32.mrf.mxu0
  %v2914 = vadd.f32 0.0, %v2913
  %v2915 = vpop.f32.mrf.mxu0
  %2916 = vmatprep.mubr.f32.mxu0 0.0
  %2917 = vmatmul.mubr.f32.gmra.mxu0 %v2817
  %v2918 = vpop.f32.mrf.mxu0
  %v2919 = vadd.f32 0.0, %v2918
  %v2920 = vpop.f32.mrf.mxu0
  %2921 = vmatprep.mubr.f32.mxu0 0.0
  %2922 = vmatmul.mubr.f32.gmra.mxu0 %v2820
  %v2923 = vpop.f32.mrf.mxu0
  %v2924 = vadd.f32 0.0, %v2923
  %v2925 = vpop.f32.mrf.mxu0
  %2926 = vdwg.mxu0
  %2935 = vrot.lane.b32.xlu0 %v2889, 16
  %v2936 = vpop.permute.xlu0 %2935
  %2937 = vrot.lane.b32.xlu0 %v2894, 16
  %v2938 = vpop.permute.xlu0 %2937
  %2939 = vrot.lane.b32.xlu0 %v2899, 16
  %v2940 = vpop.permute.xlu0 %2939
  %2941 = vrot.lane.b32.xlu0 %v2904, 16
  %v2942 = vpop.permute.xlu0 %2941
  %2943 = vrot.lane.b32.xlu0 %v2909, 16
  %v2944 = vpop.permute.xlu0 %2943
  %2945 = vrot.lane.b32.xlu0 %v2914, 16
  %v2946 = vpop.permute.xlu0 %2945
  %2947 = vrot.lane.b32.xlu0 %v2919, 16
  %v2948 = vpop.permute.xlu0 %2947
  %2949 = vrot.lane.b32.xlu0 %v2924, 16
  %v2950 = vpop.permute.xlu0 %2949
  %2959 = vst.msk [vmem:[#allocation2] sm:$0xff] %vm1303, %v2936
  %2960 = vst.msk [vmem:[#allocation2 + $0x8] sm:$0xff] %vm1303, %v2938
  %2961 = vst.msk [vmem:[#allocation2 + $0x10] sm:$0xff] %vm1303, %v2940
  %2962 = vst.msk [vmem:[#allocation2 + $0x18] sm:$0xff] %vm1303, %v2942
  %2963 = vst.msk [vmem:[#allocation2 + $0x20] sm:$0xff] %vm1303, %v2944
  %2964 = vst.msk [vmem:[#allocation2 + $0x28] sm:$0xff] %vm1303, %v2946
  %2965 = vst.msk [vmem:[#allocation2 + $0x30] sm:$0xff] %vm1303, %v2948
  %2966 = vst.msk [vmem:[#allocation2 + $0x38] sm:$0xff] %vm1303, %v2950
  %2967 = vset.pattern.permute.xlu0 39
  %2968 = vperm.xlu0 %2967, %v1802
  %v2969 = vpop.permute.xlu0 %2968
  %2971 = vset.pattern.permute.xlu0 39
  %2972 = vperm.xlu0 %2971, %v1807
  %v2973 = vpop.permute.xlu0 %2972
  %2975 = vset.pattern.permute.xlu0 39
  %2976 = vperm.xlu0 %2975, %v1812
  %v2977 = vpop.permute.xlu0 %2976
  %2979 = vset.pattern.permute.xlu0 39
  %2980 = vperm.xlu0 %2979, %v1817
  %v2981 = vpop.permute.xlu0 %2980
  %2983 = vset.pattern.permute.xlu0 39
  %2984 = vperm.xlu0 %2983, %v1822
  %v2985 = vpop.permute.xlu0 %2984
  %2987 = vset.pattern.permute.xlu0 39
  %2988 = vperm.xlu0 %2987, %v1827
  %v2989 = vpop.permute.xlu0 %2988
  %2991 = vset.pattern.permute.xlu0 39
  %2992 = vperm.xlu0 %2991, %v1832
  %v2993 = vpop.permute.xlu0 %2992
  %2995 = vset.pattern.permute.xlu0 39
  %2996 = vperm.xlu0 %2995, %v1837
  %v2997 = vpop.permute.xlu0 %2996
  %v2999 = vlaneseq
  %v3000 = vshrl.u32 %v2999, 7
  %v3001 = vsub.s32 3, %v3000
  %v3002 = vrot.slane %v1888, %v3001
  %v3003 = vadd.f32 %v2969, %v3002
  %v3004 = vadd.f32 %v2973, %v3002
  %v3005 = vadd.f32 %v2977, %v3002
  %v3006 = vadd.f32 %v2981, %v3002
  %v3007 = vadd.f32 %v2985, %v3002
  %v3008 = vadd.f32 %v2989, %v3002
  %v3009 = vadd.f32 %v2993, %v3002
  %v3010 = vadd.f32 %v2997, %v3002
  %vm3011 = vcmp.gt.f32.partialorder %v3003, 0.0
  %vm3012 = vcmp.gt.f32.partialorder %v3004, 0.0
  %vm3013 = vcmp.gt.f32.partialorder %v3005, 0.0
  %vm3014 = vcmp.gt.f32.partialorder %v3006, 0.0
  %vm3015 = vcmp.gt.f32.partialorder %v3007, 0.0
  %vm3016 = vcmp.gt.f32.partialorder %v3008, 0.0
  %vm3017 = vcmp.gt.f32.partialorder %v3009, 0.0
  %vm3018 = vcmp.gt.f32.partialorder %v3010, 0.0
  %v3019 = vmul.f32 %v3003, 0.1
  %v3020 = vmul.f32 %v3004, 0.1
  %v3021 = vmul.f32 %v3005, 0.1
  %v3022 = vmul.f32 %v3006, 0.1
  %v3023 = vmul.f32 %v3007, 0.1
  %v3024 = vmul.f32 %v3008, 0.1
  %v3025 = vmul.f32 %v3009, 0.1
  %v3026 = vmul.f32 %v3010, 0.1
  %v3027 = vsel %vm3011, %v3003, %v3019
  %v3028 = vsel %vm3012, %v3004, %v3020
  %v3029 = vsel %vm3013, %v3005, %v3021
  %v3030 = vsel %vm3014, %v3006, %v3022
  %v3031 = vsel %vm3015, %v3007, %v3023
  %v3032 = vsel %vm3016, %v3008, %v3024
  %v3033 = vsel %vm3017, %v3009, %v3025
  %v3034 = vsel %vm3018, %v3010, %v3026
  %v3035 = vmul.f32 %v31, %v3027
  %v3036 = vmul.f32 %v32, %v3028
  %v3037 = vmul.f32 %v33, %v3029
  %v3038 = vmul.f32 %v34, %v3030
  %v3039 = vmul.f32 %v35, %v3031
  %v3040 = vmul.f32 %v36, %v3032
  %v3041 = vmul.f32 %v37, %v3033
  %v3042 = vmul.f32 %v38, %v3034
  %v3043 = vadd.f32 %v3035, %v23
  %v3044 = vadd.f32 %v3036, %v24
  %v3045 = vadd.f32 %v3037, %v25
  %v3046 = vadd.f32 %v3038, %v26
  %v3047 = vadd.f32 %v3039, %v27
  %v3048 = vadd.f32 %v3040, %v28
  %v3049 = vadd.f32 %v3041, %v29
  %v3050 = vadd.f32 %v3042, %v30
  %v3051 = vsel %vm329, %v3043, -inf
  %3052 = vmax.xlane.f32.xlu0 %v3051
  %v3053 = vpop.xlane.xlu0 %3052
  %v3054 = vsel %vm329, %v3044, -inf
  %3055 = vmax.xlane.f32.xlu0 %v3054
  %v3056 = vpop.xlane.xlu0 %3055
  %v3057 = vsel %vm329, %v3045, -inf
  %3058 = vmax.xlane.f32.xlu0 %v3057
  %v3059 = vpop.xlane.xlu0 %3058
  %v3060 = vsel %vm329, %v3046, -inf
  %3061 = vmax.xlane.f32.xlu0 %v3060
  %v3062 = vpop.xlane.xlu0 %3061
  %v3063 = vsel %vm329, %v3047, -inf
  %3064 = vmax.xlane.f32.xlu0 %v3063
  %v3065 = vpop.xlane.xlu0 %3064
  %v3066 = vsel %vm329, %v3048, -inf
  %3067 = vmax.xlane.f32.xlu0 %v3066
  %v3068 = vpop.xlane.xlu0 %3067
  %v3069 = vsel %vm329, %v3049, -inf
  %3070 = vmax.xlane.f32.xlu0 %v3069
  %v3071 = vpop.xlane.xlu0 %3070
  %v3072 = vsel %vm329, %v3050, -inf
  %3073 = vmax.xlane.f32.xlu0 %v3072
  %v3074 = vpop.xlane.xlu0 %3073
  %v3075 = vsub.f32 %v3043, %v3053
  %v3076 = vsub.f32 %v3044, %v3056
  %v3077 = vsub.f32 %v3045, %v3059
  %v3078 = vsub.f32 %v3046, %v3062
  %v3079 = vsub.f32 %v3047, %v3065
  %v3080 = vsub.f32 %v3048, %v3068
  %v3081 = vsub.f32 %v3049, %v3071
  %v3082 = vsub.f32 %v3050, %v3074
  %v3083 = vmul.f32 %v3075, 1.442695
  %v3084 = vpow.pop %v3083
  %v3085 = vmul.f32 %v3076, 1.442695
  %v3086 = vpow.pop %v3085
  %v3087 = vmul.f32 %v3077, 1.442695
  %v3088 = vpow.pop %v3087
  %v3089 = vmul.f32 %v3078, 1.442695
  %v3090 = vpow.pop %v3089
  %v3091 = vmul.f32 %v3079, 1.442695
  %v3092 = vpow.pop %v3091
  %v3093 = vmul.f32 %v3080, 1.442695
  %v3094 = vpow.pop %v3093
  %v3095 = vmul.f32 %v3081, 1.442695
  %v3096 = vpow.pop %v3095
  %v3097 = vmul.f32 %v3082, 1.442695
  %v3098 = vpow.pop %v3097
  %v3099 = vsel %vm329, %v3084, 0.0
  %3100 = vadd.xlane.f32.xlu0 %v3099
  %v3101 = vpop.xlane.xlu0 %3100
  %v3102 = vsel %vm329, %v3086, 0.0
  %3103 = vadd.xlane.f32.xlu0 %v3102
  %v3104 = vpop.xlane.xlu0 %3103
  %v3105 = vsel %vm329, %v3088, 0.0
  %3106 = vadd.xlane.f32.xlu0 %v3105
  %v3107 = vpop.xlane.xlu0 %3106
  %v3108 = vsel %vm329, %v3090, 0.0
  %3109 = vadd.xlane.f32.xlu0 %v3108
  %v3110 = vpop.xlane.xlu0 %3109
  %v3111 = vsel %vm329, %v3092, 0.0
  %3112 = vadd.xlane.f32.xlu0 %v3111
  %v3113 = vpop.xlane.xlu0 %3112
  %v3114 = vsel %vm329, %v3094, 0.0
  %3115 = vadd.xlane.f32.xlu0 %v3114
  %v3116 = vpop.xlane.xlu0 %3115
  %v3117 = vsel %vm329, %v3096, 0.0
  %3118 = vadd.xlane.f32.xlu0 %v3117
  %v3119 = vpop.xlane.xlu0 %3118
  %v3120 = vsel %vm329, %v3098, 0.0
  %3121 = vadd.xlane.f32.xlu0 %v3120
  %v3122 = vpop.xlane.xlu0 %3121
  %v3123 = vmax.f32 %v3101, 1e-20
  %v3124 = vmax.f32 %v3104, 1e-20
  %v3125 = vmax.f32 %v3107, 1e-20
  %v3126 = vmax.f32 %v3110, 1e-20
  %v3127 = vmax.f32 %v3113, 1e-20
  %v3128 = vmax.f32 %v3116, 1e-20
  %v3129 = vmax.f32 %v3119, 1e-20
  %v3130 = vmax.f32 %v3122, 1e-20
  %v3131 = vrcp.pop %v3123
  %v3132 = vrcp.pop %v3124
  %v3133 = vrcp.pop %v3125
  %v3134 = vrcp.pop %v3126
  %v3135 = vrcp.pop %v3127
  %v3136 = vrcp.pop %v3128
  %v3137 = vrcp.pop %v3129
  %v3138 = vrcp.pop %v3130
  %v3139 = vmul.f32 %v3084, %v3131
  %v3140 = vmul.f32 %v3086, %v3132
  %v3141 = vmul.f32 %v3088, %v3133
  %v3142 = vmul.f32 %v3090, %v3134
  %v3143 = vmul.f32 %v3092, %v3135
  %v3144 = vmul.f32 %v3094, %v3136
  %v3145 = vmul.f32 %v3096, %v3137
  %v3146 = vmul.f32 %v3098, %v3138
  %3147 = vrot.lane.b32.xlu0 %v1802, 104
  %v3148 = vpop.permute.xlu0 %3147
  %3149 = vrot.lane.b32.xlu0 %v1807, 104
  %v3150 = vpop.permute.xlu0 %3149
  %3151 = vrot.lane.b32.xlu0 %v1812, 104
  %v3152 = vpop.permute.xlu0 %3151
  %3153 = vrot.lane.b32.xlu0 %v1817, 104
  %v3154 = vpop.permute.xlu0 %3153
  %3155 = vrot.lane.b32.xlu0 %v1822, 104
  %v3156 = vpop.permute.xlu0 %3155
  %3157 = vrot.lane.b32.xlu0 %v1827, 104
  %v3158 = vpop.permute.xlu0 %3157
  %3159 = vrot.lane.b32.xlu0 %v1832, 104
  %v3160 = vpop.permute.xlu0 %3159
  %3161 = vrot.lane.b32.xlu0 %v1837, 104
  %v3162 = vpop.permute.xlu0 %3161
  %v3172 = vsel %vm329, %v3139, 0
  %v3175 = vsel %vm329, %v3140, 0
  %v3178 = vsel %vm329, %v3141, 0
  %v3181 = vsel %vm329, %v3142, 0
  %v3184 = vsel %vm329, %v3143, 0
  %v3187 = vsel %vm329, %v3144, 0
  %v3190 = vsel %vm329, %v3145, 0
  %v3193 = vsel %vm329, %v3146, 0
  %3195 = vmatprep.subr.mxu0 0.0
  %3196 = vmatpush1.msra.mxu0 0.0
  %3197 = vmatprep.subr.mxu0 0.0
  %3198 = vmatpush1.msra.mxu0 0.0
  %3199 = vmatprep.subr.mxu0 0.0
  %3200 = vmatpush1.msra.mxu0 0.0
  %3201 = vmatprep.subr.mxu0 0.0
  %3202 = vmatpush1.msra.mxu0 0.0
  %3203 = vmatprep.subr.mxu0 0.0
  %3204 = vmatpush1.msra.mxu0 0.0
  %3205 = vmatprep.subr.mxu0 0.0
  %3206 = vmatpush1.msra.mxu0 0.0
  %3207 = vmatprep.subr.mxu0 0.0
  %3208 = vmatpush1.msra.mxu0 0.0
  %3209 = vmatprep.subr.mxu0 0.0
  %3210 = vmatpush1.msra.mxu0 0.0
  %3211 = vmatprep.subr.mxu0 0.0
  %3212 = vmatpush1.msra.mxu0 %v3162
  %3213 = vmatprep.subr.mxu0 0.0
  %3214 = vmatpush1.msra.mxu0 %v3160
  %3215 = vmatprep.subr.mxu0 0.0
  %3216 = vmatpush1.msra.mxu0 %v3158
  %3217 = vmatprep.subr.mxu0 0.0
  %3218 = vmatpush1.msra.mxu0 %v3156
  %3219 = vmatprep.subr.mxu0 0.0
  %3220 = vmatpush1.msra.mxu0 %v3154
  %3221 = vmatprep.subr.mxu0 0.0
  %3222 = vmatpush1.msra.mxu0 %v3152
  %3223 = vmatprep.subr.mxu0 0.0
  %3224 = vmatpush1.msra.mxu0 %v3150
  %3225 = vmatprep.subr.mxu0 0.0
  %3226 = vmatpush1.msra.mxu0 %v3148
  %3227 = vmatprep.subr.mxu0 0.0
  %3228 = vmatpush2.msra.mxu0 0.0
  %3229 = vmatprep.subr.mxu0 0.0
  %3230 = vmatpush2.msra.mxu0 0.0
  %3231 = vmatprep.subr.mxu0 0.0
  %3232 = vmatpush2.msra.mxu0 0.0
  %3233 = vmatprep.subr.mxu0 0.0
  %3234 = vmatpush2.msra.mxu0 0.0
  %3235 = vmatprep.subr.mxu0 0.0
  %3236 = vmatpush2.msra.mxu0 0.0
  %3237 = vmatprep.subr.mxu0 0.0
  %3238 = vmatpush2.msra.mxu0 0.0
  %3239 = vmatprep.subr.mxu0 0.0
  %3240 = vmatpush2.msra.mxu0 0.0
  %3241 = vmatprep.subr.mxu0 0.0
  %3242 = vmatpush2.msra.mxu0 0.0
  %3243 = vmatprep.subr.mxu0 0.0
  %3244 = vmatpush2.msra.mxu0 0.0
  %3245 = vmatprep.subr.mxu0 0.0
  %3246 = vmatpush2.msra.mxu0 0.0
  %3247 = vmatprep.subr.mxu0 0.0
  %3248 = vmatpush2.msra.mxu0 0.0
  %3249 = vmatprep.subr.mxu0 0.0
  %3250 = vmatpush2.msra.mxu0 0.0
  %3251 = vmatprep.subr.mxu0 0.0
  %3252 = vmatpush2.msra.mxu0 0.0
  %3253 = vmatprep.subr.mxu0 0.0
  %3254 = vmatpush2.msra.mxu0 0.0
  %3255 = vmatprep.subr.mxu0 0.0
  %3256 = vmatpush2.msra.mxu0 0.0
  %3257 = vmatprep.subr.mxu0 0.0
  %3258 = vmatpush2.msra.mxu0 0.0
  %3259 = vmatprep.mubr.f32.mxu0 0.0
  %3260 = vmatmul.mubr.f32.gmra.mxu0 %v3172
  %v3261 = vpop.f32.mrf.mxu0
  %v3262 = vadd.f32 0.0, %v3261
  %v3263 = vpop.f32.mrf.mxu0
  %3264 = vmatprep.mubr.f32.mxu0 0.0
  %3265 = vmatmul.mubr.f32.gmra.mxu0 %v3175
  %v3266 = vpop.f32.mrf.mxu0
  %v3267 = vadd.f32 0.0, %v3266
  %v3268 = vpop.f32.mrf.mxu0
  %3269 = vmatprep.mubr.f32.mxu0 0.0
  %3270 = vmatmul.mubr.f32.gmra.mxu0 %v3178
  %v3271 = vpop.f32.mrf.mxu0
  %v3272 = vadd.f32 0.0, %v3271
  %v3273 = vpop.f32.mrf.mxu0
  %3274 = vmatprep.mubr.f32.mxu0 0.0
  %3275 = vmatmul.mubr.f32.gmra.mxu0 %v3181
  %v3276 = vpop.f32.mrf.mxu0
  %v3277 = vadd.f32 0.0, %v3276
  %v3278 = vpop.f32.mrf.mxu0
  %3279 = vmatprep.mubr.f32.mxu0 0.0
  %3280 = vmatmul.mubr.f32.gmra.mxu0 %v3184
  %v3281 = vpop.f32.mrf.mxu0
  %v3282 = vadd.f32 0.0, %v3281
  %v3283 = vpop.f32.mrf.mxu0
  %3284 = vmatprep.mubr.f32.mxu0 0.0
  %3285 = vmatmul.mubr.f32.gmra.mxu0 %v3187
  %v3286 = vpop.f32.mrf.mxu0
  %v3287 = vadd.f32 0.0, %v3286
  %v3288 = vpop.f32.mrf.mxu0
  %3289 = vmatprep.mubr.f32.mxu0 0.0
  %3290 = vmatmul.mubr.f32.gmra.mxu0 %v3190
  %v3291 = vpop.f32.mrf.mxu0
  %v3292 = vadd.f32 0.0, %v3291
  %v3293 = vpop.f32.mrf.mxu0
  %3294 = vmatprep.mubr.f32.mxu0 0.0
  %3295 = vmatmul.mubr.f32.gmra.mxu0 %v3193
  %v3296 = vpop.f32.mrf.mxu0
  %v3297 = vadd.f32 0.0, %v3296
  %v3298 = vpop.f32.mrf.mxu0
  %3299 = vdwg.mxu0
  %3308 = vrot.lane.b32.xlu0 %v3262, 24
  %v3309 = vpop.permute.xlu0 %3308
  %3310 = vrot.lane.b32.xlu0 %v3267, 24
  %v3311 = vpop.permute.xlu0 %3310
  %3312 = vrot.lane.b32.xlu0 %v3272, 24
  %v3313 = vpop.permute.xlu0 %3312
  %3314 = vrot.lane.b32.xlu0 %v3277, 24
  %v3315 = vpop.permute.xlu0 %3314
  %3316 = vrot.lane.b32.xlu0 %v3282, 24
  %v3317 = vpop.permute.xlu0 %3316
  %3318 = vrot.lane.b32.xlu0 %v3287, 24
  %v3319 = vpop.permute.xlu0 %3318
  %3320 = vrot.lane.b32.xlu0 %v3292, 24
  %v3321 = vpop.permute.xlu0 %3320
  %3322 = vrot.lane.b32.xlu0 %v3297, 24
  %v3323 = vpop.permute.xlu0 %3322
  %3332 = vst.msk [vmem:[#allocation2] sm:$0xff] %vm1677, %v3309
  %3333 = vst.msk [vmem:[#allocation2 + $0x8] sm:$0xff] %vm1677, %v3311
  %3334 = vst.msk [vmem:[#allocation2 + $0x10] sm:$0xff] %vm1677, %v3313
  %3335 = vst.msk [vmem:[#allocation2 + $0x18] sm:$0xff] %vm1677, %v3315
  %3336 = vst.msk [vmem:[#allocation2 + $0x20] sm:$0xff] %vm1677, %v3317
  %3337 = vst.msk [vmem:[#allocation2 + $0x28] sm:$0xff] %vm1677, %v3319
  %3338 = vst.msk [vmem:[#allocation2 + $0x30] sm:$0xff] %vm1677, %v3321
  %3339 = vst.msk [vmem:[#allocation2 + $0x38] sm:$0xff] %vm1677, %v3323
  %v3340 = vld [vmem:[#allocation2] sm:$0xff]
  %v3341 = vld [vmem:[#allocation2 + $0x8] sm:$0xff]
  %v3342 = vld [vmem:[#allocation2 + $0x10] sm:$0xff]
  %v3343 = vld [vmem:[#allocation2 + $0x18] sm:$0xff]
  %v3344 = vld [vmem:[#allocation2 + $0x20] sm:$0xff]
  %v3345 = vld [vmem:[#allocation2 + $0x28] sm:$0xff]
  %v3346 = vld [vmem:[#allocation2 + $0x30] sm:$0xff]
  %v3347 = vld [vmem:[#allocation2 + $0x38] sm:$0xff]
  %v3348 = vmax.f32 %v3340, 0.0
  %v3349 = vmax.f32 %v3341, 0.0
  %v3350 = vmax.f32 %v3342, 0.0
  %v3351 = vmax.f32 %v3343, 0.0
  %v3352 = vmax.f32 %v3344, 0.0
  %v3353 = vmax.f32 %v3345, 0.0
  %v3354 = vmax.f32 %v3346, 0.0
  %v3355 = vmax.f32 %v3347, 0.0
  %v3356 = vld [vmem:[%s4 + $0x20] sm:$0xff]
  %v3357 = vld [vmem:[%s4 + $0x28] sm:$0xff]
  %v3358 = vld [vmem:[%s4 + $0x30] sm:$0xff]
  %v3359 = vld [vmem:[%s4 + $0x38] sm:$0xff]
  %v3361 = vsel %vm51, %v3348, 0
  %v3364 = vsel %vm51, %v3349, 0
  %v3367 = vsel %vm51, %v3350, 0
  %v3370 = vsel %vm51, %v3351, 0
  %v3373 = vsel %vm51, %v3352, 0
  %v3376 = vsel %vm51, %v3353, 0
  %v3379 = vsel %vm51, %v3354, 0
  %v3382 = vsel %vm51, %v3355, 0
  %3384 = vmatprep.subr.mxu0 0.0
  %3385 = vmatpush1.msra.mxu0 0.0
  %3386 = vmatprep.subr.mxu0 0.0
  %3387 = vmatpush1.msra.mxu0 0.0
  %3388 = vmatprep.subr.mxu0 0.0
  %3389 = vmatpush1.msra.mxu0 0.0
  %3390 = vmatprep.subr.mxu0 0.0
  %3391 = vmatpush1.msra.mxu0 0.0
  %3392 = vmatprep.subr.mxu0 0.0
  %3393 = vmatpush1.msra.mxu0 0.0
  %3394 = vmatprep.subr.mxu0 0.0
  %3395 = vmatpush1.msra.mxu0 0.0
  %3396 = vmatprep.subr.mxu0 0.0
  %3397 = vmatpush1.msra.mxu0 0.0
  %3398 = vmatprep.subr.mxu0 0.0
  %3399 = vmatpush1.msra.mxu0 0.0
  %3400 = vmatprep.subr.mxu0 0.0
  %3401 = vmatpush1.msra.mxu0 0.0
  %3402 = vmatprep.subr.mxu0 0.0
  %3403 = vmatpush1.msra.mxu0 0.0
  %3404 = vmatprep.subr.mxu0 0.0
  %3405 = vmatpush1.msra.mxu0 0.0
  %3406 = vmatprep.subr.mxu0 0.0
  %3407 = vmatpush1.msra.mxu0 0.0
  %3408 = vmatprep.subr.mxu0 0.0
  %3409 = vmatpush1.msra.mxu0 %v3359
  %3410 = vmatprep.subr.mxu0 0.0
  %3411 = vmatpush1.msra.mxu0 %v3358
  %3412 = vmatprep.subr.mxu0 0.0
  %3413 = vmatpush1.msra.mxu0 %v3357
  %3414 = vmatprep.subr.mxu0 0.0
  %3415 = vmatpush1.msra.mxu0 %v3356
  %3416 = vmatprep.subr.mxu0 0.0
  %3417 = vmatpush2.msra.mxu0 0.0
  %3418 = vmatprep.subr.mxu0 0.0
  %3419 = vmatpush2.msra.mxu0 0.0
  %3420 = vmatprep.subr.mxu0 0.0
  %3421 = vmatpush2.msra.mxu0 0.0
  %3422 = vmatprep.subr.mxu0 0.0
  %3423 = vmatpush2.msra.mxu0 0.0
  %3424 = vmatprep.subr.mxu0 0.0
  %3425 = vmatpush2.msra.mxu0 0.0
  %3426 = vmatprep.subr.mxu0 0.0
  %3427 = vmatpush2.msra.mxu0 0.0
  %3428 = vmatprep.subr.mxu0 0.0
  %3429 = vmatpush2.msra.mxu0 0.0
  %3430 = vmatprep.subr.mxu0 0.0
  %3431 = vmatpush2.msra.mxu0 0.0
  %3432 = vmatprep.subr.mxu0 0.0
  %3433 = vmatpush2.msra.mxu0 0.0
  %3434 = vmatprep.subr.mxu0 0.0
  %3435 = vmatpush2.msra.mxu0 0.0
  %3436 = vmatprep.subr.mxu0 0.0
  %3437 = vmatpush2.msra.mxu0 0.0
  %3438 = vmatprep.subr.mxu0 0.0
  %3439 = vmatpush2.msra.mxu0 0.0
  %3440 = vmatprep.subr.mxu0 0.0
  %3441 = vmatpush2.msra.mxu0 0.0
  %3442 = vmatprep.subr.mxu0 0.0
  %3443 = vmatpush2.msra.mxu0 0.0
  %3444 = vmatprep.subr.mxu0 0.0
  %3445 = vmatpush2.msra.mxu0 0.0
  %3446 = vmatprep.subr.mxu0 0.0
  %3447 = vmatpush2.msra.mxu0 0.0
  %3448 = vmatprep.mubr.f32.mxu0 0.0
  %3449 = vmatmul.mubr.f32.gmra.mxu0 %v3361
  %v3450 = vpop.f32.mrf.mxu0
  %v3451 = vadd.f32 0.0, %v3450
  %v3452 = vpop.f32.mrf.mxu0
  %3453 = vmatprep.mubr.f32.mxu0 0.0
  %3454 = vmatmul.mubr.f32.gmra.mxu0 %v3364
  %v3455 = vpop.f32.mrf.mxu0
  %v3456 = vadd.f32 0.0, %v3455
  %v3457 = vpop.f32.mrf.mxu0
  %3458 = vmatprep.mubr.f32.mxu0 0.0
  %3459 = vmatmul.mubr.f32.gmra.mxu0 %v3367
  %v3460 = vpop.f32.mrf.mxu0
  %v3461 = vadd.f32 0.0, %v3460
  %v3462 = vpop.f32.mrf.mxu0
  %3463 = vmatprep.mubr.f32.mxu0 0.0
  %3464 = vmatmul.mubr.f32.gmra.mxu0 %v3370
  %v3465 = vpop.f32.mrf.mxu0
  %v3466 = vadd.f32 0.0, %v3465
  %v3467 = vpop.f32.mrf.mxu0
  %3468 = vmatprep.mubr.f32.mxu0 0.0
  %3469 = vmatmul.mubr.f32.gmra.mxu0 %v3373
  %v3470 = vpop.f32.mrf.mxu0
  %v3471 = vadd.f32 0.0, %v3470
  %v3472 = vpop.f32.mrf.mxu0
  %3473 = vmatprep.mubr.f32.mxu0 0.0
  %3474 = vmatmul.mubr.f32.gmra.mxu0 %v3376
  %v3475 = vpop.f32.mrf.mxu0
  %v3476 = vadd.f32 0.0, %v3475
  %v3477 = vpop.f32.mrf.mxu0
  %3478 = vmatprep.mubr.f32.mxu0 0.0
  %3479 = vmatmul.mubr.f32.gmra.mxu0 %v3379
  %v3480 = vpop.f32.mrf.mxu0
  %v3481 = vadd.f32 0.0, %v3480
  %v3482 = vpop.f32.mrf.mxu0
  %3483 = vmatprep.mubr.f32.mxu0 0.0
  %3484 = vmatmul.mubr.f32.gmra.mxu0 %v3382
  %v3485 = vpop.f32.mrf.mxu0
  %v3486 = vadd.f32 0.0, %v3485
  %v3487 = vpop.f32.mrf.mxu0
  %3488 = vdwg.mxu0
  %3489 = vmatprep.subr.mxu0 0.0
  %3490 = vmatpush1.msra.mxu0 0.0
  %3491 = vmatprep.subr.mxu0 0.0
  %3492 = vmatpush1.msra.mxu0 0.0
  %3493 = vmatprep.subr.mxu0 0.0
  %3494 = vmatpush1.msra.mxu0 0.0
  %3495 = vmatprep.subr.mxu0 0.0
  %3496 = vmatpush1.msra.mxu0 0.0
  %3497 = vmatprep.subr.mxu0 0.0
  %3498 = vmatpush1.msra.mxu0 0.0
  %3499 = vmatprep.subr.mxu0 0.0
  %3500 = vmatpush1.msra.mxu0 0.0
  %3501 = vmatprep.subr.mxu0 0.0
  %3502 = vmatpush1.msra.mxu0 0.0
  %3503 = vmatprep.subr.mxu0 0.0
  %3504 = vmatpush1.msra.mxu0 0.0
  %3505 = vmatprep.subr.mxu0 0.0
  %3506 = vmatpush1.msra.mxu0 0.0
  %3507 = vmatprep.subr.mxu0 0.0
  %3508 = vmatpush1.msra.mxu0 0.0
  %3509 = vmatprep.subr.mxu0 0.0
  %3510 = vmatpush1.msra.mxu0 0.0
  %3511 = vmatprep.subr.mxu0 0.0
  %3512 = vmatpush1.msra.mxu0 0.0
  %3513 = vmatprep.subr.mxu0 0.0
  %3514 = vmatpush1.msra.mxu0 %v1705
  %3515 = vmatprep.subr.mxu0 0.0
  %3516 = vmatpush1.msra.mxu0 %v1704
  %3517 = vmatprep.subr.mxu0 0.0
  %3518 = vmatpush1.msra.mxu0 %v1703
  %3519 = vmatprep.subr.mxu0 0.0
  %3520 = vmatpush1.msra.mxu0 %v1702
  %3521 = vmatprep.subr.mxu0 0.0
  %3522 = vmatpush2.msra.mxu0 0.0
  %3523 = vmatprep.subr.mxu0 0.0
  %3524 = vmatpush2.msra.mxu0 0.0
  %3525 = vmatprep.subr.mxu0 0.0
  %3526 = vmatpush2.msra.mxu0 0.0
  %3527 = vmatprep.subr.mxu0 0.0
  %3528 = vmatpush2.msra.mxu0 0.0
  %3529 = vmatprep.subr.mxu0 0.0
  %3530 = vmatpush2.msra.mxu0 0.0
  %3531 = vmatprep.subr.mxu0 0.0
  %3532 = vmatpush2.msra.mxu0 0.0
  %3533 = vmatprep.subr.mxu0 0.0
  %3534 = vmatpush2.msra.mxu0 0.0
  %3535 = vmatprep.subr.mxu0 0.0
  %3536 = vmatpush2.msra.mxu0 0.0
  %3537 = vmatprep.subr.mxu0 0.0
  %3538 = vmatpush2.msra.mxu0 0.0
  %3539 = vmatprep.subr.mxu0 0.0
  %3540 = vmatpush2.msra.mxu0 0.0
  %3541 = vmatprep.subr.mxu0 0.0
  %3542 = vmatpush2.msra.mxu0 0.0
  %3543 = vmatprep.subr.mxu0 0.0
  %3544 = vmatpush2.msra.mxu0 0.0
  %3545 = vmatprep.subr.mxu0 0.0
  %3546 = vmatpush2.msra.mxu0 0.0
  %3547 = vmatprep.subr.mxu0 0.0
  %3548 = vmatpush2.msra.mxu0 0.0
  %3549 = vmatprep.subr.mxu0 0.0
  %3550 = vmatpush2.msra.mxu0 0.0
  %3551 = vmatprep.subr.mxu0 0.0
  %3552 = vmatpush2.msra.mxu0 0.0
  %3553 = vmatprep.mubr.f32.mxu0 0.0
  %3554 = vmatmul.mubr.f32.gmra.mxu0 %v1712
  %v3555 = vpop.f32.mrf.mxu0
  %v3556 = vadd.f32 %v3451, %v3555
  %v3557 = vpop.f32.mrf.mxu0
  %3558 = vmatprep.mubr.f32.mxu0 0.0
  %3559 = vmatmul.mubr.f32.gmra.mxu0 %v1715
  %v3560 = vpop.f32.mrf.mxu0
  %v3561 = vadd.f32 %v3456, %v3560
  %v3562 = vpop.f32.mrf.mxu0
  %3563 = vmatprep.mubr.f32.mxu0 0.0
  %3564 = vmatmul.mubr.f32.gmra.mxu0 %v1718
  %v3565 = vpop.f32.mrf.mxu0
  %v3566 = vadd.f32 %v3461, %v3565
  %v3567 = vpop.f32.mrf.mxu0
  %3568 = vmatprep.mubr.f32.mxu0 0.0
  %3569 = vmatmul.mubr.f32.gmra.mxu0 %v1721
  %v3570 = vpop.f32.mrf.mxu0
  %v3571 = vadd.f32 %v3466, %v3570
  %v3572 = vpop.f32.mrf.mxu0
  %3573 = vmatprep.mubr.f32.mxu0 0.0
  %3574 = vmatmul.mubr.f32.gmra.mxu0 %v1724
  %v3575 = vpop.f32.mrf.mxu0
  %v3576 = vadd.f32 %v3471, %v3575
  %v3577 = vpop.f32.mrf.mxu0
  %3578 = vmatprep.mubr.f32.mxu0 0.0
  %3579 = vmatmul.mubr.f32.gmra.mxu0 %v1727
  %v3580 = vpop.f32.mrf.mxu0
  %v3581 = vadd.f32 %v3476, %v3580
  %v3582 = vpop.f32.mrf.mxu0
  %3583 = vmatprep.mubr.f32.mxu0 0.0
  %3584 = vmatmul.mubr.f32.gmra.mxu0 %v1730
  %v3585 = vpop.f32.mrf.mxu0
  %v3586 = vadd.f32 %v3481, %v3585
  %v3587 = vpop.f32.mrf.mxu0
  %3588 = vmatprep.mubr.f32.mxu0 0.0
  %3589 = vmatmul.mubr.f32.gmra.mxu0 %v1733
  %v3590 = vpop.f32.mrf.mxu0
  %v3591 = vadd.f32 %v3486, %v3590
  %v3592 = vpop.f32.mrf.mxu0
  %3593 = vdwg.mxu0
  %v3594 = vld [vmem:[%s5] sm:$0x1]
  %v3596 = vlaneseq
  %v3597 = vshrl.u32 %v3596, 7
  %v3598 = vsub.s32 0, %v3597
  %v3599 = vrot.slane %v3594, %v3598
  %v3601 = vadd.f32 %v3556, %v3599
  %v3602 = vadd.f32 %v3561, %v3599
  %v3603 = vadd.f32 %v3566, %v3599
  %v3604 = vadd.f32 %v3571, %v3599
  %v3605 = vadd.f32 %v3576, %v3599
  %v3606 = vadd.f32 %v3581, %v3599
  %v3607 = vadd.f32 %v3586, %v3599
  %v3608 = vadd.f32 %v3591, %v3599
  %3609 = vst.msk [vmem:[%s6] sm:$0xff] %vm51, %v3601
  %3610 = vst.msk [vmem:[%s6 + $0x8] sm:$0xff] %vm51, %v3602
  %3611 = vst.msk [vmem:[%s6 + $0x10] sm:$0xff] %vm51, %v3603
  %3612 = vst.msk [vmem:[%s6 + $0x18] sm:$0xff] %vm51, %v3604
  %3613 = vst.msk [vmem:[%s6 + $0x20] sm:$0xff] %vm51, %v3605
  %3614 = vst.msk [vmem:[%s6 + $0x28] sm:$0xff] %vm51, %v3606
  %3615 = vst.msk [vmem:[%s6 + $0x30] sm:$0xff] %vm51, %v3607
  %3616 = vst.msk [vmem:[%s6 + $0x38] sm:$0xff] %vm51, %v3608
  // Predicated region
  $region26: #{tpu_custom_call.1} parent=0 // pred_check
    _
  $region27: #{tpu_custom_call.1} parent=0 // pred_check_branch
    %3618 = sbr.rel (0) target = $region29
  $region28: #{tpu_custom_call.1} parent=0 // pred_region
    _
  $region29: #{tpu_custom_call.1} parent=0 // pred_fallthru
    _
  // Predicated region
  $region30: #{tpu_custom_call.1} parent=0 // pred_check
    _
  $region31: #{tpu_custom_call.1} parent=0 // pred_check_branch
    %3620 = sbr.rel (0) target = $region33
  $region32: #{tpu_custom_call.1} parent=0 // pred_region
    _
  $region33: #{tpu_custom_call.1} parent=0 // pred_fallthru
    _

</llo_original>
